<compile_context>
chip_gen: v6e
topology: v6e:2x2x1
jax: 0.10.0
libtpu: 0.0.40
codegen_flags: <defaults>
</compile_context>

<pallas_src>
import numpy as np
import jax
import jax.numpy as jnp
from jax.experimental import pallas as pl
from jax.experimental.pallas import tpu as pltpu


# ------------------------------ fused kernel ---------------------------------

def make_ae_da_kernel(chain_hidden, fused, znoise_dim, n_class, de_act, cl_act):
    """Builds the fused AE_DA forward kernel.

    chain_hidden: hidden-layer count per parameter chain, in ref order
      (encoder, decoder, fused-head)        when fused=True
      (encoder, decoder, classifier, disc)  when fused=False
    Parameter refs per chain: [W_t(bf16), gb(2,N)] per hidden layer, then [W_t(bf16), b].
    """

    def act(v, kind):
        if kind == "sigmoid":
            # 1/(1+exp(-v)); reciprocal goes to the EUP slot.
            return pl.reciprocal(1.0 + jnp.exp(-v), approx=True)
        if kind == "softmax":
            m = jnp.max(v, axis=-1, keepdims=True)
            e = jnp.exp(v - m)
            return e * pl.reciprocal(jnp.sum(e, axis=-1, keepdims=True), approx=True)
        return v

    def mlp_chain(a, refs, idx, n_h):
        # [Linear(no bias) -> folded training-mode BN -> ReLU] * n_h -> Linear(+bias)
        for _ in range(n_h):
            w_ref, gb_ref = refs[idx], refs[idx + 1]
            idx += 2
            h = jnp.dot(a.astype(jnp.bfloat16), w_ref[...],
                        preferred_element_type=jnp.float32)
            gb = gb_ref[...]                                  # (2, N): [gamma; beta]
            inv_n = 1.0 / h.shape[0]
            mean = jnp.sum(h, axis=0, keepdims=True) * inv_n      # one-pass stats
            ex2 = jnp.sum(h * h, axis=0, keepdims=True) * inv_n
            var = ex2 - mean * mean                               # biased batch var
            scale = gb[0:1, :] * jax.lax.rsqrt(var + 1e-5)
            shift = gb[1:2, :] - mean * scale
            a = jnp.maximum(h * scale + shift, 0.0)               # folded BN + ReLU
        w_ref, b_ref = refs[idx], refs[idx + 1]
        idx += 2
        out = jnp.dot(a.astype(jnp.bfloat16), w_ref[...],
                      preferred_element_type=jnp.float32) + b_ref[...]
        return out, idx

    def kernel(*refs):
        z_ref, xbar_ref, clas_ref, disc_ref = refs[-4:]
        x = refs[0][...]
        idx = 1
        # Encoder -> z
        z, idx = mlp_chain(x, refs, idx, chain_hidden[0])
        # Decoder -> x_bar (+ de_act)
        x_bar, idx = mlp_chain(z, refs, idx, chain_hidden[1])
        x_bar = act(x_bar, de_act)
        if fused:
            # Block-diagonally fused classifier+discriminator head, fed directly by z
            # (no znoise/zbio slicing); per-head activation afterwards.
            head, idx = mlp_chain(z, refs, idx, chain_hidden[2])
            clas = act(head[:, :n_class], cl_act)
            disc = act(head[:, n_class:], cl_act)
        else:
            # Fallback when head depths differ: slice z and run the heads separately.
            clas, idx = mlp_chain(z[:, :znoise_dim], refs, idx, chain_hidden[2])
            clas = act(clas, cl_act)
            disc, idx = mlp_chain(z[:, znoise_dim:], refs, idx, chain_hidden[3])
            disc = act(disc, cl_act)
        # TODO(synk): RevGrad is a gradient-reversal op; its forward pass is identity,
        # so `lamda` has no effect here (backward-only semantics not modeled).
        z_ref[...] = z.astype(z_ref.dtype)
        xbar_ref[...] = x_bar.astype(xbar_ref.dtype)
        clas_ref[...] = clas.astype(clas_ref.dtype)
        disc_ref[...] = disc.astype(disc_ref.dtype)

    return kernel


# ------------------------------ host wrapper ----------------------------------

def _flat_params(sub):
    """Flatten one chain: per hidden layer (W^T bf16, packed gamma/beta), then (W^T bf16, b).

    Hidden-layer Linear biases are NOT shipped: a constant bias before training-mode
    BatchNorm is cancelled exactly by the mean subtraction.
    """
    flat = []
    for (W, _b, g, bt) in sub["hidden"]:
        flat.append(jnp.asarray(W, jnp.float32).T.astype(jnp.bfloat16))
        flat.append(jnp.stack([jnp.asarray(g, jnp.float32),
                               jnp.asarray(bt, jnp.float32)]))          # (2, N)
    W, b = sub["final"]
    flat.append(jnp.asarray(W, jnp.float32).T.astype(jnp.bfloat16))
    flat.append(jnp.asarray(b, jnp.float32).reshape(1, -1))
    return flat


def _fuse_heads(cl, di):
    """Block-diagonally fuse classifier and discriminator params (equal hidden depth)."""
    fused_hidden = []
    for (Wc, bc, gc, btc), (Wd, bd, gd, btd) in zip(cl["hidden"], di["hidden"]):
        oc, ic = Wc.shape
        od, id_ = Wd.shape
        W = jnp.zeros((oc + od, ic + id_), jnp.float32)
        W = W.at[:oc, :ic].set(Wc).at[oc:, ic:].set(Wd)
        fused_hidden.append((W,
                             jnp.concatenate([bc, bd]),
                             jnp.concatenate([gc, gd]),
                             jnp.concatenate([btc, btd])))
    Wc, bc = cl["final"]
    Wd, bd = di["final"]
    oc, ic = Wc.shape
    od, id_ = Wd.shape
    Wf = jnp.zeros((oc + od, ic + id_), jnp.float32)
    Wf = Wf.at[:oc, :ic].set(Wc).at[oc:, ic:].set(Wd)
    return {"hidden": fused_hidden, "final": (Wf, jnp.concatenate([bc, bd]))}


def ae_da_pallas(x, params, *, znoise_dim, de_act="sigmoid", cl_act="softmax"):
    B, _ = x.shape
    z_dim = params["enc"]["final"][0].shape[0]
    out_x_dim = params["dec"]["final"][0].shape[0]
    n_class = params["cl"]["final"][0].shape[0]
    n_domain = params["di"]["final"][0].shape[0]

    cl_in = (params["cl"]["hidden"][0][0].shape[1] if params["cl"]["hidden"]
             else params["cl"]["final"][0].shape[1])
    di_in = (params["di"]["hidden"][0][0].shape[1] if params["di"]["hidden"]
             else params["di"]["final"][0].shape[1])
    assert cl_in == znoise_dim and di_in == z_dim - znoise_dim, "head dims mismatch z split"
    # Lane-alignment of the split only matters for the unfused fallback path.
    fused = len(params["cl"]["hidden"]) == len(params["di"]["hidden"])

    if fused:
        chains = [params["enc"], params["dec"], _fuse_heads(params["cl"], params["di"])]
    else:
        chains = [params["enc"], params["dec"], params["cl"], params["di"]]

    flat, chain_hidden = [], []
    for sub in chains:
        chain_hidden.append(len(sub["hidden"]))
        flat += _flat_params(sub)

    kernel = make_ae_da_kernel(tuple(chain_hidden), fused, znoise_dim, n_class,
                               de_act, cl_act)

    def full_spec(a):
        return pl.BlockSpec(a.shape, lambda i, _nd=a.ndim: (0,) * _nd)

    in_specs = [full_spec(x)] + [full_spec(a) for a in flat]
    out_shapes = (
        jax.ShapeDtypeStruct((B, z_dim), jnp.float32),
        jax.ShapeDtypeStruct((B, out_x_dim), jnp.float32),
        jax.ShapeDtypeStruct((B, n_class), jnp.float32),
        jax.ShapeDtypeStruct((B, n_domain), jnp.float32),
    )
    out_specs = tuple(pl.BlockSpec(s.shape, lambda i: (0, 0)) for s in out_shapes)

    return pl.pallas_call(
        kernel,
        out_shape=out_shapes,
        grid_spec=pltpu.PrefetchScalarGridSpec(
            num_scalar_prefetch=0,
            grid=(1,),
            in_specs=in_specs,
            out_specs=out_specs,
        ),
        compiler_params=pltpu.CompilerParams(
            dimension_semantics=("arbitrary",),
            vmem_limit_bytes=32 * 1024 * 1024,
        ),
    )(x, *flat)


def ae_da_forward(x, params, *, znoise_dim, lamda=1.0, de_act="sigmoid", cl_act="softmax"):
    """Mirrors AE_DA.forward(x, lamda, de_act, cl_act) -> (final_z, ae_out, clas_out, disc_out)."""
    del lamda  # gradient-reversal strength: only affects backward, forward is identity
    z, x_bar, clas_out, disc_out = ae_da_pallas(
        x, params, znoise_dim=znoise_dim, de_act=de_act, cl_act=cl_act)
    return [z], [x_bar, x], clas_out, disc_out


# ------------------------------ pure-JAX reference -----------------------------

def _mlp_ref(a, sub):
    for (W, b, g, bt) in sub["hidden"]:
        h = a @ W.T + b
        mu = jnp.mean(h, axis=0, keepdims=True)
        var = jnp.mean(jnp.square(h - mu), axis=0, keepdims=True)   # biased batch var
        a = jnp.maximum((h - mu) * jax.lax.rsqrt(var + 1e-5) * g + bt, 0.0)
    W, b = sub["final"]
    return a @ W.T + b


def _act_ref(v, kind):
    if kind == "sigmoid":
        return jax.nn.sigmoid(v)
    if kind == "softmax":
        return jax.nn.softmax(v, axis=-1)
    return v


def reference_forward(x, params, *, znoise_dim, de_act="sigmoid", cl_act="softmax"):
    z = _mlp_ref(x, params["enc"])
    x_bar = _act_ref(_mlp_ref(z, params["dec"]), de_act)
    clas = _act_ref(_mlp_ref(z[:, :znoise_dim], params["cl"]), cl_act)
    disc = _act_ref(_mlp_ref(z[:, znoise_dim:], params["di"]), cl_act)
    return z, x_bar, clas, disc


# ------------------------------ parameter init ---------------------------------

def xavier_normal(key, out_dim, in_dim):
    std = (2.0 / (in_dim + out_dim)) ** 0.5
    return std * jax.random.normal(key, (out_dim, in_dim), jnp.float32)


def init_mlp(key, in_dim, hidden_dims, out_dim):
    """PyTorch init: xavier_normal_ Linear weights, zero biases, BN weight=1 bias=0."""
    hidden = []
    d = in_dim
    for h in hidden_dims:
        key, k = jax.random.split(key)
        hidden.append((xavier_normal(k, h, d),
                       jnp.zeros((h,), jnp.float32),
                       jnp.ones((h,), jnp.float32),
                       jnp.zeros((h,), jnp.float32)))
        d = h
    key, k = jax.random.split(key)
    final = (xavier_normal(k, out_dim, d), jnp.zeros((out_dim,), jnp.float32))
    return {"hidden": hidden, "final": final}


# ------------------------------ main --------------------------------------------

if __name__ == "__main__":
    # Lane-dense sizes (multiples of 128); batch kept small.
    B = 256           # batch
    X_DIM = 256       # input features
    AE_HID = (256,)   # encoder / decoder hidden widths
    Z_DIM = 256       # latent dim
    ZNOISE = 128      # znoise_dim (lane-aligned split of z)
    CL_HID = (128,)   # classifier hidden widths
    N_CLASS = 8
    DI_HID = (128,)   # discriminator hidden widths
    N_DOMAIN = 2

    key = jax.random.PRNGKey(0)
    kx, ke, kd, kc, ki = jax.random.split(key, 5)

    x = jax.random.normal(kx, (B, X_DIM), jnp.float32)
    params = {
        "enc": init_mlp(ke, X_DIM, AE_HID, Z_DIM),             # AEdims  = [256, [256], 256]
        "dec": init_mlp(kd, Z_DIM, AE_HID, X_DIM),             # AEdimsR = [256, [256], 256]
        "cl":  init_mlp(kc, ZNOISE, CL_HID, N_CLASS),          # CLdims  = [128, [128], 8]
        "di":  init_mlp(ki, Z_DIM - ZNOISE, DI_HID, N_DOMAIN)  # DIdims  = [128, [128], 2]
    }

    final_z, ae_out, clas_out, disc_out = ae_da_forward(
        x, params, znoise_dim=ZNOISE, lamda=1.0, de_act="sigmoid", cl_act="softmax")
    z, x_bar = final_z[0], ae_out[0]
    jax.block_until_ready((z, x_bar, clas_out, disc_out))

    z_r, xbar_r, clas_r, disc_r = reference_forward(x, params, znoise_dim=ZNOISE)
    jax.block_until_ready((z_r, xbar_r, clas_r, disc_r))

    # Tolerance 2e-2: kernel matmuls run with bf16 inputs / f32 accumulation, and the
    # sigmoid/softmax reciprocals use the hardware approx path; reference is full f32.
    checks = {"z": (z, z_r), "x_bar": (x_bar, xbar_r),
              "clas_out": (clas_out, clas_r), "disc_out": (disc_out, disc_r)}
    for name, (a, b) in checks.items():
        a, b = np.asarray(a), np.asarray(b)
        assert a.shape == b.shape, (name, a.shape, b.shape)
        assert np.allclose(a, b, atol=2e-2, rtol=2e-2), \
            (name, float(np.max(np.abs(a - b))))

    print("KERNEL_OK")
</pallas_src>

<mosaic_0001>
module attributes {stable_mosaic.version = 11 : i64} {
  func.func @kernel(%arg0: i32, %arg1: memref<256x256xf32, #tpu.memory_space<vmem>>, %arg2: memref<256x256xbf16, #tpu.memory_space<vmem>>, %arg3: memref<2x256xf32, #tpu.memory_space<vmem>>, %arg4: memref<256x256xbf16, #tpu.memory_space<vmem>>, %arg5: memref<1x256xf32, #tpu.memory_space<vmem>>, %arg6: memref<256x256xbf16, #tpu.memory_space<vmem>>, %arg7: memref<2x256xf32, #tpu.memory_space<vmem>>, %arg8: memref<256x256xbf16, #tpu.memory_space<vmem>>, %arg9: memref<1x256xf32, #tpu.memory_space<vmem>>, %arg10: memref<256x256xbf16, #tpu.memory_space<vmem>>, %arg11: memref<2x256xf32, #tpu.memory_space<vmem>>, %arg12: memref<256x10xbf16, #tpu.memory_space<vmem>>, %arg13: memref<1x10xf32, #tpu.memory_space<vmem>>, %arg14: memref<256x256xf32, #tpu.memory_space<vmem>>, %arg15: memref<256x256xf32, #tpu.memory_space<vmem>>, %arg16: memref<256x8xf32, #tpu.memory_space<vmem>>, %arg17: memref<256x2xf32, #tpu.memory_space<vmem>>) attributes {dimension_semantics = [#tpu.dimension_semantics<arbitrary>], iteration_bounds = array<i64: 1>, scalar_prefetch = 0 : i64, scratch_operands = 0 : i64, tpu.core_type = #tpu.core_type<tc>, window_params = [{pipeline_mode = #tpu.pipeline_mode<synchronous>, transform_indices = @transform_0, window_bounds = array<i64: 256, 256>}, {pipeline_mode = #tpu.pipeline_mode<synchronous>, transform_indices = @transform_1, window_bounds = array<i64: 256, 256>}, {pipeline_mode = #tpu.pipeline_mode<synchronous>, transform_indices = @transform_2, window_bounds = array<i64: 2, 256>}, {pipeline_mode = #tpu.pipeline_mode<synchronous>, transform_indices = @transform_3, window_bounds = array<i64: 256, 256>}, {pipeline_mode = #tpu.pipeline_mode<synchronous>, transform_indices = @transform_4, window_bounds = array<i64: 1, 256>}, {pipeline_mode = #tpu.pipeline_mode<synchronous>, transform_indices = @transform_5, window_bounds = array<i64: 256, 256>}, {pipeline_mode = #tpu.pipeline_mode<synchronous>, transform_indices = @transform_6, window_bounds = array<i64: 2, 256>}, {pipeline_mode = #tpu.pipeline_mode<synchronous>, transform_indices = @transform_7, window_bounds = array<i64: 256, 256>}, {pipeline_mode = #tpu.pipeline_mode<synchronous>, transform_indices = @transform_8, window_bounds = array<i64: 1, 256>}, {pipeline_mode = #tpu.pipeline_mode<synchronous>, transform_indices = @transform_9, window_bounds = array<i64: 256, 256>}, {pipeline_mode = #tpu.pipeline_mode<synchronous>, transform_indices = @transform_10, window_bounds = array<i64: 2, 256>}, {pipeline_mode = #tpu.pipeline_mode<synchronous>, transform_indices = @transform_11, window_bounds = array<i64: 256, 10>}, {pipeline_mode = #tpu.pipeline_mode<synchronous>, transform_indices = @transform_12, window_bounds = array<i64: 1, 10>}, {pipeline_mode = #tpu.pipeline_mode<synchronous>, transform_indices = @transform_13, window_bounds = array<i64: 256, 256>}, {pipeline_mode = #tpu.pipeline_mode<synchronous>, transform_indices = @transform_14, window_bounds = array<i64: 256, 256>}, {pipeline_mode = #tpu.pipeline_mode<synchronous>, transform_indices = @transform_15, window_bounds = array<i64: 256, 8>}, {pipeline_mode = #tpu.pipeline_mode<synchronous>, transform_indices = @transform_16, window_bounds = array<i64: 256, 2>}]} {
    %c0 = arith.constant 0 : index
    %c0_0 = arith.constant 0 : index
    %0 = vector.load %arg1[%c0, %c0_0] : memref<256x256xf32, #tpu.memory_space<vmem>>, vector<256x256xf32>
    %1 = arith.truncf %0 : vector<256x256xf32> to vector<256x256xbf16>
    %c0_1 = arith.constant 0 : index
    %c0_2 = arith.constant 0 : index
    %2 = vector.load %arg2[%c0_1, %c0_2] : memref<256x256xbf16, #tpu.memory_space<vmem>>, vector<256x256xbf16>
    %cst = arith.constant dense<0.000000e+00> : vector<256x256xf32>
    %3 = tpu.matmul %1, %2, %cst {dimension_numbers = #tpu.dot_dimension_numbers<[1], [0], [0], [1], [0, 0, 1, 1], [], []>} : vector<256x256xbf16>, vector<256x256xbf16>, vector<256x256xf32> -> vector<256x256xf32>
    %c0_3 = arith.constant 0 : index
    %c0_4 = arith.constant 0 : index
    %4 = vector.load %arg3[%c0_3, %c0_4] : memref<2x256xf32, #tpu.memory_space<vmem>>, vector<2x256xf32>
    %cst_5 = arith.constant dense<0.000000e+00> : vector<256xf32>
    %5 = vector.multi_reduction <add>, %3, %cst_5 [0] : vector<256x256xf32> to vector<256xf32>
    %6 = vector.shape_cast %5 : vector<256xf32> to vector<1x256xf32>
    %cst_6 = arith.constant 3.906250e-03 : f32
    %7 = vector.broadcast %cst_6 : f32 to vector<1x256xf32>
    %8 = arith.mulf %6, %7 : vector<1x256xf32>
    %9 = arith.mulf %3, %3 : vector<256x256xf32>
    %cst_7 = arith.constant dense<0.000000e+00> : vector<256xf32>
    %10 = vector.multi_reduction <add>, %9, %cst_7 [0] : vector<256x256xf32> to vector<256xf32>
    %11 = vector.shape_cast %10 : vector<256xf32> to vector<1x256xf32>
    %cst_8 = arith.constant 3.906250e-03 : f32
    %12 = vector.broadcast %cst_8 : f32 to vector<1x256xf32>
    %13 = arith.mulf %11, %12 : vector<1x256xf32>
    %14 = arith.mulf %8, %8 : vector<1x256xf32>
    %15 = arith.subf %13, %14 : vector<1x256xf32>
    %16 = vector.extract_strided_slice %4 {offsets = [0, 0], sizes = [1, 256], strides = [1, 1]} : vector<2x256xf32> to vector<1x256xf32>
    %cst_9 = arith.constant 9.99999974E-6 : f32
    %17 = vector.broadcast %cst_9 : f32 to vector<1x256xf32>
    %18 = arith.addf %15, %17 : vector<1x256xf32>
    %19 = math.rsqrt %18 : vector<1x256xf32>
    %20 = arith.mulf %16, %19 : vector<1x256xf32>
    %21 = vector.extract_strided_slice %4 {offsets = [1, 0], sizes = [1, 256], strides = [1, 1]} : vector<2x256xf32> to vector<1x256xf32>
    %22 = arith.mulf %8, %20 : vector<1x256xf32>
    %23 = arith.subf %21, %22 : vector<1x256xf32>
    %24 = vector.broadcast %20 : vector<1x256xf32> to vector<256x256xf32>
    %25 = arith.mulf %3, %24 : vector<256x256xf32>
    %26 = vector.broadcast %23 : vector<1x256xf32> to vector<256x256xf32>
    %27 = arith.addf %25, %26 : vector<256x256xf32>
    %cst_10 = arith.constant 0.000000e+00 : f32
    %28 = vector.broadcast %cst_10 : f32 to vector<256x256xf32>
    %29 = arith.maximumf %27, %28 : vector<256x256xf32>
    %30 = arith.truncf %29 : vector<256x256xf32> to vector<256x256xbf16>
    %c0_11 = arith.constant 0 : index
    %c0_12 = arith.constant 0 : index
    %31 = vector.load %arg4[%c0_11, %c0_12] : memref<256x256xbf16, #tpu.memory_space<vmem>>, vector<256x256xbf16>
    %cst_13 = arith.constant dense<0.000000e+00> : vector<256x256xf32>
    %32 = tpu.matmul %30, %31, %cst_13 {dimension_numbers = #tpu.dot_dimension_numbers<[1], [0], [0], [1], [0, 0, 1, 1], [], []>} : vector<256x256xbf16>, vector<256x256xbf16>, vector<256x256xf32> -> vector<256x256xf32>
    %c0_14 = arith.constant 0 : index
    %c0_15 = arith.constant 0 : index
    %33 = vector.load %arg5[%c0_14, %c0_15] : memref<1x256xf32, #tpu.memory_space<vmem>>, vector<1x256xf32>
    %34 = vector.broadcast %33 : vector<1x256xf32> to vector<256x256xf32>
    %35 = arith.addf %32, %34 : vector<256x256xf32>
    %36 = arith.truncf %35 : vector<256x256xf32> to vector<256x256xbf16>
    %c0_16 = arith.constant 0 : index
    %c0_17 = arith.constant 0 : index
    %37 = vector.load %arg6[%c0_16, %c0_17] : memref<256x256xbf16, #tpu.memory_space<vmem>>, vector<256x256xbf16>
    %cst_18 = arith.constant dense<0.000000e+00> : vector<256x256xf32>
    %38 = tpu.matmul %36, %37, %cst_18 {dimension_numbers = #tpu.dot_dimension_numbers<[1], [0], [0], [1], [0, 0, 1, 1], [], []>} : vector<256x256xbf16>, vector<256x256xbf16>, vector<256x256xf32> -> vector<256x256xf32>
    %c0_19 = arith.constant 0 : index
    %c0_20 = arith.constant 0 : index
    %39 = vector.load %arg7[%c0_19, %c0_20] : memref<2x256xf32, #tpu.memory_space<vmem>>, vector<2x256xf32>
    %cst_21 = arith.constant dense<0.000000e+00> : vector<256xf32>
    %40 = vector.multi_reduction <add>, %38, %cst_21 [0] : vector<256x256xf32> to vector<256xf32>
    %41 = vector.shape_cast %40 : vector<256xf32> to vector<1x256xf32>
    %cst_22 = arith.constant 3.906250e-03 : f32
    %42 = vector.broadcast %cst_22 : f32 to vector<1x256xf32>
    %43 = arith.mulf %41, %42 : vector<1x256xf32>
    %44 = arith.mulf %38, %38 : vector<256x256xf32>
    %cst_23 = arith.constant dense<0.000000e+00> : vector<256xf32>
    %45 = vector.multi_reduction <add>, %44, %cst_23 [0] : vector<256x256xf32> to vector<256xf32>
    %46 = vector.shape_cast %45 : vector<256xf32> to vector<1x256xf32>
    %cst_24 = arith.constant 3.906250e-03 : f32
    %47 = vector.broadcast %cst_24 : f32 to vector<1x256xf32>
    %48 = arith.mulf %46, %47 : vector<1x256xf32>
    %49 = arith.mulf %43, %43 : vector<1x256xf32>
    %50 = arith.subf %48, %49 : vector<1x256xf32>
    %51 = vector.extract_strided_slice %39 {offsets = [0, 0], sizes = [1, 256], strides = [1, 1]} : vector<2x256xf32> to vector<1x256xf32>
    %cst_25 = arith.constant 9.99999974E-6 : f32
    %52 = vector.broadcast %cst_25 : f32 to vector<1x256xf32>
    %53 = arith.addf %50, %52 : vector<1x256xf32>
    %54 = math.rsqrt %53 : vector<1x256xf32>
    %55 = arith.mulf %51, %54 : vector<1x256xf32>
    %56 = vector.extract_strided_slice %39 {offsets = [1, 0], sizes = [1, 256], strides = [1, 1]} : vector<2x256xf32> to vector<1x256xf32>
    %57 = arith.mulf %43, %55 : vector<1x256xf32>
    %58 = arith.subf %56, %57 : vector<1x256xf32>
    %59 = vector.broadcast %55 : vector<1x256xf32> to vector<256x256xf32>
    %60 = arith.mulf %38, %59 : vector<256x256xf32>
    %61 = vector.broadcast %58 : vector<1x256xf32> to vector<256x256xf32>
    %62 = arith.addf %60, %61 : vector<256x256xf32>
    %cst_26 = arith.constant 0.000000e+00 : f32
    %63 = vector.broadcast %cst_26 : f32 to vector<256x256xf32>
    %64 = arith.maximumf %62, %63 : vector<256x256xf32>
    %65 = arith.truncf %64 : vector<256x256xf32> to vector<256x256xbf16>
    %c0_27 = arith.constant 0 : index
    %c0_28 = arith.constant 0 : index
    %66 = vector.load %arg8[%c0_27, %c0_28] : memref<256x256xbf16, #tpu.memory_space<vmem>>, vector<256x256xbf16>
    %cst_29 = arith.constant dense<0.000000e+00> : vector<256x256xf32>
    %67 = tpu.matmul %65, %66, %cst_29 {dimension_numbers = #tpu.dot_dimension_numbers<[1], [0], [0], [1], [0, 0, 1, 1], [], []>} : vector<256x256xbf16>, vector<256x256xbf16>, vector<256x256xf32> -> vector<256x256xf32>
    %c0_30 = arith.constant 0 : index
    %c0_31 = arith.constant 0 : index
    %68 = vector.load %arg9[%c0_30, %c0_31] : memref<1x256xf32, #tpu.memory_space<vmem>>, vector<1x256xf32>
    %69 = vector.broadcast %68 : vector<1x256xf32> to vector<256x256xf32>
    %70 = arith.addf %67, %69 : vector<256x256xf32>
    %cst_32 = arith.constant 0.000000e+00 : f32
    %71 = vector.broadcast %cst_32 : f32 to vector<256x256xf32>
    %72 = arith.subf %71, %70 : vector<256x256xf32>
    %73 = math.exp %72 : vector<256x256xf32>
    %cst_33 = arith.constant 1.000000e+00 : f32
    %74 = vector.broadcast %cst_33 : f32 to vector<256x256xf32>
    %75 = arith.addf %74, %73 : vector<256x256xf32>
    %76 = tpu.reciprocal %75 {approx = true} : vector<256x256xf32> -> vector<256x256xf32>
    %77 = arith.truncf %35 : vector<256x256xf32> to vector<256x256xbf16>
    %c0_34 = arith.constant 0 : index
    %c0_35 = arith.constant 0 : index
    %78 = vector.load %arg10[%c0_34, %c0_35] : memref<256x256xbf16, #tpu.memory_space<vmem>>, vector<256x256xbf16>
    %cst_36 = arith.constant dense<0.000000e+00> : vector<256x256xf32>
    %79 = tpu.matmul %77, %78, %cst_36 {dimension_numbers = #tpu.dot_dimension_numbers<[1], [0], [0], [1], [0, 0, 1, 1], [], []>} : vector<256x256xbf16>, vector<256x256xbf16>, vector<256x256xf32> -> vector<256x256xf32>
    %c0_37 = arith.constant 0 : index
    %c0_38 = arith.constant 0 : index
    %80 = vector.load %arg11[%c0_37, %c0_38] : memref<2x256xf32, #tpu.memory_space<vmem>>, vector<2x256xf32>
    %cst_39 = arith.constant dense<0.000000e+00> : vector<256xf32>
    %81 = vector.multi_reduction <add>, %79, %cst_39 [0] : vector<256x256xf32> to vector<256xf32>
    %82 = vector.shape_cast %81 : vector<256xf32> to vector<1x256xf32>
    %cst_40 = arith.constant 3.906250e-03 : f32
    %83 = vector.broadcast %cst_40 : f32 to vector<1x256xf32>
    %84 = arith.mulf %82, %83 : vector<1x256xf32>
    %85 = arith.mulf %79, %79 : vector<256x256xf32>
    %cst_41 = arith.constant dense<0.000000e+00> : vector<256xf32>
    %86 = vector.multi_reduction <add>, %85, %cst_41 [0] : vector<256x256xf32> to vector<256xf32>
    %87 = vector.shape_cast %86 : vector<256xf32> to vector<1x256xf32>
    %cst_42 = arith.constant 3.906250e-03 : f32
    %88 = vector.broadcast %cst_42 : f32 to vector<1x256xf32>
    %89 = arith.mulf %87, %88 : vector<1x256xf32>
    %90 = arith.mulf %84, %84 : vector<1x256xf32>
    %91 = arith.subf %89, %90 : vector<1x256xf32>
    %92 = vector.extract_strided_slice %80 {offsets = [0, 0], sizes = [1, 256], strides = [1, 1]} : vector<2x256xf32> to vector<1x256xf32>
    %cst_43 = arith.constant 9.99999974E-6 : f32
    %93 = vector.broadcast %cst_43 : f32 to vector<1x256xf32>
    %94 = arith.addf %91, %93 : vector<1x256xf32>
    %95 = math.rsqrt %94 : vector<1x256xf32>
    %96 = arith.mulf %92, %95 : vector<1x256xf32>
    %97 = vector.extract_strided_slice %80 {offsets = [1, 0], sizes = [1, 256], strides = [1, 1]} : vector<2x256xf32> to vector<1x256xf32>
    %98 = arith.mulf %84, %96 : vector<1x256xf32>
    %99 = arith.subf %97, %98 : vector<1x256xf32>
    %100 = vector.broadcast %96 : vector<1x256xf32> to vector<256x256xf32>
    %101 = arith.mulf %79, %100 : vector<256x256xf32>
    %102 = vector.broadcast %99 : vector<1x256xf32> to vector<256x256xf32>
    %103 = arith.addf %101, %102 : vector<256x256xf32>
    %cst_44 = arith.constant 0.000000e+00 : f32
    %104 = vector.broadcast %cst_44 : f32 to vector<256x256xf32>
    %105 = arith.maximumf %103, %104 : vector<256x256xf32>
    %106 = arith.truncf %105 : vector<256x256xf32> to vector<256x256xbf16>
    %c0_45 = arith.constant 0 : index
    %c0_46 = arith.constant 0 : index
    %107 = vector.load %arg12[%c0_45, %c0_46] : memref<256x10xbf16, #tpu.memory_space<vmem>>, vector<256x10xbf16>
    %cst_47 = arith.constant dense<0.000000e+00> : vector<256x10xf32>
    %108 = tpu.matmul %106, %107, %cst_47 {dimension_numbers = #tpu.dot_dimension_numbers<[1], [0], [0], [1], [0, 0, 1, 1], [], []>} : vector<256x256xbf16>, vector<256x10xbf16>, vector<256x10xf32> -> vector<256x10xf32>
    %c0_48 = arith.constant 0 : index
    %c0_49 = arith.constant 0 : index
    %109 = vector.load %arg13[%c0_48, %c0_49] : memref<1x10xf32, #tpu.memory_space<vmem>>, vector<1x10xf32>
    %110 = vector.broadcast %109 : vector<1x10xf32> to vector<256x10xf32>
    %111 = arith.addf %108, %110 : vector<256x10xf32>
    %112 = vector.extract_strided_slice %111 {offsets = [0, 0], sizes = [256, 8], strides = [1, 1]} : vector<256x10xf32> to vector<256x8xf32>
    %cst_50 = arith.constant dense<0xFF800000> : vector<256xf32>
    %113 = vector.multi_reduction <maximumf>, %112, %cst_50 [1] : vector<256x8xf32> to vector<256xf32>
    %114 = vector.shape_cast %113 : vector<256xf32> to vector<256x1xf32>
    %115 = vector.broadcast %114 : vector<256x1xf32> to vector<256x8xf32>
    %116 = arith.subf %112, %115 : vector<256x8xf32>
    %117 = math.exp %116 : vector<256x8xf32>
    %cst_51 = arith.constant dense<0.000000e+00> : vector<256xf32>
    %118 = vector.multi_reduction <add>, %117, %cst_51 [1] : vector<256x8xf32> to vector<256xf32>
    %119 = vector.shape_cast %118 : vector<256xf32> to vector<256x1xf32>
    %120 = tpu.reciprocal %119 {approx = true} : vector<256x1xf32> -> vector<256x1xf32>
    %121 = vector.broadcast %120 : vector<256x1xf32> to vector<256x8xf32>
    %122 = arith.mulf %117, %121 : vector<256x8xf32>
    %123 = vector.extract_strided_slice %111 {offsets = [0, 8], sizes = [256, 2], strides = [1, 1]} : vector<256x10xf32> to vector<256x2xf32>
    %cst_52 = arith.constant dense<0xFF800000> : vector<256xf32>
    %124 = vector.multi_reduction <maximumf>, %123, %cst_52 [1] : vector<256x2xf32> to vector<256xf32>
    %125 = vector.shape_cast %124 : vector<256xf32> to vector<256x1xf32>
    %126 = vector.broadcast %125 : vector<256x1xf32> to vector<256x2xf32>
    %127 = arith.subf %123, %126 : vector<256x2xf32>
    %128 = math.exp %127 : vector<256x2xf32>
    %cst_53 = arith.constant dense<0.000000e+00> : vector<256xf32>
    %129 = vector.multi_reduction <add>, %128, %cst_53 [1] : vector<256x2xf32> to vector<256xf32>
    %130 = vector.shape_cast %129 : vector<256xf32> to vector<256x1xf32>
    %131 = tpu.reciprocal %130 {approx = true} : vector<256x1xf32> -> vector<256x1xf32>
    %132 = vector.broadcast %131 : vector<256x1xf32> to vector<256x2xf32>
    %133 = arith.mulf %128, %132 : vector<256x2xf32>
    %c0_54 = arith.constant 0 : index
    %c0_55 = arith.constant 0 : index
    %134 = vector.load %arg14[%c0_54, %c0_55] : memref<256x256xf32, #tpu.memory_space<vmem>>, vector<256x256xf32>
    tpu.vector_store %arg14[%c0_54, %c0_55], %35 {strides = array<i32>} : memref<256x256xf32, #tpu.memory_space<vmem>>, vector<256x256xf32>,
    %c0_56 = arith.constant 0 : index
    %c0_57 = arith.constant 0 : index
    %135 = vector.load %arg15[%c0_56, %c0_57] : memref<256x256xf32, #tpu.memory_space<vmem>>, vector<256x256xf32>
    tpu.vector_store %arg15[%c0_56, %c0_57], %76 {strides = array<i32>} : memref<256x256xf32, #tpu.memory_space<vmem>>, vector<256x256xf32>,
    %c0_58 = arith.constant 0 : index
    %c0_59 = arith.constant 0 : index
    %136 = vector.load %arg16[%c0_58, %c0_59] : memref<256x8xf32, #tpu.memory_space<vmem>>, vector<256x8xf32>
    tpu.vector_store %arg16[%c0_58, %c0_59], %122 {strides = array<i32>} : memref<256x8xf32, #tpu.memory_space<vmem>>, vector<256x8xf32>,
    %c0_60 = arith.constant 0 : index
    %c0_61 = arith.constant 0 : index
    %137 = vector.load %arg17[%c0_60, %c0_61] : memref<256x2xf32, #tpu.memory_space<vmem>>, vector<256x2xf32>
    tpu.vector_store %arg17[%c0_60, %c0_61], %133 {strides = array<i32>} : memref<256x2xf32, #tpu.memory_space<vmem>>, vector<256x2xf32>,
    return
  }
  func.func @transform_0(%arg0: i32) -> (i32, i32) {
    %c0_i32 = arith.constant 0 : i32
    %c0_i32_0 = arith.constant 0 : i32
    %c0_i32_1 = arith.constant 0 : i32
    return %c0_i32, %c0_i32_0 : i32, i32
  }
  func.func @transform_1(%arg0: i32) -> (i32, i32) {
    %c0_i32 = arith.constant 0 : i32
    %c0_i32_0 = arith.constant 0 : i32
    %c0_i32_1 = arith.constant 0 : i32
    return %c0_i32, %c0_i32_0 : i32, i32
  }
  func.func @transform_2(%arg0: i32) -> (i32, i32) {
    %c0_i32 = arith.constant 0 : i32
    %c0_i32_0 = arith.constant 0 : i32
    %c0_i32_1 = arith.constant 0 : i32
    return %c0_i32, %c0_i32_0 : i32, i32
  }
  func.func @transform_3(%arg0: i32) -> (i32, i32) {
    %c0_i32 = arith.constant 0 : i32
    %c0_i32_0 = arith.constant 0 : i32
    %c0_i32_1 = arith.constant 0 : i32
    return %c0_i32, %c0_i32_0 : i32, i32
  }
  func.func @transform_4(%arg0: i32) -> (i32, i32) {
    %c0_i32 = arith.constant 0 : i32
    %c0_i32_0 = arith.constant 0 : i32
    %c0_i32_1 = arith.constant 0 : i32
    return %c0_i32, %c0_i32_0 : i32, i32
  }
  func.func @transform_5(%arg0: i32) -> (i32, i32) {
    %c0_i32 = arith.constant 0 : i32
    %c0_i32_0 = arith.constant 0 : i32
    %c0_i32_1 = arith.constant 0 : i32
    return %c0_i32, %c0_i32_0 : i32, i32
  }
  func.func @transform_6(%arg0: i32) -> (i32, i32) {
    %c0_i32 = arith.constant 0 : i32
    %c0_i32_0 = arith.constant 0 : i32
    %c0_i32_1 = arith.constant 0 : i32
    return %c0_i32, %c0_i32_0 : i32, i32
  }
  func.func @transform_7(%arg0: i32) -> (i32, i32) {
    %c0_i32 = arith.constant 0 : i32
    %c0_i32_0 = arith.constant 0 : i32
    %c0_i32_1 = arith.constant 0 : i32
    return %c0_i32, %c0_i32_0 : i32, i32
  }
  func.func @transform_8(%arg0: i32) -> (i32, i32) {
    %c0_i32 = arith.constant 0 : i32
    %c0_i32_0 = arith.constant 0 : i32
    %c0_i32_1 = arith.constant 0 : i32
    return %c0_i32, %c0_i32_0 : i32, i32
  }
  func.func @transform_9(%arg0: i32) -> (i32, i32) {
    %c0_i32 = arith.constant 0 : i32
    %c0_i32_0 = arith.constant 0 : i32
    %c0_i32_1 = arith.constant 0 : i32
    return %c0_i32, %c0_i32_0 : i32, i32
  }
  func.func @transform_10(%arg0: i32) -> (i32, i32) {
    %c0_i32 = arith.constant 0 : i32
    %c0_i32_0 = arith.constant 0 : i32
    %c0_i32_1 = arith.constant 0 : i32
    return %c0_i32, %c0_i32_0 : i32, i32
  }
  func.func @transform_11(%arg0: i32) -> (i32, i32) {
    %c0_i32 = arith.constant 0 : i32
    %c0_i32_0 = arith.constant 0 : i32
    %c0_i32_1 = arith.constant 0 : i32
    return %c0_i32, %c0_i32_0 : i32, i32
  }
  func.func @transform_12(%arg0: i32) -> (i32, i32) {
    %c0_i32 = arith.constant 0 : i32
    %c0_i32_0 = arith.constant 0 : i32
    %c0_i32_1 = arith.constant 0 : i32
    return %c0_i32, %c0_i32_0 : i32, i32
  }
  func.func @transform_13(%arg0: i32) -> (i32, i32) {
    %c0_i32 = arith.constant 0 : i32
    %c0_i32_0 = arith.constant 0 : i32
    %c0_i32_1 = arith.constant 0 : i32
    return %c0_i32, %c0_i32_0 : i32, i32
  }
  func.func @transform_14(%arg0: i32) -> (i32, i32) {
    %c0_i32 = arith.constant 0 : i32
    %c0_i32_0 = arith.constant 0 : i32
    %c0_i32_1 = arith.constant 0 : i32
    return %c0_i32, %c0_i32_0 : i32, i32
  }
  func.func @transform_15(%arg0: i32) -> (i32, i32) {
    %c0_i32 = arith.constant 0 : i32
    %c0_i32_0 = arith.constant 0 : i32
    %c0_i32_1 = arith.constant 0 : i32
    return %c0_i32, %c0_i32_0 : i32, i32
  }
  func.func @transform_16(%arg0: i32) -> (i32, i32) {
    %c0_i32 = arith.constant 0 : i32
    %c0_i32_0 = arith.constant 0 : i32
    %c0_i32_1 = arith.constant 0 : i32
    return %c0_i32, %c0_i32_0 : i32, i32
  }
}

</mosaic_0001>

<llo_original>
// kernel: tpu_custom_call.1
$region0: #{tpu_custom_call.1}
  #allocation0 [shape = 'u32[]', space=smem, size = 0x4, offset = 0x4, fixed_abs, tag = 'smem constant byte address 0x4 - core index']
  #allocation1 [shape = 'u32[144,128]{1,0:T(1,128)}', space=vmem, size = 0x12000, scoped, tag = 'internal scratch']
  %s0 = inlined_call_operand.hbm [shape: f32[256,256], index: 0, kind: input, shape index: {}]
  %s1 = inlined_call_operand.hbm [shape: bf16[256,256], index: 1, kind: input, shape index: {}]
  %s2 = inlined_call_operand.vmem [shape: f32[2,256], index: 2, kind: input, shape index: {}]
  %s3 = inlined_call_operand.hbm [shape: bf16[256,256], index: 3, kind: input, shape index: {}]
  %s4 = inlined_call_operand.vmem [shape: f32[1,256], index: 4, kind: input, shape index: {}]
  %s5 = inlined_call_operand.hbm [shape: bf16[256,256], index: 5, kind: input, shape index: {}]
  %s6 = inlined_call_operand.vmem [shape: f32[2,256], index: 6, kind: input, shape index: {}]
  %s7 = inlined_call_operand.hbm [shape: bf16[256,256], index: 7, kind: input, shape index: {}]
  %s8 = inlined_call_operand.vmem [shape: f32[1,256], index: 8, kind: input, shape index: {}]
  %s9 = inlined_call_operand.hbm [shape: bf16[256,256], index: 9, kind: input, shape index: {}]
  %s10 = inlined_call_operand.vmem [shape: f32[2,256], index: 10, kind: input, shape index: {}]
  %s11 = inlined_call_operand.vmem [shape: bf16[256,10], index: 11, kind: input, shape index: {}]
  %s12 = inlined_call_operand.vmem [shape: f32[1,10], index: 12, kind: input, shape index: {}]
  %s13 = inlined_call_operand.hbm [shape: f32[256,256], index: 13, kind: output, shape index: {0}]
  %s14 = inlined_call_operand.hbm [shape: f32[256,256], index: 14, kind: output, shape index: {1}]
  %s15 = inlined_call_operand.vmem [shape: f32[256,8], index: 15, kind: output, shape index: {2}]
  %s16 = inlined_call_operand.vmem [shape: f32[256,2], index: 16, kind: output, shape index: {3}]
  %17 = xla_tuple %s13, %s14, %s15, %s16
  %s18 = sld [smem:[#allocation0]]
  $region110: #{tpu_custom_call.1} parent=0
    _
  %s20 = ssub.s32 1, %s18
  %s21 = scalar_select 0, %s20, %s18
  $region1: #{tpu_custom_call.1} parent=0
    #allocation2 [shape = 'u8[262144]{0}', space=vmem, size = 0x40000, scoped, tag = 'input window, operand 0, single buffered']
    #allocation3 [shape = 's32[1]{0}', space=sflag, size = 0x4, scoped, tag = 'scoped memory for tpu_custom_call.1']
    #allocation4 [shape = 's32[1]{0}', space=sflag, size = 0x4, scoped, tag = 'scoped memory for tpu_custom_call.1']
    #allocation5 [shape = 'u8[131072]{0}', space=vmem, size = 0x20000, scoped, tag = 'input window, operand 1, single buffered']
    #allocation6 [shape = 's32[1]{0}', space=sflag, size = 0x4, scoped, tag = 'scoped memory for tpu_custom_call.1']
    #allocation7 [shape = 'u8[131072]{0}', space=vmem, size = 0x20000, scoped, tag = 'input window, operand 3, single buffered']
    #allocation8 [shape = 'u8[131072]{0}', space=vmem, size = 0x20000, scoped, tag = 'input window, operand 5, single buffered']
    #allocation9 [shape = 's32[1]{0}', space=sflag, size = 0x4, scoped, tag = 'scoped memory for tpu_custom_call.1']
    #allocation10 [shape = 'u8[131072]{0}', space=vmem, size = 0x20000, scoped, tag = 'input window, operand 7, single buffered']
    #allocation11 [shape = 'u8[131072]{0}', space=vmem, size = 0x20000, scoped, tag = 'input window, operand 9, single buffered']
    #allocation12 [shape = 's32[1]{0}', space=sflag, size = 0x4, scoped, tag = 'scoped memory for tpu_custom_call.1']
    #allocation13 [shape = 'u8[262144]{0}', space=vmem, size = 0x40000, scoped, tag = 'output window, operand 0, single buffered']
    #allocation14 [shape = 'u8[262144]{0}', space=vmem, size = 0x40000, scoped, tag = 'output window, operand 1, single buffered']
    #allocation15 [shape = 's32[1]{0}', space=sflag, size = 0x4, scoped, tag = 'scoped memory for tpu_custom_call.1']
    %22 = vsyncpa [#allocation3], 0
    %23 = vsyncpa [#allocation6], 0
    %24 = vsyncpa [#allocation9], 0
    %25 = vsyncpa [#allocation12], 0
    %26 = vsyncpa [#allocation4], 0
    %27 = vsyncpa [#allocation15], 0
    // Predicated region
    $region2: #{tpu_custom_call.1} parent=1 // pred_check
      _
    $region3: #{tpu_custom_call.1} parent=1 // pred_check_branch
      %29 = sbr.rel (0) target = $region5
    $region4: #{tpu_custom_call.1} parent=1 // pred_region
      %s31 = ssub.s32 8192, 8192
      %32 = vsyncadd [#allocation3], %s31
      %s33 = sshll.u32 [#allocation2], 4
      %s34 = int_to_ptr.vmem [resolvable:$true] %s33
      %39 = dma.hbm_to_vmem [thread:$0]  %s0, 8192, %s34, [#allocation3], 256, 256, 16
    $region5: #{tpu_custom_call.1} parent=1 // pred_fallthru
      _
    // Predicated region
    $region6: #{tpu_custom_call.1} parent=1 // pred_check
      _
    $region7: #{tpu_custom_call.1} parent=1 // pred_check_branch
      %41 = sbr.rel (0) target = $region9
    $region8: #{tpu_custom_call.1} parent=1 // pred_region
      %s43 = ssub.s32 4096, 4096
      %44 = vsyncadd [#allocation6], %s43
      %s45 = sshll.u32 [#allocation5], 4
      %s46 = int_to_ptr.vmem [resolvable:$true] %s45
      %51 = dma.hbm_to_vmem [thread:$0]  %s1, 4096, %s46, [#allocation6], 128, 128, 8
    $region9: #{tpu_custom_call.1} parent=1 // pred_fallthru
      _
    // Predicated region
    $region10: #{tpu_custom_call.1} parent=1 // pred_check
      _
    $region11: #{tpu_custom_call.1} parent=1 // pred_check_branch
      %53 = sbr.rel (0) target = $region13
    $region12: #{tpu_custom_call.1} parent=1 // pred_region
      _
    $region13: #{tpu_custom_call.1} parent=1 // pred_fallthru
      _
    // Predicated region
    $region14: #{tpu_custom_call.1} parent=1 // pred_check
      _
    $region15: #{tpu_custom_call.1} parent=1 // pred_check_branch
      %55 = sbr.rel (0) target = $region17
    $region16: #{tpu_custom_call.1} parent=1 // pred_region
      %s57 = ssub.s32 4096, 4096
      %58 = vsyncadd [#allocation6], %s57
      %s59 = sshll.u32 [#allocation7], 4
      %s60 = int_to_ptr.vmem [resolvable:$true] %s59
      %65 = dma.hbm_to_vmem [thread:$0]  %s3, 4096, %s60, [#allocation6], 128, 128, 8
    $region17: #{tpu_custom_call.1} parent=1 // pred_fallthru
      _
    // Predicated region
    $region18: #{tpu_custom_call.1} parent=1 // pred_check
      _
    $region19: #{tpu_custom_call.1} parent=1 // pred_check_branch
      %67 = sbr.rel (0) target = $region21
    $region20: #{tpu_custom_call.1} parent=1 // pred_region
      _
    $region21: #{tpu_custom_call.1} parent=1 // pred_fallthru
      _
    // Predicated region
    $region22: #{tpu_custom_call.1} parent=1 // pred_check
      _
    $region23: #{tpu_custom_call.1} parent=1 // pred_check_branch
      %69 = sbr.rel (0) target = $region25
    $region24: #{tpu_custom_call.1} parent=1 // pred_region
      %s71 = ssub.s32 4096, 4096
      %72 = vsyncadd [#allocation9], %s71
      %s73 = sshll.u32 [#allocation8], 4
      %s74 = int_to_ptr.vmem [resolvable:$true] %s73
      %79 = dma.hbm_to_vmem [thread:$0]  %s5, 4096, %s74, [#allocation9], 128, 128, 8
    $region25: #{tpu_custom_call.1} parent=1 // pred_fallthru
      _
    // Predicated region
    $region26: #{tpu_custom_call.1} parent=1 // pred_check
      _
    $region27: #{tpu_custom_call.1} parent=1 // pred_check_branch
      %81 = sbr.rel (0) target = $region29
    $region28: #{tpu_custom_call.1} parent=1 // pred_region
      _
    $region29: #{tpu_custom_call.1} parent=1 // pred_fallthru
      _
    // Predicated region
    $region30: #{tpu_custom_call.1} parent=1 // pred_check
      _
    $region31: #{tpu_custom_call.1} parent=1 // pred_check_branch
      %83 = sbr.rel (0) target = $region33
    $region32: #{tpu_custom_call.1} parent=1 // pred_region
      %s85 = ssub.s32 4096, 4096
      %86 = vsyncadd [#allocation9], %s85
      %s87 = sshll.u32 [#allocation10], 4
      %s88 = int_to_ptr.vmem [resolvable:$true] %s87
      %93 = dma.hbm_to_vmem [thread:$0]  %s7, 4096, %s88, [#allocation9], 128, 128, 8
    $region33: #{tpu_custom_call.1} parent=1 // pred_fallthru
      _
    // Predicated region
    $region34: #{tpu_custom_call.1} parent=1 // pred_check
      _
    $region35: #{tpu_custom_call.1} parent=1 // pred_check_branch
      %95 = sbr.rel (0) target = $region37
    $region36: #{tpu_custom_call.1} parent=1 // pred_region
      _
    $region37: #{tpu_custom_call.1} parent=1 // pred_fallthru
      _
    // Predicated region
    $region38: #{tpu_custom_call.1} parent=1 // pred_check
      _
    $region39: #{tpu_custom_call.1} parent=1 // pred_check_branch
      %97 = sbr.rel (0) target = $region41
    $region40: #{tpu_custom_call.1} parent=1 // pred_region
      %s99 = ssub.s32 4096, 4096
      %100 = vsyncadd [#allocation12], %s99
      %s101 = sshll.u32 [#allocation11], 4
      %s102 = int_to_ptr.vmem [resolvable:$true] %s101
      %107 = dma.hbm_to_vmem [thread:$0]  %s9, 4096, %s102, [#allocation12], 128, 128, 8
    $region41: #{tpu_custom_call.1} parent=1 // pred_fallthru
      _
    // Predicated region
    $region42: #{tpu_custom_call.1} parent=1 // pred_check
      _
    $region43: #{tpu_custom_call.1} parent=1 // pred_check_branch
      %109 = sbr.rel (0) target = $region45
    $region44: #{tpu_custom_call.1} parent=1 // pred_region
      _
    $region45: #{tpu_custom_call.1} parent=1 // pred_fallthru
      _
    // Predicated region
    $region46: #{tpu_custom_call.1} parent=1 // pred_check
      _
    $region47: #{tpu_custom_call.1} parent=1 // pred_check_branch
      %111 = sbr.rel (0) target = $region49
    $region48: #{tpu_custom_call.1} parent=1 // pred_region
      _
    $region49: #{tpu_custom_call.1} parent=1 // pred_fallthru
      _
    // Predicated region
    $region50: #{tpu_custom_call.1} parent=1 // pred_check
      _
    $region51: #{tpu_custom_call.1} parent=1 // pred_check_branch
      %113 = sbr.rel (0) target = $region53
    $region52: #{tpu_custom_call.1} parent=1 // pred_region
      _
    $region53: #{tpu_custom_call.1} parent=1 // pred_fallthru
      _
    // Predicated region
    $region54: #{tpu_custom_call.1} parent=1 // pred_check
      _
    $region55: #{tpu_custom_call.1} parent=1 // pred_check_branch
      %115 = sbr.rel (0) target = $region57
    $region56: #{tpu_custom_call.1} parent=1 // pred_region
      %116 = dma.done [#allocation3], 8192
    $region57: #{tpu_custom_call.1} parent=1 // pred_fallthru
      _
    // Predicated region
    $region58: #{tpu_custom_call.1} parent=1 // pred_check
      _
    $region59: #{tpu_custom_call.1} parent=1 // pred_check_branch
      %118 = sbr.rel (0) target = $region61
    $region60: #{tpu_custom_call.1} parent=1 // pred_region
      %119 = dma.done [#allocation6], 4096
    $region61: #{tpu_custom_call.1} parent=1 // pred_fallthru
      _
    // Predicated region
    $region62: #{tpu_custom_call.1} parent=1 // pred_check
      _
    $region63: #{tpu_custom_call.1} parent=1 // pred_check_branch
      %121 = sbr.rel (0) target = $region65
    $region64: #{tpu_custom_call.1} parent=1 // pred_region
      %122 = dma.done [#allocation6], 4096
    $region65: #{tpu_custom_call.1} parent=1 // pred_fallthru
      _
    // Predicated region
    $region66: #{tpu_custom_call.1} parent=1 // pred_check
      _
    $region67: #{tpu_custom_call.1} parent=1 // pred_check_branch
      %124 = sbr.rel (0) target = $region69
    $region68: #{tpu_custom_call.1} parent=1 // pred_region
      %125 = dma.done [#allocation9], 4096
    $region69: #{tpu_custom_call.1} parent=1 // pred_fallthru
      _
    // Predicated region
    $region70: #{tpu_custom_call.1} parent=1 // pred_check
      _
    $region71: #{tpu_custom_call.1} parent=1 // pred_check_branch
      %127 = sbr.rel (0) target = $region73
    $region72: #{tpu_custom_call.1} parent=1 // pred_region
      %128 = dma.done [#allocation9], 4096
    $region73: #{tpu_custom_call.1} parent=1 // pred_fallthru
      _
    // Predicated region
    $region74: #{tpu_custom_call.1} parent=1 // pred_check
      _
    $region75: #{tpu_custom_call.1} parent=1 // pred_check_branch
      %130 = sbr.rel (0) target = $region77
    $region76: #{tpu_custom_call.1} parent=1 // pred_region
      %131 = dma.done [#allocation12], 4096
    $region77: #{tpu_custom_call.1} parent=1 // pred_fallthru
      _
    %v133 = vld [vmem:[#allocation2] sm:$0xff]
    %v134 = vld [vmem:[#allocation2 + $0x8] sm:$0xff]
    %v135 = vld [vmem:[#allocation2 + $0x10] sm:$0xff]
    %v136 = vld [vmem:[#allocation2 + $0x18] sm:$0xff]
    %v137 = vld [vmem:[#allocation2 + $0x20] sm:$0xff]
    %v138 = vld [vmem:[#allocation2 + $0x28] sm:$0xff]
    %v139 = vld [vmem:[#allocation2 + $0x30] sm:$0xff]
    %v140 = vld [vmem:[#allocation2 + $0x38] sm:$0xff]
    %v141 = vld [vmem:[#allocation2 + $0x40] sm:$0xff]
    %v142 = vld [vmem:[#allocation2 + $0x48] sm:$0xff]
    %v143 = vld [vmem:[#allocation2 + $0x50] sm:$0xff]
    %v144 = vld [vmem:[#allocation2 + $0x58] sm:$0xff]
    %v145 = vld [vmem:[#allocation2 + $0x60] sm:$0xff]
    %v146 = vld [vmem:[#allocation2 + $0x68] sm:$0xff]
    %v147 = vld [vmem:[#allocation2 + $0x70] sm:$0xff]
    %v148 = vld [vmem:[#allocation2 + $0x78] sm:$0xff]
    %v149 = vld [vmem:[#allocation2 + $0x80] sm:$0xff]
    %v150 = vld [vmem:[#allocation2 + $0x88] sm:$0xff]
    %v151 = vld [vmem:[#allocation2 + $0x90] sm:$0xff]
    %v152 = vld [vmem:[#allocation2 + $0x98] sm:$0xff]
    %v153 = vld [vmem:[#allocation2 + $0xa0] sm:$0xff]
    %v154 = vld [vmem:[#allocation2 + $0xa8] sm:$0xff]
    %v155 = vld [vmem:[#allocation2 + $0xb0] sm:$0xff]
    %v156 = vld [vmem:[#allocation2 + $0xb8] sm:$0xff]
    %v157 = vld [vmem:[#allocation2 + $0xc0] sm:$0xff]
    %v158 = vld [vmem:[#allocation2 + $0xc8] sm:$0xff]
    %v159 = vld [vmem:[#allocation2 + $0xd0] sm:$0xff]
    %v160 = vld [vmem:[#allocation2 + $0xd8] sm:$0xff]
    %v161 = vld [vmem:[#allocation2 + $0xe0] sm:$0xff]
    %v162 = vld [vmem:[#allocation2 + $0xe8] sm:$0xff]
    %v163 = vld [vmem:[#allocation2 + $0xf0] sm:$0xff]
    %v164 = vld [vmem:[#allocation2 + $0xf8] sm:$0xff]
    %v165 = vld [vmem:[#allocation2 + $0x100] sm:$0xff]
    %v166 = vld [vmem:[#allocation2 + $0x108] sm:$0xff]
    %v167 = vld [vmem:[#allocation2 + $0x110] sm:$0xff]
    %v168 = vld [vmem:[#allocation2 + $0x118] sm:$0xff]
    %v169 = vld [vmem:[#allocation2 + $0x120] sm:$0xff]
    %v170 = vld [vmem:[#allocation2 + $0x128] sm:$0xff]
    %v171 = vld [vmem:[#allocation2 + $0x130] sm:$0xff]
    %v172 = vld [vmem:[#allocation2 + $0x138] sm:$0xff]
    %v173 = vld [vmem:[#allocation2 + $0x140] sm:$0xff]
    %v174 = vld [vmem:[#allocation2 + $0x148] sm:$0xff]
    %v175 = vld [vmem:[#allocation2 + $0x150] sm:$0xff]
    %v176 = vld [vmem:[#allocation2 + $0x158] sm:$0xff]
    %v177 = vld [vmem:[#allocation2 + $0x160] sm:$0xff]
    %v178 = vld [vmem:[#allocation2 + $0x168] sm:$0xff]
    %v179 = vld [vmem:[#allocation2 + $0x170] sm:$0xff]
    %v180 = vld [vmem:[#allocation2 + $0x178] sm:$0xff]
    %v181 = vld [vmem:[#allocation2 + $0x180] sm:$0xff]
    %v182 = vld [vmem:[#allocation2 + $0x188] sm:$0xff]
    %v183 = vld [vmem:[#allocation2 + $0x190] sm:$0xff]
    %v184 = vld [vmem:[#allocation2 + $0x198] sm:$0xff]
    %v185 = vld [vmem:[#allocation2 + $0x1a0] sm:$0xff]
    %v186 = vld [vmem:[#allocation2 + $0x1a8] sm:$0xff]
    %v187 = vld [vmem:[#allocation2 + $0x1b0] sm:$0xff]
    %v188 = vld [vmem:[#allocation2 + $0x1b8] sm:$0xff]
    %v189 = vld [vmem:[#allocation2 + $0x1c0] sm:$0xff]
    %v190 = vld [vmem:[#allocation2 + $0x1c8] sm:$0xff]
    %v191 = vld [vmem:[#allocation2 + $0x1d0] sm:$0xff]
    %v192 = vld [vmem:[#allocation2 + $0x1d8] sm:$0xff]
    %v193 = vld [vmem:[#allocation2 + $0x1e0] sm:$0xff]
    %v194 = vld [vmem:[#allocation2 + $0x1e8] sm:$0xff]
    %v195 = vld [vmem:[#allocation2 + $0x1f0] sm:$0xff]
    %v196 = vld [vmem:[#allocation2 + $0x1f8] sm:$0xff]
    %v197 = vpack.c.bf16 %v135, %v133
    %v198 = vpack.c.bf16 %v136, %v134
    %v199 = vpack.c.bf16 %v139, %v137
    %v200 = vpack.c.bf16 %v140, %v138
    %v201 = vpack.c.bf16 %v143, %v141
    %v202 = vpack.c.bf16 %v144, %v142
    %v203 = vpack.c.bf16 %v147, %v145
    %v204 = vpack.c.bf16 %v148, %v146
    %v205 = vpack.c.bf16 %v151, %v149
    %v206 = vpack.c.bf16 %v152, %v150
    %v207 = vpack.c.bf16 %v155, %v153
    %v208 = vpack.c.bf16 %v156, %v154
    %v209 = vpack.c.bf16 %v159, %v157
    %v210 = vpack.c.bf16 %v160, %v158
    %v211 = vpack.c.bf16 %v163, %v161
    %v212 = vpack.c.bf16 %v164, %v162
    %v213 = vpack.c.bf16 %v167, %v165
    %v214 = vpack.c.bf16 %v168, %v166
    %v215 = vpack.c.bf16 %v171, %v169
    %v216 = vpack.c.bf16 %v172, %v170
    %v217 = vpack.c.bf16 %v175, %v173
    %v218 = vpack.c.bf16 %v176, %v174
    %v219 = vpack.c.bf16 %v179, %v177
    %v220 = vpack.c.bf16 %v180, %v178
    %v221 = vpack.c.bf16 %v183, %v181
    %v222 = vpack.c.bf16 %v184, %v182
    %v223 = vpack.c.bf16 %v187, %v185
    %v224 = vpack.c.bf16 %v188, %v186
    %v225 = vpack.c.bf16 %v191, %v189
    %v226 = vpack.c.bf16 %v192, %v190
    %v227 = vpack.c.bf16 %v195, %v193
    %v228 = vpack.c.bf16 %v196, %v194
    %v229 = vld [vmem:[#allocation5] sm:$0xff]
    %v230 = vld [vmem:[#allocation5 + $0x8] sm:$0xff]
    %v231 = vld [vmem:[#allocation5 + $0x10] sm:$0xff]
    %v232 = vld [vmem:[#allocation5 + $0x18] sm:$0xff]
    %v233 = vld [vmem:[#allocation5 + $0x20] sm:$0xff]
    %v234 = vld [vmem:[#allocation5 + $0x28] sm:$0xff]
    %v235 = vld [vmem:[#allocation5 + $0x30] sm:$0xff]
    %v236 = vld [vmem:[#allocation5 + $0x38] sm:$0xff]
    %v237 = vld [vmem:[#allocation5 + $0x40] sm:$0xff]
    %v238 = vld [vmem:[#allocation5 + $0x48] sm:$0xff]
    %v239 = vld [vmem:[#allocation5 + $0x50] sm:$0xff]
    %v240 = vld [vmem:[#allocation5 + $0x58] sm:$0xff]
    %v241 = vld [vmem:[#allocation5 + $0x60] sm:$0xff]
    %v242 = vld [vmem:[#allocation5 + $0x68] sm:$0xff]
    %v243 = vld [vmem:[#allocation5 + $0x70] sm:$0xff]
    %v244 = vld [vmem:[#allocation5 + $0x78] sm:$0xff]
    %v245 = vld [vmem:[#allocation5 + $0x80] sm:$0xff]
    %v246 = vld [vmem:[#allocation5 + $0x88] sm:$0xff]
    %v247 = vld [vmem:[#allocation5 + $0x90] sm:$0xff]
    %v248 = vld [vmem:[#allocation5 + $0x98] sm:$0xff]
    %v249 = vld [vmem:[#allocation5 + $0xa0] sm:$0xff]
    %v250 = vld [vmem:[#allocation5 + $0xa8] sm:$0xff]
    %v251 = vld [vmem:[#allocation5 + $0xb0] sm:$0xff]
    %v252 = vld [vmem:[#allocation5 + $0xb8] sm:$0xff]
    %v253 = vld [vmem:[#allocation5 + $0xc0] sm:$0xff]
    %v254 = vld [vmem:[#allocation5 + $0xc8] sm:$0xff]
    %v255 = vld [vmem:[#allocation5 + $0xd0] sm:$0xff]
    %v256 = vld [vmem:[#allocation5 + $0xd8] sm:$0xff]
    %v257 = vld [vmem:[#allocation5 + $0xe0] sm:$0xff]
    %v258 = vld [vmem:[#allocation5 + $0xe8] sm:$0xff]
    %v259 = vld [vmem:[#allocation5 + $0xf0] sm:$0xff]
    %v260 = vld [vmem:[#allocation5 + $0xf8] sm:$0xff]
    %v293 = vunpack.c.l.b16 %v229
    %v294 = vunpack.c.h.b16 %v229
    %v295 = vunpack.c.l.b16 %v230
    %v296 = vunpack.c.h.b16 %v230
    %v297 = vunpack.c.l.b16 %v231
    %v298 = vunpack.c.h.b16 %v231
    %v299 = vunpack.c.l.b16 %v232
    %v300 = vunpack.c.h.b16 %v232
    %v301 = vunpack.c.l.b16 %v233
    %v302 = vunpack.c.h.b16 %v233
    %v303 = vunpack.c.l.b16 %v234
    %v304 = vunpack.c.h.b16 %v234
    %v305 = vunpack.c.l.b16 %v235
    %v306 = vunpack.c.h.b16 %v235
    %v307 = vunpack.c.l.b16 %v236
    %v308 = vunpack.c.h.b16 %v236
    %v309 = vunpack.c.l.b16 %v237
    %v310 = vunpack.c.h.b16 %v237
    %v311 = vunpack.c.l.b16 %v238
    %v312 = vunpack.c.h.b16 %v238
    %v313 = vunpack.c.l.b16 %v239
    %v314 = vunpack.c.h.b16 %v239
    %v315 = vunpack.c.l.b16 %v240
    %v316 = vunpack.c.h.b16 %v240
    %v317 = vunpack.c.l.b16 %v241
    %v318 = vunpack.c.h.b16 %v241
    %v319 = vunpack.c.l.b16 %v242
    %v320 = vunpack.c.h.b16 %v242
    %v321 = vunpack.c.l.b16 %v243
    %v322 = vunpack.c.h.b16 %v243
    %v323 = vunpack.c.l.b16 %v244
    %v324 = vunpack.c.h.b16 %v244
    %v325 = vunpack.c.l.b16 %v245
    %v326 = vunpack.c.h.b16 %v245
    %v327 = vunpack.c.l.b16 %v246
    %v328 = vunpack.c.h.b16 %v246
    %v329 = vunpack.c.l.b16 %v247
    %v330 = vunpack.c.h.b16 %v247
    %v331 = vunpack.c.l.b16 %v248
    %v332 = vunpack.c.h.b16 %v248
    %v333 = vunpack.c.l.b16 %v249
    %v334 = vunpack.c.h.b16 %v249
    %v335 = vunpack.c.l.b16 %v250
    %v336 = vunpack.c.h.b16 %v250
    %v337 = vunpack.c.l.b16 %v251
    %v338 = vunpack.c.h.b16 %v251
    %v339 = vunpack.c.l.b16 %v252
    %v340 = vunpack.c.h.b16 %v252
    %v341 = vunpack.c.l.b16 %v253
    %v342 = vunpack.c.h.b16 %v253
    %v343 = vunpack.c.l.b16 %v254
    %v344 = vunpack.c.h.b16 %v254
    %v345 = vunpack.c.l.b16 %v255
    %v346 = vunpack.c.h.b16 %v255
    %v347 = vunpack.c.l.b16 %v256
    %v348 = vunpack.c.h.b16 %v256
    %v349 = vunpack.c.l.b16 %v257
    %v350 = vunpack.c.h.b16 %v257
    %v351 = vunpack.c.l.b16 %v258
    %v352 = vunpack.c.h.b16 %v258
    %v353 = vunpack.c.l.b16 %v259
    %v354 = vunpack.c.h.b16 %v259
    %v355 = vunpack.c.l.b16 %v260
    %v356 = vunpack.c.h.b16 %v260
    %v357 = vpack.c.b16 %v295, %v293
    %v358 = vpack.c.b16 %v296, %v294
    %v359 = vpack.c.b16 %v299, %v297
    %v360 = vpack.c.b16 %v300, %v298
    %v361 = vpack.c.b16 %v303, %v301
    %v362 = vpack.c.b16 %v304, %v302
    %v363 = vpack.c.b16 %v307, %v305
    %v364 = vpack.c.b16 %v308, %v306
    %v365 = vpack.c.b16 %v311, %v309
    %v366 = vpack.c.b16 %v312, %v310
    %v367 = vpack.c.b16 %v315, %v313
    %v368 = vpack.c.b16 %v316, %v314
    %v369 = vpack.c.b16 %v319, %v317
    %v370 = vpack.c.b16 %v320, %v318
    %v371 = vpack.c.b16 %v323, %v321
    %v372 = vpack.c.b16 %v324, %v322
    %v373 = vpack.c.b16 %v327, %v325
    %v374 = vpack.c.b16 %v328, %v326
    %v375 = vpack.c.b16 %v331, %v329
    %v376 = vpack.c.b16 %v332, %v330
    %v377 = vpack.c.b16 %v335, %v333
    %v378 = vpack.c.b16 %v336, %v334
    %v379 = vpack.c.b16 %v339, %v337
    %v380 = vpack.c.b16 %v340, %v338
    %v381 = vpack.c.b16 %v343, %v341
    %v382 = vpack.c.b16 %v344, %v342
    %v383 = vpack.c.b16 %v347, %v345
    %v384 = vpack.c.b16 %v348, %v346
    %v385 = vpack.c.b16 %v351, %v349
    %v386 = vpack.c.b16 %v352, %v350
    %v387 = vpack.c.b16 %v355, %v353
    %v388 = vpack.c.b16 %v356, %v354
    %421 = vmatprep.subr.bf16.mxu0 %v372
    %422 = vmatpush1.bf16.msra.mxu0 %v371
    %423 = vmatprep.subr.bf16.mxu0 %v370
    %424 = vmatpush1.bf16.msra.mxu0 %v369
    %425 = vmatprep.subr.bf16.mxu0 %v368
    %426 = vmatpush1.bf16.msra.mxu0 %v367
    %427 = vmatprep.subr.bf16.mxu0 %v366
    %428 = vmatpush1.bf16.msra.mxu0 %v365
    %429 = vmatprep.subr.bf16.mxu0 %v364
    %430 = vmatpush1.bf16.msra.mxu0 %v363
    %431 = vmatprep.subr.bf16.mxu0 %v362
    %432 = vmatpush1.bf16.msra.mxu0 %v361
    %433 = vmatprep.subr.bf16.mxu0 %v360
    %434 = vmatpush1.bf16.msra.mxu0 %v359
    %435 = vmatprep.subr.bf16.mxu0 %v358
    %436 = vmatpush1.bf16.msra.mxu0 %v357
    %437 = vmatprep.subr.bf16.mxu0 %v388
    %438 = vmatpush2.bf16.msra.mxu0 %v387
    %439 = vmatprep.subr.bf16.mxu0 %v386
    %440 = vmatpush2.bf16.msra.mxu0 %v385
    %441 = vmatprep.subr.bf16.mxu0 %v384
    %442 = vmatpush2.bf16.msra.mxu0 %v383
    %443 = vmatprep.subr.bf16.mxu0 %v382
    %444 = vmatpush2.bf16.msra.mxu0 %v381
    %445 = vmatprep.subr.bf16.mxu0 %v380
    %446 = vmatpush2.bf16.msra.mxu0 %v379
    %447 = vmatprep.subr.bf16.mxu0 %v378
    %448 = vmatpush2.bf16.msra.mxu0 %v377
    %449 = vmatprep.subr.bf16.mxu0 %v376
    %450 = vmatpush2.bf16.msra.mxu0 %v375
    %451 = vmatprep.subr.bf16.mxu0 %v374
    %452 = vmatpush2.bf16.msra.mxu0 %v373
    %453 = vmatprep.mubr.bf16.mxu0 %v198
    %454 = vmatmul.mubr.bf16.gmra.mxu0 %v197
    %v455 = vpop.f32.mrf.mxu0
    %v456 = vadd.f32 0.0, %v455
    %v457 = vpop.f32.mrf.mxu0
    %v458 = vadd.f32 0.0, %v457
    %v459 = vpop.f32.mrf.mxu0
    %v460 = vadd.f32 0.0, %v459
    %v461 = vpop.f32.mrf.mxu0
    %v462 = vadd.f32 0.0, %v461
    %463 = vmatprep.mubr.bf16.mxu0 %v200
    %464 = vmatmul.mubr.bf16.gmra.mxu0 %v199
    %v465 = vpop.f32.mrf.mxu0
    %v466 = vadd.f32 0.0, %v465
    %v467 = vpop.f32.mrf.mxu0
    %v468 = vadd.f32 0.0, %v467
    %v469 = vpop.f32.mrf.mxu0
    %v470 = vadd.f32 0.0, %v469
    %v471 = vpop.f32.mrf.mxu0
    %v472 = vadd.f32 0.0, %v471
    %473 = vmatprep.mubr.bf16.mxu0 %v202
    %474 = vmatmul.mubr.bf16.gmra.mxu0 %v201
    %v475 = vpop.f32.mrf.mxu0
    %v476 = vadd.f32 0.0, %v475
    %v477 = vpop.f32.mrf.mxu0
    %v478 = vadd.f32 0.0, %v477
    %v479 = vpop.f32.mrf.mxu0
    %v480 = vadd.f32 0.0, %v479
    %v481 = vpop.f32.mrf.mxu0
    %v482 = vadd.f32 0.0, %v481
    %483 = vmatprep.mubr.bf16.mxu0 %v204
    %484 = vmatmul.mubr.bf16.gmra.mxu0 %v203
    %v485 = vpop.f32.mrf.mxu0
    %v486 = vadd.f32 0.0, %v485
    %v487 = vpop.f32.mrf.mxu0
    %v488 = vadd.f32 0.0, %v487
    %v489 = vpop.f32.mrf.mxu0
    %v490 = vadd.f32 0.0, %v489
    %v491 = vpop.f32.mrf.mxu0
    %v492 = vadd.f32 0.0, %v491
    %493 = vmatprep.mubr.bf16.mxu0 %v206
    %494 = vmatmul.mubr.bf16.gmra.mxu0 %v205
    %v495 = vpop.f32.mrf.mxu0
    %v496 = vadd.f32 0.0, %v495
    %v497 = vpop.f32.mrf.mxu0
    %v498 = vadd.f32 0.0, %v497
    %v499 = vpop.f32.mrf.mxu0
    %v500 = vadd.f32 0.0, %v499
    %v501 = vpop.f32.mrf.mxu0
    %v502 = vadd.f32 0.0, %v501
    %503 = vmatprep.mubr.bf16.mxu0 %v208
    %504 = vmatmul.mubr.bf16.gmra.mxu0 %v207
    %v505 = vpop.f32.mrf.mxu0
    %v506 = vadd.f32 0.0, %v505
    %v507 = vpop.f32.mrf.mxu0
    %v508 = vadd.f32 0.0, %v507
    %v509 = vpop.f32.mrf.mxu0
    %v510 = vadd.f32 0.0, %v509
    %v511 = vpop.f32.mrf.mxu0
    %v512 = vadd.f32 0.0, %v511
    %513 = vmatprep.mubr.bf16.mxu0 %v210
    %514 = vmatmul.mubr.bf16.gmra.mxu0 %v209
    %v515 = vpop.f32.mrf.mxu0
    %v516 = vadd.f32 0.0, %v515
    %v517 = vpop.f32.mrf.mxu0
    %v518 = vadd.f32 0.0, %v517
    %v519 = vpop.f32.mrf.mxu0
    %v520 = vadd.f32 0.0, %v519
    %v521 = vpop.f32.mrf.mxu0
    %v522 = vadd.f32 0.0, %v521
    %523 = vmatprep.mubr.bf16.mxu0 %v212
    %524 = vmatmul.mubr.bf16.gmra.mxu0 %v211
    %v525 = vpop.f32.mrf.mxu0
    %v526 = vadd.f32 0.0, %v525
    %v527 = vpop.f32.mrf.mxu0
    %v528 = vadd.f32 0.0, %v527
    %v529 = vpop.f32.mrf.mxu0
    %v530 = vadd.f32 0.0, %v529
    %v531 = vpop.f32.mrf.mxu0
    %v532 = vadd.f32 0.0, %v531
    %533 = vmatprep.mubr.bf16.mxu0 %v214
    %534 = vmatmul.mubr.bf16.gmra.mxu0 %v213
    %v535 = vpop.f32.mrf.mxu0
    %v536 = vadd.f32 0.0, %v535
    %v537 = vpop.f32.mrf.mxu0
    %v538 = vadd.f32 0.0, %v537
    %v539 = vpop.f32.mrf.mxu0
    %v540 = vadd.f32 0.0, %v539
    %v541 = vpop.f32.mrf.mxu0
    %v542 = vadd.f32 0.0, %v541
    %543 = vmatprep.mubr.bf16.mxu0 %v216
    %544 = vmatmul.mubr.bf16.gmra.mxu0 %v215
    %v545 = vpop.f32.mrf.mxu0
    %v546 = vadd.f32 0.0, %v545
    %v547 = vpop.f32.mrf.mxu0
    %v548 = vadd.f32 0.0, %v547
    %v549 = vpop.f32.mrf.mxu0
    %v550 = vadd.f32 0.0, %v549
    %v551 = vpop.f32.mrf.mxu0
    %v552 = vadd.f32 0.0, %v551
    %553 = vmatprep.mubr.bf16.mxu0 %v218
    %554 = vmatmul.mubr.bf16.gmra.mxu0 %v217
    %v555 = vpop.f32.mrf.mxu0
    %v556 = vadd.f32 0.0, %v555
    %v557 = vpop.f32.mrf.mxu0
    %v558 = vadd.f32 0.0, %v557
    %v559 = vpop.f32.mrf.mxu0
    %v560 = vadd.f32 0.0, %v559
    %v561 = vpop.f32.mrf.mxu0
    %v562 = vadd.f32 0.0, %v561
    %563 = vmatprep.mubr.bf16.mxu0 %v220
    %564 = vmatmul.mubr.bf16.gmra.mxu0 %v219
    %v565 = vpop.f32.mrf.mxu0
    %v566 = vadd.f32 0.0, %v565
    %v567 = vpop.f32.mrf.mxu0
    %v568 = vadd.f32 0.0, %v567
    %v569 = vpop.f32.mrf.mxu0
    %v570 = vadd.f32 0.0, %v569
    %v571 = vpop.f32.mrf.mxu0
    %v572 = vadd.f32 0.0, %v571
    %573 = vmatprep.mubr.bf16.mxu0 %v222
    %574 = vmatmul.mubr.bf16.gmra.mxu0 %v221
    %v575 = vpop.f32.mrf.mxu0
    %v576 = vadd.f32 0.0, %v575
    %v577 = vpop.f32.mrf.mxu0
    %v578 = vadd.f32 0.0, %v577
    %v579 = vpop.f32.mrf.mxu0
    %v580 = vadd.f32 0.0, %v579
    %v581 = vpop.f32.mrf.mxu0
    %v582 = vadd.f32 0.0, %v581
    %583 = vmatprep.mubr.bf16.mxu0 %v224
    %584 = vmatmul.mubr.bf16.gmra.mxu0 %v223
    %v585 = vpop.f32.mrf.mxu0
    %v586 = vadd.f32 0.0, %v585
    %v587 = vpop.f32.mrf.mxu0
    %v588 = vadd.f32 0.0, %v587
    %v589 = vpop.f32.mrf.mxu0
    %v590 = vadd.f32 0.0, %v589
    %v591 = vpop.f32.mrf.mxu0
    %v592 = vadd.f32 0.0, %v591
    %593 = vmatprep.mubr.bf16.mxu0 %v226
    %594 = vmatmul.mubr.bf16.gmra.mxu0 %v225
    %v595 = vpop.f32.mrf.mxu0
    %v596 = vadd.f32 0.0, %v595
    %v597 = vpop.f32.mrf.mxu0
    %v598 = vadd.f32 0.0, %v597
    %v599 = vpop.f32.mrf.mxu0
    %v600 = vadd.f32 0.0, %v599
    %v601 = vpop.f32.mrf.mxu0
    %v602 = vadd.f32 0.0, %v601
    %603 = vmatprep.mubr.bf16.mxu0 %v228
    %604 = vmatmul.mubr.bf16.gmra.mxu0 %v227
    %v605 = vpop.f32.mrf.mxu0
    %v606 = vadd.f32 0.0, %v605
    %v607 = vpop.f32.mrf.mxu0
    %v608 = vadd.f32 0.0, %v607
    %v609 = vpop.f32.mrf.mxu0
    %v610 = vadd.f32 0.0, %v609
    %v611 = vpop.f32.mrf.mxu0
    %v612 = vadd.f32 0.0, %v611
    %613 = vdwg.mxu0
    %v614 = vld [vmem:[%s2] sm:$0xf]
    %v615 = vadd.f32 %v456, %v460
    %v616 = vadd.f32 %v615, %v466
    %v617 = vadd.f32 %v616, %v470
    %v618 = vadd.f32 %v617, %v476
    %v619 = vadd.f32 %v618, %v480
    %v620 = vadd.f32 %v619, %v486
    %v621 = vadd.f32 %v620, %v490
    %v622 = vadd.f32 %v621, %v496
    %v623 = vadd.f32 %v622, %v500
    %v624 = vadd.f32 %v623, %v506
    %v625 = vadd.f32 %v624, %v510
    %v626 = vadd.f32 %v625, %v516
    %v627 = vadd.f32 %v626, %v520
    %v628 = vadd.f32 %v627, %v526
    %v629 = vadd.f32 %v628, %v530
    %v630 = vadd.f32 %v629, %v536
    %v631 = vadd.f32 %v630, %v540
    %v632 = vadd.f32 %v631, %v546
    %v633 = vadd.f32 %v632, %v550
    %v634 = vadd.f32 %v633, %v556
    %v635 = vadd.f32 %v634, %v560
    %v636 = vadd.f32 %v635, %v566
    %v637 = vadd.f32 %v636, %v570
    %v638 = vadd.f32 %v637, %v576
    %v639 = vadd.f32 %v638, %v580
    %v640 = vadd.f32 %v639, %v586
    %v641 = vadd.f32 %v640, %v590
    %v642 = vadd.f32 %v641, %v596
    %v643 = vadd.f32 %v642, %v600
    %v644 = vadd.f32 %v643, %v606
    %v645 = vadd.f32 %v644, %v610
    %v646 = vrot.slane %v645, 4
    %v647 = vadd.f32 %v645, %v646
    %v648 = vrot.slane %v647, 2
    %v649 = vadd.f32 %v647, %v648
    %v650 = vrot.slane %v649, 1
    %v651 = vadd.f32 %v649, %v650
    %v652 = vadd.f32 %v458, %v462
    %v653 = vadd.f32 %v652, %v468
    %v654 = vadd.f32 %v653, %v472
    %v655 = vadd.f32 %v654, %v478
    %v656 = vadd.f32 %v655, %v482
    %v657 = vadd.f32 %v656, %v488
    %v658 = vadd.f32 %v657, %v492
    %v659 = vadd.f32 %v658, %v498
    %v660 = vadd.f32 %v659, %v502
    %v661 = vadd.f32 %v660, %v508
    %v662 = vadd.f32 %v661, %v512
    %v663 = vadd.f32 %v662, %v518
    %v664 = vadd.f32 %v663, %v522
    %v665 = vadd.f32 %v664, %v528
    %v666 = vadd.f32 %v665, %v532
    %v667 = vadd.f32 %v666, %v538
    %v668 = vadd.f32 %v667, %v542
    %v669 = vadd.f32 %v668, %v548
    %v670 = vadd.f32 %v669, %v552
    %v671 = vadd.f32 %v670, %v558
    %v672 = vadd.f32 %v671, %v562
    %v673 = vadd.f32 %v672, %v568
    %v674 = vadd.f32 %v673, %v572
    %v675 = vadd.f32 %v674, %v578
    %v676 = vadd.f32 %v675, %v582
    %v677 = vadd.f32 %v676, %v588
    %v678 = vadd.f32 %v677, %v592
    %v679 = vadd.f32 %v678, %v598
    %v680 = vadd.f32 %v679, %v602
    %v681 = vadd.f32 %v680, %v608
    %v682 = vadd.f32 %v681, %v612
    %v683 = vrot.slane %v682, 4
    %v684 = vadd.f32 %v682, %v683
    %v685 = vrot.slane %v684, 2
    %v686 = vadd.f32 %v684, %v685
    %v687 = vrot.slane %v686, 1
    %v688 = vadd.f32 %v686, %v687
    %v689 = vmul.f32 %v651, 0.00390625
    %v690 = vmul.f32 %v688, 0.00390625
    %v691 = vmul.f32 %v456, %v456
    %v692 = vmul.f32 %v458, %v458
    %v693 = vmul.f32 %v460, %v460
    %v694 = vmul.f32 %v462, %v462
    %v695 = vmul.f32 %v466, %v466
    %v696 = vmul.f32 %v468, %v468
    %v697 = vmul.f32 %v470, %v470
    %v698 = vmul.f32 %v472, %v472
    %v699 = vmul.f32 %v476, %v476
    %v700 = vmul.f32 %v478, %v478
    %v701 = vmul.f32 %v480, %v480
    %v702 = vmul.f32 %v482, %v482
    %v703 = vmul.f32 %v486, %v486
    %v704 = vmul.f32 %v488, %v488
    %v705 = vmul.f32 %v490, %v490
    %v706 = vmul.f32 %v492, %v492
    %v707 = vmul.f32 %v496, %v496
    %v708 = vmul.f32 %v498, %v498
    %v709 = vmul.f32 %v500, %v500
    %v710 = vmul.f32 %v502, %v502
    %v711 = vmul.f32 %v506, %v506
    %v712 = vmul.f32 %v508, %v508
    %v713 = vmul.f32 %v510, %v510
    %v714 = vmul.f32 %v512, %v512
    %v715 = vmul.f32 %v516, %v516
    %v716 = vmul.f32 %v518, %v518
    %v717 = vmul.f32 %v520, %v520
    %v718 = vmul.f32 %v522, %v522
    %v719 = vmul.f32 %v526, %v526
    %v720 = vmul.f32 %v528, %v528
    %v721 = vmul.f32 %v530, %v530
    %v722 = vmul.f32 %v532, %v532
    %v723 = vmul.f32 %v536, %v536
    %v724 = vmul.f32 %v538, %v538
    %v725 = vmul.f32 %v540, %v540
    %v726 = vmul.f32 %v542, %v542
    %v727 = vmul.f32 %v546, %v546
    %v728 = vmul.f32 %v548, %v548
    %v729 = vmul.f32 %v550, %v550
    %v730 = vmul.f32 %v552, %v552
    %v731 = vmul.f32 %v556, %v556
    %v732 = vmul.f32 %v558, %v558
    %v733 = vmul.f32 %v560, %v560
    %v734 = vmul.f32 %v562, %v562
    %v735 = vmul.f32 %v566, %v566
    %v736 = vmul.f32 %v568, %v568
    %v737 = vmul.f32 %v570, %v570
    %v738 = vmul.f32 %v572, %v572
    %v739 = vmul.f32 %v576, %v576
    %v740 = vmul.f32 %v578, %v578
    %v741 = vmul.f32 %v580, %v580
    %v742 = vmul.f32 %v582, %v582
    %v743 = vmul.f32 %v586, %v586
    %v744 = vmul.f32 %v588, %v588
    %v745 = vmul.f32 %v590, %v590
    %v746 = vmul.f32 %v592, %v592
    %v747 = vmul.f32 %v596, %v596
    %v748 = vmul.f32 %v598, %v598
    %v749 = vmul.f32 %v600, %v600
    %v750 = vmul.f32 %v602, %v602
    %v751 = vmul.f32 %v606, %v606
    %v752 = vmul.f32 %v608, %v608
    %v753 = vmul.f32 %v610, %v610
    %v754 = vmul.f32 %v612, %v612
    %v755 = vadd.f32 %v691, %v693
    %v756 = vadd.f32 %v755, %v695
    %v757 = vadd.f32 %v756, %v697
    %v758 = vadd.f32 %v757, %v699
    %v759 = vadd.f32 %v758, %v701
    %v760 = vadd.f32 %v759, %v703
    %v761 = vadd.f32 %v760, %v705
    %v762 = vadd.f32 %v761, %v707
    %v763 = vadd.f32 %v762, %v709
    %v764 = vadd.f32 %v763, %v711
    %v765 = vadd.f32 %v764, %v713
    %v766 = vadd.f32 %v765, %v715
    %v767 = vadd.f32 %v766, %v717
    %v768 = vadd.f32 %v767, %v719
    %v769 = vadd.f32 %v768, %v721
    %v770 = vadd.f32 %v769, %v723
    %v771 = vadd.f32 %v770, %v725
    %v772 = vadd.f32 %v771, %v727
    %v773 = vadd.f32 %v772, %v729
    %v774 = vadd.f32 %v773, %v731
    %v775 = vadd.f32 %v774, %v733
    %v776 = vadd.f32 %v775, %v735
    %v777 = vadd.f32 %v776, %v737
    %v778 = vadd.f32 %v777, %v739
    %v779 = vadd.f32 %v778, %v741
    %v780 = vadd.f32 %v779, %v743
    %v781 = vadd.f32 %v780, %v745
    %v782 = vadd.f32 %v781, %v747
    %v783 = vadd.f32 %v782, %v749
    %v784 = vadd.f32 %v783, %v751
    %v785 = vadd.f32 %v784, %v753
    %v786 = vrot.slane %v785, 4
    %v787 = vadd.f32 %v785, %v786
    %v788 = vrot.slane %v787, 2
    %v789 = vadd.f32 %v787, %v788
    %v790 = vrot.slane %v789, 1
    %v791 = vadd.f32 %v789, %v790
    %v792 = vadd.f32 %v692, %v694
    %v793 = vadd.f32 %v792, %v696
    %v794 = vadd.f32 %v793, %v698
    %v795 = vadd.f32 %v794, %v700
    %v796 = vadd.f32 %v795, %v702
    %v797 = vadd.f32 %v796, %v704
    %v798 = vadd.f32 %v797, %v706
    %v799 = vadd.f32 %v798, %v708
    %v800 = vadd.f32 %v799, %v710
    %v801 = vadd.f32 %v800, %v712
    %v802 = vadd.f32 %v801, %v714
    %v803 = vadd.f32 %v802, %v716
    %v804 = vadd.f32 %v803, %v718
    %v805 = vadd.f32 %v804, %v720
    %v806 = vadd.f32 %v805, %v722
    %v807 = vadd.f32 %v806, %v724
    %v808 = vadd.f32 %v807, %v726
    %v809 = vadd.f32 %v808, %v728
    %v810 = vadd.f32 %v809, %v730
    %v811 = vadd.f32 %v810, %v732
    %v812 = vadd.f32 %v811, %v734
    %v813 = vadd.f32 %v812, %v736
    %v814 = vadd.f32 %v813, %v738
    %v815 = vadd.f32 %v814, %v740
    %v816 = vadd.f32 %v815, %v742
    %v817 = vadd.f32 %v816, %v744
    %v818 = vadd.f32 %v817, %v746
    %v819 = vadd.f32 %v818, %v748
    %v820 = vadd.f32 %v819, %v750
    %v821 = vadd.f32 %v820, %v752
    %v822 = vadd.f32 %v821, %v754
    %v823 = vrot.slane %v822, 4
    %v824 = vadd.f32 %v822, %v823
    %v825 = vrot.slane %v824, 2
    %v826 = vadd.f32 %v824, %v825
    %v827 = vrot.slane %v826, 1
    %v828 = vadd.f32 %v826, %v827
    %v829 = vmul.f32 %v791, 0.00390625
    %v830 = vmul.f32 %v828, 0.00390625
    %v831 = vmul.f32 %v689, %v689
    %v832 = vmul.f32 %v690, %v690
    %v833 = vsub.f32 %v829, %v831
    %v834 = vsub.f32 %v830, %v832
    %v835 = vadd.f32 %v833, 1e-05
    %v836 = vadd.f32 %v834, 1e-05
    %v837 = vrsqrt.pop %v835
    %v838 = vrsqrt.pop %v836
    %v841 = vcombine.low %v837, %v838
    %v843 = vunpack.c.l.s4 1983009808
    %v844 = vunpack.c.0.s8 %v843
    %v845 = vlaneseq
    %v846 = vshrl.u32 %v845, 7
    %v847 = vsub.s32 %v844, %v846
    %v848 = vrot.slane %v841, %v847
    %v850 = vmul.f32 %v614, %v848
    %v852 = vlaneseq
    %v853 = vshrl.u32 %v852, 7
    %v854 = vsub.s32 0, %v853
    %v855 = vrot.slane %v850, %v854
    %v856 = vlaneseq
    %v857 = vshrl.u32 %v856, 7
    %v858 = vsub.s32 2, %v857
    %v859 = vrot.slane %v850, %v858
    %v862 = vmul.f32 %v689, %v855
    %v863 = vmul.f32 %v690, %v859
    %v866 = vcombine.low %v862, %v863
    %v868 = vunpack.c.l.s4 1983009808
    %v869 = vunpack.c.0.s8 %v868
    %v870 = vlaneseq
    %v871 = vshrl.u32 %v870, 7
    %v872 = vsub.s32 %v869, %v871
    %v873 = vrot.slane %v866, %v872
    %v874 = vrot.slane %v873, 7
    %v876 = vsub.f32 %v614, %v874
    %v877 = vlaneseq
    %v878 = vshrl.u32 %v877, 7
    %v879 = vsub.s32 0, %v878
    %v880 = vrot.slane %v855, %v879
    %v881 = vlaneseq
    %v882 = vshrl.u32 %v881, 7
    %v883 = vsub.s32 0, %v882
    %v884 = vrot.slane %v859, %v883
    %v885 = vmul.f32 %v456, %v880
    %v886 = vmul.f32 %v458, %v884
    %v887 = vmul.f32 %v460, %v880
    %v888 = vmul.f32 %v462, %v884
    %v889 = vmul.f32 %v466, %v880
    %v890 = vmul.f32 %v468, %v884
    %v891 = vmul.f32 %v470, %v880
    %v892 = vmul.f32 %v472, %v884
    %v893 = vmul.f32 %v476, %v880
    %v894 = vmul.f32 %v478, %v884
    %v895 = vmul.f32 %v480, %v880
    %v896 = vmul.f32 %v482, %v884
    %v897 = vmul.f32 %v486, %v880
    %v898 = vmul.f32 %v488, %v884
    %v899 = vmul.f32 %v490, %v880
    %v900 = vmul.f32 %v492, %v884
    %v901 = vmul.f32 %v496, %v880
    %v902 = vmul.f32 %v498, %v884
    %v903 = vmul.f32 %v500, %v880
    %v904 = vmul.f32 %v502, %v884
    %v905 = vmul.f32 %v506, %v880
    %v906 = vmul.f32 %v508, %v884
    %v907 = vmul.f32 %v510, %v880
    %v908 = vmul.f32 %v512, %v884
    %v909 = vmul.f32 %v516, %v880
    %v910 = vmul.f32 %v518, %v884
    %v911 = vmul.f32 %v520, %v880
    %v912 = vmul.f32 %v522, %v884
    %v913 = vmul.f32 %v526, %v880
    %v914 = vmul.f32 %v528, %v884
    %v915 = vmul.f32 %v530, %v880
    %v916 = vmul.f32 %v532, %v884
    %v917 = vmul.f32 %v536, %v880
    %v918 = vmul.f32 %v538, %v884
    %v919 = vmul.f32 %v540, %v880
    %v920 = vmul.f32 %v542, %v884
    %v921 = vmul.f32 %v546, %v880
    %v922 = vmul.f32 %v548, %v884
    %v923 = vmul.f32 %v550, %v880
    %v924 = vmul.f32 %v552, %v884
    %v925 = vmul.f32 %v556, %v880
    %v926 = vmul.f32 %v558, %v884
    %v927 = vmul.f32 %v560, %v880
    %v928 = vmul.f32 %v562, %v884
    %v929 = vmul.f32 %v566, %v880
    %v930 = vmul.f32 %v568, %v884
    %v931 = vmul.f32 %v570, %v880
    %v932 = vmul.f32 %v572, %v884
    %v933 = vmul.f32 %v576, %v880
    %v934 = vmul.f32 %v578, %v884
    %v935 = vmul.f32 %v580, %v880
    %v936 = vmul.f32 %v582, %v884
    %v937 = vmul.f32 %v586, %v880
    %v938 = vmul.f32 %v588, %v884
    %v939 = vmul.f32 %v590, %v880
    %v940 = vmul.f32 %v592, %v884
    %v941 = vmul.f32 %v596, %v880
    %v942 = vmul.f32 %v598, %v884
    %v943 = vmul.f32 %v600, %v880
    %v944 = vmul.f32 %v602, %v884
    %v945 = vmul.f32 %v606, %v880
    %v946 = vmul.f32 %v608, %v884
    %v947 = vmul.f32 %v610, %v880
    %v948 = vmul.f32 %v612, %v884
    %v950 = vlaneseq
    %v951 = vshrl.u32 %v950, 7
    %v952 = vsub.s32 1, %v951
    %v953 = vrot.slane %v876, %v952
    %v954 = vlaneseq
    %v955 = vshrl.u32 %v954, 7
    %v956 = vsub.s32 3, %v955
    %v957 = vrot.slane %v876, %v956
    %v960 = vlaneseq
    %v961 = vshrl.u32 %v960, 7
    %v962 = vsub.s32 1, %v961
    %v963 = vrot.slane %v953, %v962
    %v964 = vlaneseq
    %v965 = vshrl.u32 %v964, 7
    %v966 = vsub.s32 1, %v965
    %v967 = vrot.slane %v957, %v966
    %v968 = vadd.f32 %v885, %v963
    %v969 = vadd.f32 %v886, %v967
    %v970 = vadd.f32 %v887, %v963
    %v971 = vadd.f32 %v888, %v967
    %v972 = vadd.f32 %v889, %v963
    %v973 = vadd.f32 %v890, %v967
    %v974 = vadd.f32 %v891, %v963
    %v975 = vadd.f32 %v892, %v967
    %v976 = vadd.f32 %v893, %v963
    %v977 = vadd.f32 %v894, %v967
    %v978 = vadd.f32 %v895, %v963
    %v979 = vadd.f32 %v896, %v967
    %v980 = vadd.f32 %v897, %v963
    %v981 = vadd.f32 %v898, %v967
    %v982 = vadd.f32 %v899, %v963
    %v983 = vadd.f32 %v900, %v967
    %v984 = vadd.f32 %v901, %v963
    %v985 = vadd.f32 %v902, %v967
    %v986 = vadd.f32 %v903, %v963
    %v987 = vadd.f32 %v904, %v967
    %v988 = vadd.f32 %v905, %v963
    %v989 = vadd.f32 %v906, %v967
    %v990 = vadd.f32 %v907, %v963
    %v991 = vadd.f32 %v908, %v967
    %v992 = vadd.f32 %v909, %v963
    %v993 = vadd.f32 %v910, %v967
    %v994 = vadd.f32 %v911, %v963
    %v995 = vadd.f32 %v912, %v967
    %v996 = vadd.f32 %v913, %v963
    %v997 = vadd.f32 %v914, %v967
    %v998 = vadd.f32 %v915, %v963
    %v999 = vadd.f32 %v916, %v967
    %v1000 = vadd.f32 %v917, %v963
    %v1001 = vadd.f32 %v918, %v967
    %v1002 = vadd.f32 %v919, %v963
    %v1003 = vadd.f32 %v920, %v967
    %v1004 = vadd.f32 %v921, %v963
    %v1005 = vadd.f32 %v922, %v967
    %v1006 = vadd.f32 %v923, %v963
    %v1007 = vadd.f32 %v924, %v967
    %v1008 = vadd.f32 %v925, %v963
    %v1009 = vadd.f32 %v926, %v967
    %v1010 = vadd.f32 %v927, %v963
    %v1011 = vadd.f32 %v928, %v967
    %v1012 = vadd.f32 %v929, %v963
    %v1013 = vadd.f32 %v930, %v967
    %v1014 = vadd.f32 %v931, %v963
    %v1015 = vadd.f32 %v932, %v967
    %v1016 = vadd.f32 %v933, %v963
    %v1017 = vadd.f32 %v934, %v967
    %v1018 = vadd.f32 %v935, %v963
    %v1019 = vadd.f32 %v936, %v967
    %v1020 = vadd.f32 %v937, %v963
    %v1021 = vadd.f32 %v938, %v967
    %v1022 = vadd.f32 %v939, %v963
    %v1023 = vadd.f32 %v940, %v967
    %v1024 = vadd.f32 %v941, %v963
    %v1025 = vadd.f32 %v942, %v967
    %v1026 = vadd.f32 %v943, %v963
    %v1027 = vadd.f32 %v944, %v967
    %v1028 = vadd.f32 %v945, %v963
    %v1029 = vadd.f32 %v946, %v967
    %v1030 = vadd.f32 %v947, %v963
    %v1031 = vadd.f32 %v948, %v967
    %v1032 = vmax.f32 %v968, 0.0
    %v1033 = vmax.f32 %v969, 0.0
    %v1034 = vmax.f32 %v970, 0.0
    %v1035 = vmax.f32 %v971, 0.0
    %v1036 = vmax.f32 %v972, 0.0
    %v1037 = vmax.f32 %v973, 0.0
    %v1038 = vmax.f32 %v974, 0.0
    %v1039 = vmax.f32 %v975, 0.0
    %v1040 = vmax.f32 %v976, 0.0
    %v1041 = vmax.f32 %v977, 0.0
    %v1042 = vmax.f32 %v978, 0.0
    %v1043 = vmax.f32 %v979, 0.0
    %v1044 = vmax.f32 %v980, 0.0
    %v1045 = vmax.f32 %v981, 0.0
    %v1046 = vmax.f32 %v982, 0.0
    %v1047 = vmax.f32 %v983, 0.0
    %v1048 = vmax.f32 %v984, 0.0
    %v1049 = vmax.f32 %v985, 0.0
    %v1050 = vmax.f32 %v986, 0.0
    %v1051 = vmax.f32 %v987, 0.0
    %v1052 = vmax.f32 %v988, 0.0
    %v1053 = vmax.f32 %v989, 0.0
    %v1054 = vmax.f32 %v990, 0.0
    %v1055 = vmax.f32 %v991, 0.0
    %v1056 = vmax.f32 %v992, 0.0
    %v1057 = vmax.f32 %v993, 0.0
    %v1058 = vmax.f32 %v994, 0.0
    %v1059 = vmax.f32 %v995, 0.0
    %v1060 = vmax.f32 %v996, 0.0
    %v1061 = vmax.f32 %v997, 0.0
    %v1062 = vmax.f32 %v998, 0.0
    %v1063 = vmax.f32 %v999, 0.0
    %v1064 = vmax.f32 %v1000, 0.0
    %v1065 = vmax.f32 %v1001, 0.0
    %v1066 = vmax.f32 %v1002, 0.0
    %v1067 = vmax.f32 %v1003, 0.0
    %v1068 = vmax.f32 %v1004, 0.0
    %v1069 = vmax.f32 %v1005, 0.0
    %v1070 = vmax.f32 %v1006, 0.0
    %v1071 = vmax.f32 %v1007, 0.0
    %v1072 = vmax.f32 %v1008, 0.0
    %v1073 = vmax.f32 %v1009, 0.0
    %v1074 = vmax.f32 %v1010, 0.0
    %v1075 = vmax.f32 %v1011, 0.0
    %v1076 = vmax.f32 %v1012, 0.0
    %v1077 = vmax.f32 %v1013, 0.0
    %v1078 = vmax.f32 %v1014, 0.0
    %v1079 = vmax.f32 %v1015, 0.0
    %v1080 = vmax.f32 %v1016, 0.0
    %v1081 = vmax.f32 %v1017, 0.0
    %v1082 = vmax.f32 %v1018, 0.0
    %v1083 = vmax.f32 %v1019, 0.0
    %v1084 = vmax.f32 %v1020, 0.0
    %v1085 = vmax.f32 %v1021, 0.0
    %v1086 = vmax.f32 %v1022, 0.0
    %v1087 = vmax.f32 %v1023, 0.0
    %v1088 = vmax.f32 %v1024, 0.0
    %v1089 = vmax.f32 %v1025, 0.0
    %v1090 = vmax.f32 %v1026, 0.0
    %v1091 = vmax.f32 %v1027, 0.0
    %v1092 = vmax.f32 %v1028, 0.0
    %v1093 = vmax.f32 %v1029, 0.0
    %v1094 = vmax.f32 %v1030, 0.0
    %v1095 = vmax.f32 %v1031, 0.0
    %v1096 = vpack.c.bf16 %v1034, %v1032
    %v1097 = vpack.c.bf16 %v1035, %v1033
    %v1098 = vpack.c.bf16 %v1038, %v1036
    %v1099 = vpack.c.bf16 %v1039, %v1037
    %v1100 = vpack.c.bf16 %v1042, %v1040
    %v1101 = vpack.c.bf16 %v1043, %v1041
    %v1102 = vpack.c.bf16 %v1046, %v1044
    %v1103 = vpack.c.bf16 %v1047, %v1045
    %v1104 = vpack.c.bf16 %v1050, %v1048
    %v1105 = vpack.c.bf16 %v1051, %v1049
    %v1106 = vpack.c.bf16 %v1054, %v1052
    %v1107 = vpack.c.bf16 %v1055, %v1053
    %v1108 = vpack.c.bf16 %v1058, %v1056
    %v1109 = vpack.c.bf16 %v1059, %v1057
    %v1110 = vpack.c.bf16 %v1062, %v1060
    %v1111 = vpack.c.bf16 %v1063, %v1061
    %v1112 = vpack.c.bf16 %v1066, %v1064
    %v1113 = vpack.c.bf16 %v1067, %v1065
    %v1114 = vpack.c.bf16 %v1070, %v1068
    %v1115 = vpack.c.bf16 %v1071, %v1069
    %v1116 = vpack.c.bf16 %v1074, %v1072
    %v1117 = vpack.c.bf16 %v1075, %v1073
    %v1118 = vpack.c.bf16 %v1078, %v1076
    %v1119 = vpack.c.bf16 %v1079, %v1077
    %v1120 = vpack.c.bf16 %v1082, %v1080
    %v1121 = vpack.c.bf16 %v1083, %v1081
    %v1122 = vpack.c.bf16 %v1086, %v1084
    %v1123 = vpack.c.bf16 %v1087, %v1085
    %v1124 = vpack.c.bf16 %v1090, %v1088
    %v1125 = vpack.c.bf16 %v1091, %v1089
    %v1126 = vpack.c.bf16 %v1094, %v1092
    %v1127 = vpack.c.bf16 %v1095, %v1093
    %v1128 = vld [vmem:[#allocation7] sm:$0xff]
    %v1129 = vld [vmem:[#allocation7 + $0x8] sm:$0xff]
    %v1130 = vld [vmem:[#allocation7 + $0x10] sm:$0xff]
    %v1131 = vld [vmem:[#allocation7 + $0x18] sm:$0xff]
    %v1132 = vld [vmem:[#allocation7 + $0x20] sm:$0xff]
    %v1133 = vld [vmem:[#allocation7 + $0x28] sm:$0xff]
    %v1134 = vld [vmem:[#allocation7 + $0x30] sm:$0xff]
    %v1135 = vld [vmem:[#allocation7 + $0x38] sm:$0xff]
    %v1136 = vld [vmem:[#allocation7 + $0x40] sm:$0xff]
    %v1137 = vld [vmem:[#allocation7 + $0x48] sm:$0xff]
    %v1138 = vld [vmem:[#allocation7 + $0x50] sm:$0xff]
    %v1139 = vld [vmem:[#allocation7 + $0x58] sm:$0xff]
    %v1140 = vld [vmem:[#allocation7 + $0x60] sm:$0xff]
    %v1141 = vld [vmem:[#allocation7 + $0x68] sm:$0xff]
    %v1142 = vld [vmem:[#allocation7 + $0x70] sm:$0xff]
    %v1143 = vld [vmem:[#allocation7 + $0x78] sm:$0xff]
    %v1144 = vld [vmem:[#allocation7 + $0x80] sm:$0xff]
    %v1145 = vld [vmem:[#allocation7 + $0x88] sm:$0xff]
    %v1146 = vld [vmem:[#allocation7 + $0x90] sm:$0xff]
    %v1147 = vld [vmem:[#allocation7 + $0x98] sm:$0xff]
    %v1148 = vld [vmem:[#allocation7 + $0xa0] sm:$0xff]
    %v1149 = vld [vmem:[#allocation7 + $0xa8] sm:$0xff]
    %v1150 = vld [vmem:[#allocation7 + $0xb0] sm:$0xff]
    %v1151 = vld [vmem:[#allocation7 + $0xb8] sm:$0xff]
    %v1152 = vld [vmem:[#allocation7 + $0xc0] sm:$0xff]
    %v1153 = vld [vmem:[#allocation7 + $0xc8] sm:$0xff]
    %v1154 = vld [vmem:[#allocation7 + $0xd0] sm:$0xff]
    %v1155 = vld [vmem:[#allocation7 + $0xd8] sm:$0xff]
    %v1156 = vld [vmem:[#allocation7 + $0xe0] sm:$0xff]
    %v1157 = vld [vmem:[#allocation7 + $0xe8] sm:$0xff]
    %v1158 = vld [vmem:[#allocation7 + $0xf0] sm:$0xff]
    %v1159 = vld [vmem:[#allocation7 + $0xf8] sm:$0xff]
    %v1160 = vld [vmem:[%s4] sm:$0x3]
    %v1162 = vlaneseq
    %v1163 = vshrl.u32 %v1162, 7
    %v1164 = vsub.s32 0, %v1163
    %v1165 = vrot.slane %v1160, %v1164
    %v1166 = vlaneseq
    %v1167 = vshrl.u32 %v1166, 7
    %v1168 = vsub.s32 1, %v1167
    %v1169 = vrot.slane %v1160, %v1168
    %v1204 = vunpack.c.l.b16 %v1128
    %v1205 = vunpack.c.h.b16 %v1128
    %v1206 = vunpack.c.l.b16 %v1129
    %v1207 = vunpack.c.h.b16 %v1129
    %v1208 = vunpack.c.l.b16 %v1130
    %v1209 = vunpack.c.h.b16 %v1130
    %v1210 = vunpack.c.l.b16 %v1131
    %v1211 = vunpack.c.h.b16 %v1131
    %v1212 = vunpack.c.l.b16 %v1132
    %v1213 = vunpack.c.h.b16 %v1132
    %v1214 = vunpack.c.l.b16 %v1133
    %v1215 = vunpack.c.h.b16 %v1133
    %v1216 = vunpack.c.l.b16 %v1134
    %v1217 = vunpack.c.h.b16 %v1134
    %v1218 = vunpack.c.l.b16 %v1135
    %v1219 = vunpack.c.h.b16 %v1135
    %v1220 = vunpack.c.l.b16 %v1136
    %v1221 = vunpack.c.h.b16 %v1136
    %v1222 = vunpack.c.l.b16 %v1137
    %v1223 = vunpack.c.h.b16 %v1137
    %v1224 = vunpack.c.l.b16 %v1138
    %v1225 = vunpack.c.h.b16 %v1138
    %v1226 = vunpack.c.l.b16 %v1139
    %v1227 = vunpack.c.h.b16 %v1139
    %v1228 = vunpack.c.l.b16 %v1140
    %v1229 = vunpack.c.h.b16 %v1140
    %v1230 = vunpack.c.l.b16 %v1141
    %v1231 = vunpack.c.h.b16 %v1141
    %v1232 = vunpack.c.l.b16 %v1142
    %v1233 = vunpack.c.h.b16 %v1142
    %v1234 = vunpack.c.l.b16 %v1143
    %v1235 = vunpack.c.h.b16 %v1143
    %v1236 = vunpack.c.l.b16 %v1144
    %v1237 = vunpack.c.h.b16 %v1144
    %v1238 = vunpack.c.l.b16 %v1145
    %v1239 = vunpack.c.h.b16 %v1145
    %v1240 = vunpack.c.l.b16 %v1146
    %v1241 = vunpack.c.h.b16 %v1146
    %v1242 = vunpack.c.l.b16 %v1147
    %v1243 = vunpack.c.h.b16 %v1147
    %v1244 = vunpack.c.l.b16 %v1148
    %v1245 = vunpack.c.h.b16 %v1148
    %v1246 = vunpack.c.l.b16 %v1149
    %v1247 = vunpack.c.h.b16 %v1149
    %v1248 = vunpack.c.l.b16 %v1150
    %v1249 = vunpack.c.h.b16 %v1150
    %v1250 = vunpack.c.l.b16 %v1151
    %v1251 = vunpack.c.h.b16 %v1151
    %v1252 = vunpack.c.l.b16 %v1152
    %v1253 = vunpack.c.h.b16 %v1152
    %v1254 = vunpack.c.l.b16 %v1153
    %v1255 = vunpack.c.h.b16 %v1153
    %v1256 = vunpack.c.l.b16 %v1154
    %v1257 = vunpack.c.h.b16 %v1154
    %v1258 = vunpack.c.l.b16 %v1155
    %v1259 = vunpack.c.h.b16 %v1155
    %v1260 = vunpack.c.l.b16 %v1156
    %v1261 = vunpack.c.h.b16 %v1156
    %v1262 = vunpack.c.l.b16 %v1157
    %v1263 = vunpack.c.h.b16 %v1157
    %v1264 = vunpack.c.l.b16 %v1158
    %v1265 = vunpack.c.h.b16 %v1158
    %v1266 = vunpack.c.l.b16 %v1159
    %v1267 = vunpack.c.h.b16 %v1159
    %v1268 = vpack.c.b16 %v1206, %v1204
    %v1269 = vpack.c.b16 %v1207, %v1205
    %v1270 = vpack.c.b16 %v1210, %v1208
    %v1271 = vpack.c.b16 %v1211, %v1209
    %v1272 = vpack.c.b16 %v1214, %v1212
    %v1273 = vpack.c.b16 %v1215, %v1213
    %v1274 = vpack.c.b16 %v1218, %v1216
    %v1275 = vpack.c.b16 %v1219, %v1217
    %v1276 = vpack.c.b16 %v1222, %v1220
    %v1277 = vpack.c.b16 %v1223, %v1221
    %v1278 = vpack.c.b16 %v1226, %v1224
    %v1279 = vpack.c.b16 %v1227, %v1225
    %v1280 = vpack.c.b16 %v1230, %v1228
    %v1281 = vpack.c.b16 %v1231, %v1229
    %v1282 = vpack.c.b16 %v1234, %v1232
    %v1283 = vpack.c.b16 %v1235, %v1233
    %v1284 = vpack.c.b16 %v1238, %v1236
    %v1285 = vpack.c.b16 %v1239, %v1237
    %v1286 = vpack.c.b16 %v1242, %v1240
    %v1287 = vpack.c.b16 %v1243, %v1241
    %v1288 = vpack.c.b16 %v1246, %v1244
    %v1289 = vpack.c.b16 %v1247, %v1245
    %v1290 = vpack.c.b16 %v1250, %v1248
    %v1291 = vpack.c.b16 %v1251, %v1249
    %v1292 = vpack.c.b16 %v1254, %v1252
    %v1293 = vpack.c.b16 %v1255, %v1253
    %v1294 = vpack.c.b16 %v1258, %v1256
    %v1295 = vpack.c.b16 %v1259, %v1257
    %v1296 = vpack.c.b16 %v1262, %v1260
    %v1297 = vpack.c.b16 %v1263, %v1261
    %v1298 = vpack.c.b16 %v1266, %v1264
    %v1299 = vpack.c.b16 %v1267, %v1265
    %1332 = vmatprep.subr.bf16.mxu0 %v1283
    %1333 = vmatpush1.bf16.msra.mxu0 %v1282
    %1334 = vmatprep.subr.bf16.mxu0 %v1281
    %1335 = vmatpush1.bf16.msra.mxu0 %v1280
    %1336 = vmatprep.subr.bf16.mxu0 %v1279
    %1337 = vmatpush1.bf16.msra.mxu0 %v1278
    %1338 = vmatprep.subr.bf16.mxu0 %v1277
    %1339 = vmatpush1.bf16.msra.mxu0 %v1276
    %1340 = vmatprep.subr.bf16.mxu0 %v1275
    %1341 = vmatpush1.bf16.msra.mxu0 %v1274
    %1342 = vmatprep.subr.bf16.mxu0 %v1273
    %1343 = vmatpush1.bf16.msra.mxu0 %v1272
    %1344 = vmatprep.subr.bf16.mxu0 %v1271
    %1345 = vmatpush1.bf16.msra.mxu0 %v1270
    %1346 = vmatprep.subr.bf16.mxu0 %v1269
    %1347 = vmatpush1.bf16.msra.mxu0 %v1268
    %1348 = vmatprep.subr.bf16.mxu0 %v1299
    %1349 = vmatpush2.bf16.msra.mxu0 %v1298
    %1350 = vmatprep.subr.bf16.mxu0 %v1297
    %1351 = vmatpush2.bf16.msra.mxu0 %v1296
    %1352 = vmatprep.subr.bf16.mxu0 %v1295
    %1353 = vmatpush2.bf16.msra.mxu0 %v1294
    %1354 = vmatprep.subr.bf16.mxu0 %v1293
    %1355 = vmatpush2.bf16.msra.mxu0 %v1292
    %1356 = vmatprep.subr.bf16.mxu0 %v1291
    %1357 = vmatpush2.bf16.msra.mxu0 %v1290
    %1358 = vmatprep.subr.bf16.mxu0 %v1289
    %1359 = vmatpush2.bf16.msra.mxu0 %v1288
    %1360 = vmatprep.subr.bf16.mxu0 %v1287
    %1361 = vmatpush2.bf16.msra.mxu0 %v1286
    %1362 = vmatprep.subr.bf16.mxu0 %v1285
    %1363 = vmatpush2.bf16.msra.mxu0 %v1284
    %1364 = vmatprep.mubr.bf16.mxu0 %v1097
    %1365 = vmatmul.mubr.bf16.gmra.mxu0 %v1096
    %v1366 = vpop.f32.mrf.mxu0
    %v1367 = vadd.f32 %v1165, %v1366
    %v1368 = vpop.f32.mrf.mxu0
    %v1369 = vadd.f32 %v1169, %v1368
    %v1370 = vpop.f32.mrf.mxu0
    %v1371 = vadd.f32 %v1165, %v1370
    %v1372 = vpop.f32.mrf.mxu0
    %v1373 = vadd.f32 %v1169, %v1372
    %1374 = vmatprep.mubr.bf16.mxu0 %v1099
    %1375 = vmatmul.mubr.bf16.gmra.mxu0 %v1098
    %v1376 = vpop.f32.mrf.mxu0
    %v1377 = vadd.f32 %v1165, %v1376
    %v1378 = vpop.f32.mrf.mxu0
    %v1379 = vadd.f32 %v1169, %v1378
    %v1380 = vpop.f32.mrf.mxu0
    %v1381 = vadd.f32 %v1165, %v1380
    %v1382 = vpop.f32.mrf.mxu0
    %v1383 = vadd.f32 %v1169, %v1382
    %1384 = vmatprep.mubr.bf16.mxu0 %v1101
    %1385 = vmatmul.mubr.bf16.gmra.mxu0 %v1100
    %v1386 = vpop.f32.mrf.mxu0
    %v1387 = vadd.f32 %v1165, %v1386
    %v1388 = vpop.f32.mrf.mxu0
    %v1389 = vadd.f32 %v1169, %v1388
    %v1390 = vpop.f32.mrf.mxu0
    %v1391 = vadd.f32 %v1165, %v1390
    %v1392 = vpop.f32.mrf.mxu0
    %v1393 = vadd.f32 %v1169, %v1392
    %1394 = vmatprep.mubr.bf16.mxu0 %v1103
    %1395 = vmatmul.mubr.bf16.gmra.mxu0 %v1102
    %v1396 = vpop.f32.mrf.mxu0
    %v1397 = vadd.f32 %v1165, %v1396
    %v1398 = vpop.f32.mrf.mxu0
    %v1399 = vadd.f32 %v1169, %v1398
    %v1400 = vpop.f32.mrf.mxu0
    %v1401 = vadd.f32 %v1165, %v1400
    %v1402 = vpop.f32.mrf.mxu0
    %v1403 = vadd.f32 %v1169, %v1402
    %1404 = vmatprep.mubr.bf16.mxu0 %v1105
    %1405 = vmatmul.mubr.bf16.gmra.mxu0 %v1104
    %v1406 = vpop.f32.mrf.mxu0
    %v1407 = vadd.f32 %v1165, %v1406
    %v1408 = vpop.f32.mrf.mxu0
    %v1409 = vadd.f32 %v1169, %v1408
    %v1410 = vpop.f32.mrf.mxu0
    %v1411 = vadd.f32 %v1165, %v1410
    %v1412 = vpop.f32.mrf.mxu0
    %v1413 = vadd.f32 %v1169, %v1412
    %1414 = vmatprep.mubr.bf16.mxu0 %v1107
    %1415 = vmatmul.mubr.bf16.gmra.mxu0 %v1106
    %v1416 = vpop.f32.mrf.mxu0
    %v1417 = vadd.f32 %v1165, %v1416
    %v1418 = vpop.f32.mrf.mxu0
    %v1419 = vadd.f32 %v1169, %v1418
    %v1420 = vpop.f32.mrf.mxu0
    %v1421 = vadd.f32 %v1165, %v1420
    %v1422 = vpop.f32.mrf.mxu0
    %v1423 = vadd.f32 %v1169, %v1422
    %1424 = vmatprep.mubr.bf16.mxu0 %v1109
    %1425 = vmatmul.mubr.bf16.gmra.mxu0 %v1108
    %v1426 = vpop.f32.mrf.mxu0
    %v1427 = vadd.f32 %v1165, %v1426
    %v1428 = vpop.f32.mrf.mxu0
    %v1429 = vadd.f32 %v1169, %v1428
    %v1430 = vpop.f32.mrf.mxu0
    %v1431 = vadd.f32 %v1165, %v1430
    %v1432 = vpop.f32.mrf.mxu0
    %v1433 = vadd.f32 %v1169, %v1432
    %1434 = vmatprep.mubr.bf16.mxu0 %v1111
    %1435 = vmatmul.mubr.bf16.gmra.mxu0 %v1110
    %v1436 = vpop.f32.mrf.mxu0
    %v1437 = vadd.f32 %v1165, %v1436
    %v1438 = vpop.f32.mrf.mxu0
    %v1439 = vadd.f32 %v1169, %v1438
    %v1440 = vpop.f32.mrf.mxu0
    %v1441 = vadd.f32 %v1165, %v1440
    %v1442 = vpop.f32.mrf.mxu0
    %v1443 = vadd.f32 %v1169, %v1442
    %1444 = vmatprep.mubr.bf16.mxu0 %v1113
    %1445 = vmatmul.mubr.bf16.gmra.mxu0 %v1112
    %v1446 = vpop.f32.mrf.mxu0
    %v1447 = vadd.f32 %v1165, %v1446
    %v1448 = vpop.f32.mrf.mxu0
    %v1449 = vadd.f32 %v1169, %v1448
    %v1450 = vpop.f32.mrf.mxu0
    %v1451 = vadd.f32 %v1165, %v1450
    %v1452 = vpop.f32.mrf.mxu0
    %v1453 = vadd.f32 %v1169, %v1452
    %1454 = vmatprep.mubr.bf16.mxu0 %v1115
    %1455 = vmatmul.mubr.bf16.gmra.mxu0 %v1114
    %v1456 = vpop.f32.mrf.mxu0
    %v1457 = vadd.f32 %v1165, %v1456
    %v1458 = vpop.f32.mrf.mxu0
    %v1459 = vadd.f32 %v1169, %v1458
    %v1460 = vpop.f32.mrf.mxu0
    %v1461 = vadd.f32 %v1165, %v1460
    %v1462 = vpop.f32.mrf.mxu0
    %v1463 = vadd.f32 %v1169, %v1462
    %1464 = vmatprep.mubr.bf16.mxu0 %v1117
    %1465 = vmatmul.mubr.bf16.gmra.mxu0 %v1116
    %v1466 = vpop.f32.mrf.mxu0
    %v1467 = vadd.f32 %v1165, %v1466
    %v1468 = vpop.f32.mrf.mxu0
    %v1469 = vadd.f32 %v1169, %v1468
    %v1470 = vpop.f32.mrf.mxu0
    %v1471 = vadd.f32 %v1165, %v1470
    %v1472 = vpop.f32.mrf.mxu0
    %v1473 = vadd.f32 %v1169, %v1472
    %1474 = vmatprep.mubr.bf16.mxu0 %v1119
    %1475 = vmatmul.mubr.bf16.gmra.mxu0 %v1118
    %v1476 = vpop.f32.mrf.mxu0
    %v1477 = vadd.f32 %v1165, %v1476
    %v1478 = vpop.f32.mrf.mxu0
    %v1479 = vadd.f32 %v1169, %v1478
    %v1480 = vpop.f32.mrf.mxu0
    %v1481 = vadd.f32 %v1165, %v1480
    %v1482 = vpop.f32.mrf.mxu0
    %v1483 = vadd.f32 %v1169, %v1482
    %1484 = vmatprep.mubr.bf16.mxu0 %v1121
    %1485 = vmatmul.mubr.bf16.gmra.mxu0 %v1120
    %v1486 = vpop.f32.mrf.mxu0
    %v1487 = vadd.f32 %v1165, %v1486
    %v1488 = vpop.f32.mrf.mxu0
    %v1489 = vadd.f32 %v1169, %v1488
    %v1490 = vpop.f32.mrf.mxu0
    %v1491 = vadd.f32 %v1165, %v1490
    %v1492 = vpop.f32.mrf.mxu0
    %v1493 = vadd.f32 %v1169, %v1492
    %1494 = vmatprep.mubr.bf16.mxu0 %v1123
    %1495 = vmatmul.mubr.bf16.gmra.mxu0 %v1122
    %v1496 = vpop.f32.mrf.mxu0
    %v1497 = vadd.f32 %v1165, %v1496
    %v1498 = vpop.f32.mrf.mxu0
    %v1499 = vadd.f32 %v1169, %v1498
    %v1500 = vpop.f32.mrf.mxu0
    %v1501 = vadd.f32 %v1165, %v1500
    %v1502 = vpop.f32.mrf.mxu0
    %v1503 = vadd.f32 %v1169, %v1502
    %1504 = vmatprep.mubr.bf16.mxu0 %v1125
    %1505 = vmatmul.mubr.bf16.gmra.mxu0 %v1124
    %v1506 = vpop.f32.mrf.mxu0
    %v1507 = vadd.f32 %v1165, %v1506
    %v1508 = vpop.f32.mrf.mxu0
    %v1509 = vadd.f32 %v1169, %v1508
    %v1510 = vpop.f32.mrf.mxu0
    %v1511 = vadd.f32 %v1165, %v1510
    %v1512 = vpop.f32.mrf.mxu0
    %v1513 = vadd.f32 %v1169, %v1512
    %1514 = vmatprep.mubr.bf16.mxu0 %v1127
    %1515 = vmatmul.mubr.bf16.gmra.mxu0 %v1126
    %v1516 = vpop.f32.mrf.mxu0
    %v1517 = vadd.f32 %v1165, %v1516
    %v1518 = vpop.f32.mrf.mxu0
    %v1519 = vadd.f32 %v1169, %v1518
    %v1520 = vpop.f32.mrf.mxu0
    %v1521 = vadd.f32 %v1165, %v1520
    %v1522 = vpop.f32.mrf.mxu0
    %v1523 = vadd.f32 %v1169, %v1522
    %1524 = vdwg.mxu0
    %v1525 = vpack.c.bf16 %v1371, %v1367
    %v1526 = vpack.c.bf16 %v1373, %v1369
    %v1527 = vpack.c.bf16 %v1381, %v1377
    %v1528 = vpack.c.bf16 %v1383, %v1379
    %v1529 = vpack.c.bf16 %v1391, %v1387
    %v1530 = vpack.c.bf16 %v1393, %v1389
    %v1531 = vpack.c.bf16 %v1401, %v1397
    %v1532 = vpack.c.bf16 %v1403, %v1399
    %v1533 = vpack.c.bf16 %v1411, %v1407
    %v1534 = vpack.c.bf16 %v1413, %v1409
    %v1535 = vpack.c.bf16 %v1421, %v1417
    %v1536 = vpack.c.bf16 %v1423, %v1419
    %v1537 = vpack.c.bf16 %v1431, %v1427
    %v1538 = vpack.c.bf16 %v1433, %v1429
    %v1539 = vpack.c.bf16 %v1441, %v1437
    %v1540 = vpack.c.bf16 %v1443, %v1439
    %v1541 = vpack.c.bf16 %v1451, %v1447
    %v1542 = vpack.c.bf16 %v1453, %v1449
    %v1543 = vpack.c.bf16 %v1461, %v1457
    %v1544 = vpack.c.bf16 %v1463, %v1459
    %v1545 = vpack.c.bf16 %v1471, %v1467
    %v1546 = vpack.c.bf16 %v1473, %v1469
    %v1547 = vpack.c.bf16 %v1481, %v1477
    %v1548 = vpack.c.bf16 %v1483, %v1479
    %v1549 = vpack.c.bf16 %v1491, %v1487
    %v1550 = vpack.c.bf16 %v1493, %v1489
    %v1551 = vpack.c.bf16 %v1501, %v1497
    %v1552 = vpack.c.bf16 %v1503, %v1499
    %v1553 = vpack.c.bf16 %v1511, %v1507
    %v1554 = vpack.c.bf16 %v1513, %v1509
    %v1555 = vpack.c.bf16 %v1521, %v1517
    %v1556 = vpack.c.bf16 %v1523, %v1519
    %v1557 = vld [vmem:[#allocation8] sm:$0xff]
    %v1558 = vld [vmem:[#allocation8 + $0x8] sm:$0xff]
    %v1559 = vld [vmem:[#allocation8 + $0x10] sm:$0xff]
    %v1560 = vld [vmem:[#allocation8 + $0x18] sm:$0xff]
    %v1561 = vld [vmem:[#allocation8 + $0x20] sm:$0xff]
    %v1562 = vld [vmem:[#allocation8 + $0x28] sm:$0xff]
    %v1563 = vld [vmem:[#allocation8 + $0x30] sm:$0xff]
    %v1564 = vld [vmem:[#allocation8 + $0x38] sm:$0xff]
    %v1565 = vld [vmem:[#allocation8 + $0x40] sm:$0xff]
    %v1566 = vld [vmem:[#allocation8 + $0x48] sm:$0xff]
    %v1567 = vld [vmem:[#allocation8 + $0x50] sm:$0xff]
    %v1568 = vld [vmem:[#allocation8 + $0x58] sm:$0xff]
    %v1569 = vld [vmem:[#allocation8 + $0x60] sm:$0xff]
    %v1570 = vld [vmem:[#allocation8 + $0x68] sm:$0xff]
    %v1571 = vld [vmem:[#allocation8 + $0x70] sm:$0xff]
    %v1572 = vld [vmem:[#allocation8 + $0x78] sm:$0xff]
    %v1573 = vld [vmem:[#allocation8 + $0x80] sm:$0xff]
    %v1574 = vld [vmem:[#allocation8 + $0x88] sm:$0xff]
    %v1575 = vld [vmem:[#allocation8 + $0x90] sm:$0xff]
    %v1576 = vld [vmem:[#allocation8 + $0x98] sm:$0xff]
    %v1577 = vld [vmem:[#allocation8 + $0xa0] sm:$0xff]
    %v1578 = vld [vmem:[#allocation8 + $0xa8] sm:$0xff]
    %v1579 = vld [vmem:[#allocation8 + $0xb0] sm:$0xff]
    %v1580 = vld [vmem:[#allocation8 + $0xb8] sm:$0xff]
    %v1581 = vld [vmem:[#allocation8 + $0xc0] sm:$0xff]
    %v1582 = vld [vmem:[#allocation8 + $0xc8] sm:$0xff]
    %v1583 = vld [vmem:[#allocation8 + $0xd0] sm:$0xff]
    %v1584 = vld [vmem:[#allocation8 + $0xd8] sm:$0xff]
    %v1585 = vld [vmem:[#allocation8 + $0xe0] sm:$0xff]
    %v1586 = vld [vmem:[#allocation8 + $0xe8] sm:$0xff]
    %v1587 = vld [vmem:[#allocation8 + $0xf0] sm:$0xff]
    %v1588 = vld [vmem:[#allocation8 + $0xf8] sm:$0xff]
    %v1621 = vunpack.c.l.b16 %v1557
    %v1622 = vunpack.c.h.b16 %v1557
    %v1623 = vunpack.c.l.b16 %v1558
    %v1624 = vunpack.c.h.b16 %v1558
    %v1625 = vunpack.c.l.b16 %v1559
    %v1626 = vunpack.c.h.b16 %v1559
    %v1627 = vunpack.c.l.b16 %v1560
    %v1628 = vunpack.c.h.b16 %v1560
    %v1629 = vunpack.c.l.b16 %v1561
    %v1630 = vunpack.c.h.b16 %v1561
    %v1631 = vunpack.c.l.b16 %v1562
    %v1632 = vunpack.c.h.b16 %v1562
    %v1633 = vunpack.c.l.b16 %v1563
    %v1634 = vunpack.c.h.b16 %v1563
    %v1635 = vunpack.c.l.b16 %v1564
    %v1636 = vunpack.c.h.b16 %v1564
    %v1637 = vunpack.c.l.b16 %v1565
    %v1638 = vunpack.c.h.b16 %v1565
    %v1639 = vunpack.c.l.b16 %v1566
    %v1640 = vunpack.c.h.b16 %v1566
    %v1641 = vunpack.c.l.b16 %v1567
    %v1642 = vunpack.c.h.b16 %v1567
    %v1643 = vunpack.c.l.b16 %v1568
    %v1644 = vunpack.c.h.b16 %v1568
    %v1645 = vunpack.c.l.b16 %v1569
    %v1646 = vunpack.c.h.b16 %v1569
    %v1647 = vunpack.c.l.b16 %v1570
    %v1648 = vunpack.c.h.b16 %v1570
    %v1649 = vunpack.c.l.b16 %v1571
    %v1650 = vunpack.c.h.b16 %v1571
    %v1651 = vunpack.c.l.b16 %v1572
    %v1652 = vunpack.c.h.b16 %v1572
    %v1653 = vunpack.c.l.b16 %v1573
    %v1654 = vunpack.c.h.b16 %v1573
    %v1655 = vunpack.c.l.b16 %v1574
    %v1656 = vunpack.c.h.b16 %v1574
    %v1657 = vunpack.c.l.b16 %v1575
    %v1658 = vunpack.c.h.b16 %v1575
    %v1659 = vunpack.c.l.b16 %v1576
    %v1660 = vunpack.c.h.b16 %v1576
    %v1661 = vunpack.c.l.b16 %v1577
    %v1662 = vunpack.c.h.b16 %v1577
    %v1663 = vunpack.c.l.b16 %v1578
    %v1664 = vunpack.c.h.b16 %v1578
    %v1665 = vunpack.c.l.b16 %v1579
    %v1666 = vunpack.c.h.b16 %v1579
    %v1667 = vunpack.c.l.b16 %v1580
    %v1668 = vunpack.c.h.b16 %v1580
    %v1669 = vunpack.c.l.b16 %v1581
    %v1670 = vunpack.c.h.b16 %v1581
    %v1671 = vunpack.c.l.b16 %v1582
    %v1672 = vunpack.c.h.b16 %v1582
    %v1673 = vunpack.c.l.b16 %v1583
    %v1674 = vunpack.c.h.b16 %v1583
    %v1675 = vunpack.c.l.b16 %v1584
    %v1676 = vunpack.c.h.b16 %v1584
    %v1677 = vunpack.c.l.b16 %v1585
    %v1678 = vunpack.c.h.b16 %v1585
    %v1679 = vunpack.c.l.b16 %v1586
    %v1680 = vunpack.c.h.b16 %v1586
    %v1681 = vunpack.c.l.b16 %v1587
    %v1682 = vunpack.c.h.b16 %v1587
    %v1683 = vunpack.c.l.b16 %v1588
    %v1684 = vunpack.c.h.b16 %v1588
    %v1685 = vpack.c.b16 %v1623, %v1621
    %v1686 = vpack.c.b16 %v1624, %v1622
    %v1687 = vpack.c.b16 %v1627, %v1625
    %v1688 = vpack.c.b16 %v1628, %v1626
    %v1689 = vpack.c.b16 %v1631, %v1629
    %v1690 = vpack.c.b16 %v1632, %v1630
    %v1691 = vpack.c.b16 %v1635, %v1633
    %v1692 = vpack.c.b16 %v1636, %v1634
    %v1693 = vpack.c.b16 %v1639, %v1637
    %v1694 = vpack.c.b16 %v1640, %v1638
    %v1695 = vpack.c.b16 %v1643, %v1641
    %v1696 = vpack.c.b16 %v1644, %v1642
    %v1697 = vpack.c.b16 %v1647, %v1645
    %v1698 = vpack.c.b16 %v1648, %v1646
    %v1699 = vpack.c.b16 %v1651, %v1649
    %v1700 = vpack.c.b16 %v1652, %v1650
    %v1701 = vpack.c.b16 %v1655, %v1653
    %v1702 = vpack.c.b16 %v1656, %v1654
    %v1703 = vpack.c.b16 %v1659, %v1657
    %v1704 = vpack.c.b16 %v1660, %v1658
    %v1705 = vpack.c.b16 %v1663, %v1661
    %v1706 = vpack.c.b16 %v1664, %v1662
    %v1707 = vpack.c.b16 %v1667, %v1665
    %v1708 = vpack.c.b16 %v1668, %v1666
    %v1709 = vpack.c.b16 %v1671, %v1669
    %v1710 = vpack.c.b16 %v1672, %v1670
    %v1711 = vpack.c.b16 %v1675, %v1673
    %v1712 = vpack.c.b16 %v1676, %v1674
    %v1713 = vpack.c.b16 %v1679, %v1677
    %v1714 = vpack.c.b16 %v1680, %v1678
    %v1715 = vpack.c.b16 %v1683, %v1681
    %v1716 = vpack.c.b16 %v1684, %v1682
    %1749 = vmatprep.subr.bf16.mxu0 %v1700
    %1750 = vmatpush1.bf16.msra.mxu0 %v1699
    %1751 = vmatprep.subr.bf16.mxu0 %v1698
    %1752 = vmatpush1.bf16.msra.mxu0 %v1697
    %1753 = vmatprep.subr.bf16.mxu0 %v1696
    %1754 = vmatpush1.bf16.msra.mxu0 %v1695
    %1755 = vmatprep.subr.bf16.mxu0 %v1694
    %1756 = vmatpush1.bf16.msra.mxu0 %v1693
    %1757 = vmatprep.subr.bf16.mxu0 %v1692
    %1758 = vmatpush1.bf16.msra.mxu0 %v1691
    %1759 = vmatprep.subr.bf16.mxu0 %v1690
    %1760 = vmatpush1.bf16.msra.mxu0 %v1689
    %1761 = vmatprep.subr.bf16.mxu0 %v1688
    %1762 = vmatpush1.bf16.msra.mxu0 %v1687
    %1763 = vmatprep.subr.bf16.mxu0 %v1686
    %1764 = vmatpush1.bf16.msra.mxu0 %v1685
    %1765 = vmatprep.subr.bf16.mxu0 %v1716
    %1766 = vmatpush2.bf16.msra.mxu0 %v1715
    %1767 = vmatprep.subr.bf16.mxu0 %v1714
    %1768 = vmatpush2.bf16.msra.mxu0 %v1713
    %1769 = vmatprep.subr.bf16.mxu0 %v1712
    %1770 = vmatpush2.bf16.msra.mxu0 %v1711
    %1771 = vmatprep.subr.bf16.mxu0 %v1710
    %1772 = vmatpush2.bf16.msra.mxu0 %v1709
    %1773 = vmatprep.subr.bf16.mxu0 %v1708
    %1774 = vmatpush2.bf16.msra.mxu0 %v1707
    %1775 = vmatprep.subr.bf16.mxu0 %v1706
    %1776 = vmatpush2.bf16.msra.mxu0 %v1705
    %1777 = vmatprep.subr.bf16.mxu0 %v1704
    %1778 = vmatpush2.bf16.msra.mxu0 %v1703
    %1779 = vmatprep.subr.bf16.mxu0 %v1702
    %1780 = vmatpush2.bf16.msra.mxu0 %v1701
    %1781 = vmatprep.mubr.bf16.mxu0 %v1526
    %1782 = vmatmul.mubr.bf16.gmra.mxu0 %v1525
    %v1783 = vpop.f32.mrf.mxu0
    %v1784 = vadd.f32 0.0, %v1783
    %v1785 = vpop.f32.mrf.mxu0
    %v1786 = vadd.f32 0.0, %v1785
    %v1787 = vpop.f32.mrf.mxu0
    %v1788 = vadd.f32 0.0, %v1787
    %v1789 = vpop.f32.mrf.mxu0
    %v1790 = vadd.f32 0.0, %v1789
    %1791 = vmatprep.mubr.bf16.mxu0 %v1528
    %1792 = vmatmul.mubr.bf16.gmra.mxu0 %v1527
    %v1793 = vpop.f32.mrf.mxu0
    %v1794 = vadd.f32 0.0, %v1793
    %v1795 = vpop.f32.mrf.mxu0
    %v1796 = vadd.f32 0.0, %v1795
    %v1797 = vpop.f32.mrf.mxu0
    %v1798 = vadd.f32 0.0, %v1797
    %v1799 = vpop.f32.mrf.mxu0
    %v1800 = vadd.f32 0.0, %v1799
    %1801 = vmatprep.mubr.bf16.mxu0 %v1530
    %1802 = vmatmul.mubr.bf16.gmra.mxu0 %v1529
    %v1803 = vpop.f32.mrf.mxu0
    %v1804 = vadd.f32 0.0, %v1803
    %v1805 = vpop.f32.mrf.mxu0
    %v1806 = vadd.f32 0.0, %v1805
    %v1807 = vpop.f32.mrf.mxu0
    %v1808 = vadd.f32 0.0, %v1807
    %v1809 = vpop.f32.mrf.mxu0
    %v1810 = vadd.f32 0.0, %v1809
    %1811 = vmatprep.mubr.bf16.mxu0 %v1532
    %1812 = vmatmul.mubr.bf16.gmra.mxu0 %v1531
    %v1813 = vpop.f32.mrf.mxu0
    %v1814 = vadd.f32 0.0, %v1813
    %v1815 = vpop.f32.mrf.mxu0
    %v1816 = vadd.f32 0.0, %v1815
    %v1817 = vpop.f32.mrf.mxu0
    %v1818 = vadd.f32 0.0, %v1817
    %v1819 = vpop.f32.mrf.mxu0
    %v1820 = vadd.f32 0.0, %v1819
    %1821 = vmatprep.mubr.bf16.mxu0 %v1534
    %1822 = vmatmul.mubr.bf16.gmra.mxu0 %v1533
    %v1823 = vpop.f32.mrf.mxu0
    %v1824 = vadd.f32 0.0, %v1823
    %v1825 = vpop.f32.mrf.mxu0
    %v1826 = vadd.f32 0.0, %v1825
    %v1827 = vpop.f32.mrf.mxu0
    %v1828 = vadd.f32 0.0, %v1827
    %v1829 = vpop.f32.mrf.mxu0
    %v1830 = vadd.f32 0.0, %v1829
    %1831 = vmatprep.mubr.bf16.mxu0 %v1536
    %1832 = vmatmul.mubr.bf16.gmra.mxu0 %v1535
    %v1833 = vpop.f32.mrf.mxu0
    %v1834 = vadd.f32 0.0, %v1833
    %v1835 = vpop.f32.mrf.mxu0
    %v1836 = vadd.f32 0.0, %v1835
    %v1837 = vpop.f32.mrf.mxu0
    %v1838 = vadd.f32 0.0, %v1837
    %v1839 = vpop.f32.mrf.mxu0
    %v1840 = vadd.f32 0.0, %v1839
    %1841 = vmatprep.mubr.bf16.mxu0 %v1538
    %1842 = vmatmul.mubr.bf16.gmra.mxu0 %v1537
    %v1843 = vpop.f32.mrf.mxu0
    %v1844 = vadd.f32 0.0, %v1843
    %v1845 = vpop.f32.mrf.mxu0
    %v1846 = vadd.f32 0.0, %v1845
    %v1847 = vpop.f32.mrf.mxu0
    %v1848 = vadd.f32 0.0, %v1847
    %v1849 = vpop.f32.mrf.mxu0
    %v1850 = vadd.f32 0.0, %v1849
    %1851 = vmatprep.mubr.bf16.mxu0 %v1540
    %1852 = vmatmul.mubr.bf16.gmra.mxu0 %v1539
    %v1853 = vpop.f32.mrf.mxu0
    %v1854 = vadd.f32 0.0, %v1853
    %v1855 = vpop.f32.mrf.mxu0
    %v1856 = vadd.f32 0.0, %v1855
    %v1857 = vpop.f32.mrf.mxu0
    %v1858 = vadd.f32 0.0, %v1857
    %v1859 = vpop.f32.mrf.mxu0
    %v1860 = vadd.f32 0.0, %v1859
    %1861 = vmatprep.mubr.bf16.mxu0 %v1542
    %1862 = vmatmul.mubr.bf16.gmra.mxu0 %v1541
    %v1863 = vpop.f32.mrf.mxu0
    %v1864 = vadd.f32 0.0, %v1863
    %v1865 = vpop.f32.mrf.mxu0
    %v1866 = vadd.f32 0.0, %v1865
    %v1867 = vpop.f32.mrf.mxu0
    %v1868 = vadd.f32 0.0, %v1867
    %v1869 = vpop.f32.mrf.mxu0
    %v1870 = vadd.f32 0.0, %v1869
    %1871 = vmatprep.mubr.bf16.mxu0 %v1544
    %1872 = vmatmul.mubr.bf16.gmra.mxu0 %v1543
    %v1873 = vpop.f32.mrf.mxu0
    %v1874 = vadd.f32 0.0, %v1873
    %v1875 = vpop.f32.mrf.mxu0
    %v1876 = vadd.f32 0.0, %v1875
    %v1877 = vpop.f32.mrf.mxu0
    %v1878 = vadd.f32 0.0, %v1877
    %v1879 = vpop.f32.mrf.mxu0
    %v1880 = vadd.f32 0.0, %v1879
    %1881 = vmatprep.mubr.bf16.mxu0 %v1546
    %1882 = vmatmul.mubr.bf16.gmra.mxu0 %v1545
    %v1883 = vpop.f32.mrf.mxu0
    %v1884 = vadd.f32 0.0, %v1883
    %v1885 = vpop.f32.mrf.mxu0
    %v1886 = vadd.f32 0.0, %v1885
    %v1887 = vpop.f32.mrf.mxu0
    %v1888 = vadd.f32 0.0, %v1887
    %v1889 = vpop.f32.mrf.mxu0
    %v1890 = vadd.f32 0.0, %v1889
    %1891 = vmatprep.mubr.bf16.mxu0 %v1548
    %1892 = vmatmul.mubr.bf16.gmra.mxu0 %v1547
    %v1893 = vpop.f32.mrf.mxu0
    %v1894 = vadd.f32 0.0, %v1893
    %v1895 = vpop.f32.mrf.mxu0
    %v1896 = vadd.f32 0.0, %v1895
    %v1897 = vpop.f32.mrf.mxu0
    %v1898 = vadd.f32 0.0, %v1897
    %v1899 = vpop.f32.mrf.mxu0
    %v1900 = vadd.f32 0.0, %v1899
    %1901 = vmatprep.mubr.bf16.mxu0 %v1550
    %1902 = vmatmul.mubr.bf16.gmra.mxu0 %v1549
    %v1903 = vpop.f32.mrf.mxu0
    %v1904 = vadd.f32 0.0, %v1903
    %v1905 = vpop.f32.mrf.mxu0
    %v1906 = vadd.f32 0.0, %v1905
    %v1907 = vpop.f32.mrf.mxu0
    %v1908 = vadd.f32 0.0, %v1907
    %v1909 = vpop.f32.mrf.mxu0
    %v1910 = vadd.f32 0.0, %v1909
    %1911 = vmatprep.mubr.bf16.mxu0 %v1552
    %1912 = vmatmul.mubr.bf16.gmra.mxu0 %v1551
    %v1913 = vpop.f32.mrf.mxu0
    %v1914 = vadd.f32 0.0, %v1913
    %v1915 = vpop.f32.mrf.mxu0
    %v1916 = vadd.f32 0.0, %v1915
    %v1917 = vpop.f32.mrf.mxu0
    %v1918 = vadd.f32 0.0, %v1917
    %v1919 = vpop.f32.mrf.mxu0
    %v1920 = vadd.f32 0.0, %v1919
    %1921 = vmatprep.mubr.bf16.mxu0 %v1554
    %1922 = vmatmul.mubr.bf16.gmra.mxu0 %v1553
    %v1923 = vpop.f32.mrf.mxu0
    %v1924 = vadd.f32 0.0, %v1923
    %v1925 = vpop.f32.mrf.mxu0
    %v1926 = vadd.f32 0.0, %v1925
    %v1927 = vpop.f32.mrf.mxu0
    %v1928 = vadd.f32 0.0, %v1927
    %v1929 = vpop.f32.mrf.mxu0
    %v1930 = vadd.f32 0.0, %v1929
    %1931 = vmatprep.mubr.bf16.mxu0 %v1556
    %1932 = vmatmul.mubr.bf16.gmra.mxu0 %v1555
    %v1933 = vpop.f32.mrf.mxu0
    %v1934 = vadd.f32 0.0, %v1933
    %v1935 = vpop.f32.mrf.mxu0
    %v1936 = vadd.f32 0.0, %v1935
    %v1937 = vpop.f32.mrf.mxu0
    %v1938 = vadd.f32 0.0, %v1937
    %v1939 = vpop.f32.mrf.mxu0
    %v1940 = vadd.f32 0.0, %v1939
    %1941 = vdwg.mxu0
    %v1942 = vld [vmem:[%s6] sm:$0xf]
    %v1943 = vadd.f32 %v1784, %v1788
    %v1944 = vadd.f32 %v1943, %v1794
    %v1945 = vadd.f32 %v1944, %v1798
    %v1946 = vadd.f32 %v1945, %v1804
    %v1947 = vadd.f32 %v1946, %v1808
    %v1948 = vadd.f32 %v1947, %v1814
    %v1949 = vadd.f32 %v1948, %v1818
    %v1950 = vadd.f32 %v1949, %v1824
    %v1951 = vadd.f32 %v1950, %v1828
    %v1952 = vadd.f32 %v1951, %v1834
    %v1953 = vadd.f32 %v1952, %v1838
    %v1954 = vadd.f32 %v1953, %v1844
    %v1955 = vadd.f32 %v1954, %v1848
    %v1956 = vadd.f32 %v1955, %v1854
    %v1957 = vadd.f32 %v1956, %v1858
    %v1958 = vadd.f32 %v1957, %v1864
    %v1959 = vadd.f32 %v1958, %v1868
    %v1960 = vadd.f32 %v1959, %v1874
    %v1961 = vadd.f32 %v1960, %v1878
    %v1962 = vadd.f32 %v1961, %v1884
    %v1963 = vadd.f32 %v1962, %v1888
    %v1964 = vadd.f32 %v1963, %v1894
    %v1965 = vadd.f32 %v1964, %v1898
    %v1966 = vadd.f32 %v1965, %v1904
    %v1967 = vadd.f32 %v1966, %v1908
    %v1968 = vadd.f32 %v1967, %v1914
    %v1969 = vadd.f32 %v1968, %v1918
    %v1970 = vadd.f32 %v1969, %v1924
    %v1971 = vadd.f32 %v1970, %v1928
    %v1972 = vadd.f32 %v1971, %v1934
    %v1973 = vadd.f32 %v1972, %v1938
    %v1974 = vrot.slane %v1973, 4
    %v1975 = vadd.f32 %v1973, %v1974
    %v1976 = vrot.slane %v1975, 2
    %v1977 = vadd.f32 %v1975, %v1976
    %v1978 = vrot.slane %v1977, 1
    %v1979 = vadd.f32 %v1977, %v1978
    %v1980 = vadd.f32 %v1786, %v1790
    %v1981 = vadd.f32 %v1980, %v1796
    %v1982 = vadd.f32 %v1981, %v1800
    %v1983 = vadd.f32 %v1982, %v1806
    %v1984 = vadd.f32 %v1983, %v1810
    %v1985 = vadd.f32 %v1984, %v1816
    %v1986 = vadd.f32 %v1985, %v1820
    %v1987 = vadd.f32 %v1986, %v1826
    %v1988 = vadd.f32 %v1987, %v1830
    %v1989 = vadd.f32 %v1988, %v1836
    %v1990 = vadd.f32 %v1989, %v1840
    %v1991 = vadd.f32 %v1990, %v1846
    %v1992 = vadd.f32 %v1991, %v1850
    %v1993 = vadd.f32 %v1992, %v1856
    %v1994 = vadd.f32 %v1993, %v1860
    %v1995 = vadd.f32 %v1994, %v1866
    %v1996 = vadd.f32 %v1995, %v1870
    %v1997 = vadd.f32 %v1996, %v1876
    %v1998 = vadd.f32 %v1997, %v1880
    %v1999 = vadd.f32 %v1998, %v1886
    %v2000 = vadd.f32 %v1999, %v1890
    %v2001 = vadd.f32 %v2000, %v1896
    %v2002 = vadd.f32 %v2001, %v1900
    %v2003 = vadd.f32 %v2002, %v1906
    %v2004 = vadd.f32 %v2003, %v1910
    %v2005 = vadd.f32 %v2004, %v1916
    %v2006 = vadd.f32 %v2005, %v1920
    %v2007 = vadd.f32 %v2006, %v1926
    %v2008 = vadd.f32 %v2007, %v1930
    %v2009 = vadd.f32 %v2008, %v1936
    %v2010 = vadd.f32 %v2009, %v1940
    %v2011 = vrot.slane %v2010, 4
    %v2012 = vadd.f32 %v2010, %v2011
    %v2013 = vrot.slane %v2012, 2
    %v2014 = vadd.f32 %v2012, %v2013
    %v2015 = vrot.slane %v2014, 1
    %v2016 = vadd.f32 %v2014, %v2015
    %v2017 = vmul.f32 %v1979, 0.00390625
    %v2018 = vmul.f32 %v2016, 0.00390625
    %v2019 = vmul.f32 %v1784, %v1784
    %v2020 = vmul.f32 %v1786, %v1786
    %v2021 = vmul.f32 %v1788, %v1788
    %v2022 = vmul.f32 %v1790, %v1790
    %v2023 = vmul.f32 %v1794, %v1794
    %v2024 = vmul.f32 %v1796, %v1796
    %v2025 = vmul.f32 %v1798, %v1798
    %v2026 = vmul.f32 %v1800, %v1800
    %v2027 = vmul.f32 %v1804, %v1804
    %v2028 = vmul.f32 %v1806, %v1806
    %v2029 = vmul.f32 %v1808, %v1808
    %v2030 = vmul.f32 %v1810, %v1810
    %v2031 = vmul.f32 %v1814, %v1814
    %v2032 = vmul.f32 %v1816, %v1816
    %v2033 = vmul.f32 %v1818, %v1818
    %v2034 = vmul.f32 %v1820, %v1820
    %v2035 = vmul.f32 %v1824, %v1824
    %v2036 = vmul.f32 %v1826, %v1826
    %v2037 = vmul.f32 %v1828, %v1828
    %v2038 = vmul.f32 %v1830, %v1830
    %v2039 = vmul.f32 %v1834, %v1834
    %v2040 = vmul.f32 %v1836, %v1836
    %v2041 = vmul.f32 %v1838, %v1838
    %v2042 = vmul.f32 %v1840, %v1840
    %v2043 = vmul.f32 %v1844, %v1844
    %v2044 = vmul.f32 %v1846, %v1846
    %v2045 = vmul.f32 %v1848, %v1848
    %v2046 = vmul.f32 %v1850, %v1850
    %v2047 = vmul.f32 %v1854, %v1854
    %v2048 = vmul.f32 %v1856, %v1856
    %v2049 = vmul.f32 %v1858, %v1858
    %v2050 = vmul.f32 %v1860, %v1860
    %v2051 = vmul.f32 %v1864, %v1864
    %v2052 = vmul.f32 %v1866, %v1866
    %v2053 = vmul.f32 %v1868, %v1868
    %v2054 = vmul.f32 %v1870, %v1870
    %v2055 = vmul.f32 %v1874, %v1874
    %v2056 = vmul.f32 %v1876, %v1876
    %v2057 = vmul.f32 %v1878, %v1878
    %v2058 = vmul.f32 %v1880, %v1880
    %v2059 = vmul.f32 %v1884, %v1884
    %v2060 = vmul.f32 %v1886, %v1886
    %v2061 = vmul.f32 %v1888, %v1888
    %v2062 = vmul.f32 %v1890, %v1890
    %v2063 = vmul.f32 %v1894, %v1894
    %v2064 = vmul.f32 %v1896, %v1896
    %v2065 = vmul.f32 %v1898, %v1898
    %v2066 = vmul.f32 %v1900, %v1900
    %v2067 = vmul.f32 %v1904, %v1904
    %v2068 = vmul.f32 %v1906, %v1906
    %v2069 = vmul.f32 %v1908, %v1908
    %v2070 = vmul.f32 %v1910, %v1910
    %v2071 = vmul.f32 %v1914, %v1914
    %v2072 = vmul.f32 %v1916, %v1916
    %v2073 = vmul.f32 %v1918, %v1918
    %v2074 = vmul.f32 %v1920, %v1920
    %v2075 = vmul.f32 %v1924, %v1924
    %v2076 = vmul.f32 %v1926, %v1926
    %v2077 = vmul.f32 %v1928, %v1928
    %v2078 = vmul.f32 %v1930, %v1930
    %v2079 = vmul.f32 %v1934, %v1934
    %v2080 = vmul.f32 %v1936, %v1936
    %v2081 = vmul.f32 %v1938, %v1938
    %v2082 = vmul.f32 %v1940, %v1940
    %v2083 = vadd.f32 %v2019, %v2021
    %v2084 = vadd.f32 %v2083, %v2023
    %v2085 = vadd.f32 %v2084, %v2025
    %v2086 = vadd.f32 %v2085, %v2027
    %v2087 = vadd.f32 %v2086, %v2029
    %v2088 = vadd.f32 %v2087, %v2031
    %v2089 = vadd.f32 %v2088, %v2033
    %v2090 = vadd.f32 %v2089, %v2035
    %v2091 = vadd.f32 %v2090, %v2037
    %v2092 = vadd.f32 %v2091, %v2039
    %v2093 = vadd.f32 %v2092, %v2041
    %v2094 = vadd.f32 %v2093, %v2043
    %v2095 = vadd.f32 %v2094, %v2045
    %v2096 = vadd.f32 %v2095, %v2047
    %v2097 = vadd.f32 %v2096, %v2049
    %v2098 = vadd.f32 %v2097, %v2051
    %v2099 = vadd.f32 %v2098, %v2053
    %v2100 = vadd.f32 %v2099, %v2055
    %v2101 = vadd.f32 %v2100, %v2057
    %v2102 = vadd.f32 %v2101, %v2059
    %v2103 = vadd.f32 %v2102, %v2061
    %v2104 = vadd.f32 %v2103, %v2063
    %v2105 = vadd.f32 %v2104, %v2065
    %v2106 = vadd.f32 %v2105, %v2067
    %v2107 = vadd.f32 %v2106, %v2069
    %v2108 = vadd.f32 %v2107, %v2071
    %v2109 = vadd.f32 %v2108, %v2073
    %v2110 = vadd.f32 %v2109, %v2075
    %v2111 = vadd.f32 %v2110, %v2077
    %v2112 = vadd.f32 %v2111, %v2079
    %v2113 = vadd.f32 %v2112, %v2081
    %v2114 = vrot.slane %v2113, 4
    %v2115 = vadd.f32 %v2113, %v2114
    %v2116 = vrot.slane %v2115, 2
    %v2117 = vadd.f32 %v2115, %v2116
    %v2118 = vrot.slane %v2117, 1
    %v2119 = vadd.f32 %v2117, %v2118
    %v2120 = vadd.f32 %v2020, %v2022
    %v2121 = vadd.f32 %v2120, %v2024
    %v2122 = vadd.f32 %v2121, %v2026
    %v2123 = vadd.f32 %v2122, %v2028
    %v2124 = vadd.f32 %v2123, %v2030
    %v2125 = vadd.f32 %v2124, %v2032
    %v2126 = vadd.f32 %v2125, %v2034
    %v2127 = vadd.f32 %v2126, %v2036
    %v2128 = vadd.f32 %v2127, %v2038
    %v2129 = vadd.f32 %v2128, %v2040
    %v2130 = vadd.f32 %v2129, %v2042
    %v2131 = vadd.f32 %v2130, %v2044
    %v2132 = vadd.f32 %v2131, %v2046
    %v2133 = vadd.f32 %v2132, %v2048
    %v2134 = vadd.f32 %v2133, %v2050
    %v2135 = vadd.f32 %v2134, %v2052
    %v2136 = vadd.f32 %v2135, %v2054
    %v2137 = vadd.f32 %v2136, %v2056
    %v2138 = vadd.f32 %v2137, %v2058
    %v2139 = vadd.f32 %v2138, %v2060
    %v2140 = vadd.f32 %v2139, %v2062
    %v2141 = vadd.f32 %v2140, %v2064
    %v2142 = vadd.f32 %v2141, %v2066
    %v2143 = vadd.f32 %v2142, %v2068
    %v2144 = vadd.f32 %v2143, %v2070
    %v2145 = vadd.f32 %v2144, %v2072
    %v2146 = vadd.f32 %v2145, %v2074
    %v2147 = vadd.f32 %v2146, %v2076
    %v2148 = vadd.f32 %v2147, %v2078
    %v2149 = vadd.f32 %v2148, %v2080
    %v2150 = vadd.f32 %v2149, %v2082
    %v2151 = vrot.slane %v2150, 4
    %v2152 = vadd.f32 %v2150, %v2151
    %v2153 = vrot.slane %v2152, 2
    %v2154 = vadd.f32 %v2152, %v2153
    %v2155 = vrot.slane %v2154, 1
    %v2156 = vadd.f32 %v2154, %v2155
    %v2157 = vmul.f32 %v2119, 0.00390625
    %v2158 = vmul.f32 %v2156, 0.00390625
    %v2159 = vmul.f32 %v2017, %v2017
    %v2160 = vmul.f32 %v2018, %v2018
    %v2161 = vsub.f32 %v2157, %v2159
    %v2162 = vsub.f32 %v2158, %v2160
    %v2163 = vadd.f32 %v2161, 1e-05
    %v2164 = vadd.f32 %v2162, 1e-05
    %v2165 = vrsqrt.pop %v2163
    %v2166 = vrsqrt.pop %v2164
    %v2169 = vcombine.low %v2165, %v2166
    %v2171 = vunpack.c.l.s4 1983009808
    %v2172 = vunpack.c.0.s8 %v2171
    %v2173 = vlaneseq
    %v2174 = vshrl.u32 %v2173, 7
    %v2175 = vsub.s32 %v2172, %v2174
    %v2176 = vrot.slane %v2169, %v2175
    %v2178 = vmul.f32 %v1942, %v2176
    %v2180 = vlaneseq
    %v2181 = vshrl.u32 %v2180, 7
    %v2182 = vsub.s32 0, %v2181
    %v2183 = vrot.slane %v2178, %v2182
    %v2184 = vlaneseq
    %v2185 = vshrl.u32 %v2184, 7
    %v2186 = vsub.s32 2, %v2185
    %v2187 = vrot.slane %v2178, %v2186
    %v2190 = vmul.f32 %v2017, %v2183
    %v2191 = vmul.f32 %v2018, %v2187
    %v2194 = vcombine.low %v2190, %v2191
    %v2196 = vunpack.c.l.s4 1983009808
    %v2197 = vunpack.c.0.s8 %v2196
    %v2198 = vlaneseq
    %v2199 = vshrl.u32 %v2198, 7
    %v2200 = vsub.s32 %v2197, %v2199
    %v2201 = vrot.slane %v2194, %v2200
    %v2202 = vrot.slane %v2201, 7
    %v2204 = vsub.f32 %v1942, %v2202
    %v2205 = vlaneseq
    %v2206 = vshrl.u32 %v2205, 7
    %v2207 = vsub.s32 0, %v2206
    %v2208 = vrot.slane %v2183, %v2207
    %v2209 = vlaneseq
    %v2210 = vshrl.u32 %v2209, 7
    %v2211 = vsub.s32 0, %v2210
    %v2212 = vrot.slane %v2187, %v2211
    %v2213 = vmul.f32 %v1784, %v2208
    %v2214 = vmul.f32 %v1786, %v2212
    %v2215 = vmul.f32 %v1788, %v2208
    %v2216 = vmul.f32 %v1790, %v2212
    %v2217 = vmul.f32 %v1794, %v2208
    %v2218 = vmul.f32 %v1796, %v2212
    %v2219 = vmul.f32 %v1798, %v2208
    %v2220 = vmul.f32 %v1800, %v2212
    %v2221 = vmul.f32 %v1804, %v2208
    %v2222 = vmul.f32 %v1806, %v2212
    %v2223 = vmul.f32 %v1808, %v2208
    %v2224 = vmul.f32 %v1810, %v2212
    %v2225 = vmul.f32 %v1814, %v2208
    %v2226 = vmul.f32 %v1816, %v2212
    %v2227 = vmul.f32 %v1818, %v2208
    %v2228 = vmul.f32 %v1820, %v2212
    %v2229 = vmul.f32 %v1824, %v2208
    %v2230 = vmul.f32 %v1826, %v2212
    %v2231 = vmul.f32 %v1828, %v2208
    %v2232 = vmul.f32 %v1830, %v2212
    %v2233 = vmul.f32 %v1834, %v2208
    %v2234 = vmul.f32 %v1836, %v2212
    %v2235 = vmul.f32 %v1838, %v2208
    %v2236 = vmul.f32 %v1840, %v2212
    %v2237 = vmul.f32 %v1844, %v2208
    %v2238 = vmul.f32 %v1846, %v2212
    %v2239 = vmul.f32 %v1848, %v2208
    %v2240 = vmul.f32 %v1850, %v2212
    %v2241 = vmul.f32 %v1854, %v2208
    %v2242 = vmul.f32 %v1856, %v2212
    %v2243 = vmul.f32 %v1858, %v2208
    %v2244 = vmul.f32 %v1860, %v2212
    %v2245 = vmul.f32 %v1864, %v2208
    %v2246 = vmul.f32 %v1866, %v2212
    %v2247 = vmul.f32 %v1868, %v2208
    %v2248 = vmul.f32 %v1870, %v2212
    %v2249 = vmul.f32 %v1874, %v2208
    %v2250 = vmul.f32 %v1876, %v2212
    %v2251 = vmul.f32 %v1878, %v2208
    %v2252 = vmul.f32 %v1880, %v2212
    %v2253 = vmul.f32 %v1884, %v2208
    %v2254 = vmul.f32 %v1886, %v2212
    %v2255 = vmul.f32 %v1888, %v2208
    %v2256 = vmul.f32 %v1890, %v2212
    %v2257 = vmul.f32 %v1894, %v2208
    %v2258 = vmul.f32 %v1896, %v2212
    %v2259 = vmul.f32 %v1898, %v2208
    %v2260 = vmul.f32 %v1900, %v2212
    %v2261 = vmul.f32 %v1904, %v2208
    %v2262 = vmul.f32 %v1906, %v2212
    %v2263 = vmul.f32 %v1908, %v2208
    %v2264 = vmul.f32 %v1910, %v2212
    %v2265 = vmul.f32 %v1914, %v2208
    %v2266 = vmul.f32 %v1916, %v2212
    %v2267 = vmul.f32 %v1918, %v2208
    %v2268 = vmul.f32 %v1920, %v2212
    %v2269 = vmul.f32 %v1924, %v2208
    %v2270 = vmul.f32 %v1926, %v2212
    %v2271 = vmul.f32 %v1928, %v2208
    %v2272 = vmul.f32 %v1930, %v2212
    %v2273 = vmul.f32 %v1934, %v2208
    %v2274 = vmul.f32 %v1936, %v2212
    %v2275 = vmul.f32 %v1938, %v2208
    %v2276 = vmul.f32 %v1940, %v2212
    %v2278 = vlaneseq
    %v2279 = vshrl.u32 %v2278, 7
    %v2280 = vsub.s32 1, %v2279
    %v2281 = vrot.slane %v2204, %v2280
    %v2282 = vlaneseq
    %v2283 = vshrl.u32 %v2282, 7
    %v2284 = vsub.s32 3, %v2283
    %v2285 = vrot.slane %v2204, %v2284
    %v2288 = vlaneseq
    %v2289 = vshrl.u32 %v2288, 7
    %v2290 = vsub.s32 1, %v2289
    %v2291 = vrot.slane %v2281, %v2290
    %v2292 = vlaneseq
    %v2293 = vshrl.u32 %v2292, 7
    %v2294 = vsub.s32 1, %v2293
    %v2295 = vrot.slane %v2285, %v2294
    %v2296 = vadd.f32 %v2213, %v2291
    %v2297 = vadd.f32 %v2214, %v2295
    %v2298 = vadd.f32 %v2215, %v2291
    %v2299 = vadd.f32 %v2216, %v2295
    %v2300 = vadd.f32 %v2217, %v2291
    %v2301 = vadd.f32 %v2218, %v2295
    %v2302 = vadd.f32 %v2219, %v2291
    %v2303 = vadd.f32 %v2220, %v2295
    %v2304 = vadd.f32 %v2221, %v2291
    %v2305 = vadd.f32 %v2222, %v2295
    %v2306 = vadd.f32 %v2223, %v2291
    %v2307 = vadd.f32 %v2224, %v2295
    %v2308 = vadd.f32 %v2225, %v2291
    %v2309 = vadd.f32 %v2226, %v2295
    %v2310 = vadd.f32 %v2227, %v2291
    %v2311 = vadd.f32 %v2228, %v2295
    %v2312 = vadd.f32 %v2229, %v2291
    %v2313 = vadd.f32 %v2230, %v2295
    %v2314 = vadd.f32 %v2231, %v2291
    %v2315 = vadd.f32 %v2232, %v2295
    %v2316 = vadd.f32 %v2233, %v2291
    %v2317 = vadd.f32 %v2234, %v2295
    %v2318 = vadd.f32 %v2235, %v2291
    %v2319 = vadd.f32 %v2236, %v2295
    %v2320 = vadd.f32 %v2237, %v2291
    %v2321 = vadd.f32 %v2238, %v2295
    %v2322 = vadd.f32 %v2239, %v2291
    %v2323 = vadd.f32 %v2240, %v2295
    %v2324 = vadd.f32 %v2241, %v2291
    %v2325 = vadd.f32 %v2242, %v2295
    %v2326 = vadd.f32 %v2243, %v2291
    %v2327 = vadd.f32 %v2244, %v2295
    %v2328 = vadd.f32 %v2245, %v2291
    %v2329 = vadd.f32 %v2246, %v2295
    %v2330 = vadd.f32 %v2247, %v2291
    %v2331 = vadd.f32 %v2248, %v2295
    %v2332 = vadd.f32 %v2249, %v2291
    %v2333 = vadd.f32 %v2250, %v2295
    %v2334 = vadd.f32 %v2251, %v2291
    %v2335 = vadd.f32 %v2252, %v2295
    %v2336 = vadd.f32 %v2253, %v2291
    %v2337 = vadd.f32 %v2254, %v2295
    %v2338 = vadd.f32 %v2255, %v2291
    %v2339 = vadd.f32 %v2256, %v2295
    %v2340 = vadd.f32 %v2257, %v2291
    %v2341 = vadd.f32 %v2258, %v2295
    %v2342 = vadd.f32 %v2259, %v2291
    %v2343 = vadd.f32 %v2260, %v2295
    %v2344 = vadd.f32 %v2261, %v2291
    %v2345 = vadd.f32 %v2262, %v2295
    %v2346 = vadd.f32 %v2263, %v2291
    %v2347 = vadd.f32 %v2264, %v2295
    %v2348 = vadd.f32 %v2265, %v2291
    %v2349 = vadd.f32 %v2266, %v2295
    %v2350 = vadd.f32 %v2267, %v2291
    %v2351 = vadd.f32 %v2268, %v2295
    %v2352 = vadd.f32 %v2269, %v2291
    %v2353 = vadd.f32 %v2270, %v2295
    %v2354 = vadd.f32 %v2271, %v2291
    %v2355 = vadd.f32 %v2272, %v2295
    %v2356 = vadd.f32 %v2273, %v2291
    %v2357 = vadd.f32 %v2274, %v2295
    %v2358 = vadd.f32 %v2275, %v2291
    %v2359 = vadd.f32 %v2276, %v2295
    %v2360 = vmax.f32 %v2296, 0.0
    %v2361 = vmax.f32 %v2297, 0.0
    %v2362 = vmax.f32 %v2298, 0.0
    %v2363 = vmax.f32 %v2299, 0.0
    %v2364 = vmax.f32 %v2300, 0.0
    %v2365 = vmax.f32 %v2301, 0.0
    %v2366 = vmax.f32 %v2302, 0.0
    %v2367 = vmax.f32 %v2303, 0.0
    %v2368 = vmax.f32 %v2304, 0.0
    %v2369 = vmax.f32 %v2305, 0.0
    %v2370 = vmax.f32 %v2306, 0.0
    %v2371 = vmax.f32 %v2307, 0.0
    %v2372 = vmax.f32 %v2308, 0.0
    %v2373 = vmax.f32 %v2309, 0.0
    %v2374 = vmax.f32 %v2310, 0.0
    %v2375 = vmax.f32 %v2311, 0.0
    %v2376 = vmax.f32 %v2312, 0.0
    %v2377 = vmax.f32 %v2313, 0.0
    %v2378 = vmax.f32 %v2314, 0.0
    %v2379 = vmax.f32 %v2315, 0.0
    %v2380 = vmax.f32 %v2316, 0.0
    %v2381 = vmax.f32 %v2317, 0.0
    %v2382 = vmax.f32 %v2318, 0.0
    %v2383 = vmax.f32 %v2319, 0.0
    %v2384 = vmax.f32 %v2320, 0.0
    %v2385 = vmax.f32 %v2321, 0.0
    %v2386 = vmax.f32 %v2322, 0.0
    %v2387 = vmax.f32 %v2323, 0.0
    %v2388 = vmax.f32 %v2324, 0.0
    %v2389 = vmax.f32 %v2325, 0.0
    %v2390 = vmax.f32 %v2326, 0.0
    %v2391 = vmax.f32 %v2327, 0.0
    %v2392 = vmax.f32 %v2328, 0.0
    %v2393 = vmax.f32 %v2329, 0.0
    %v2394 = vmax.f32 %v2330, 0.0
    %v2395 = vmax.f32 %v2331, 0.0
    %v2396 = vmax.f32 %v2332, 0.0
    %v2397 = vmax.f32 %v2333, 0.0
    %v2398 = vmax.f32 %v2334, 0.0
    %v2399 = vmax.f32 %v2335, 0.0
    %v2400 = vmax.f32 %v2336, 0.0
    %v2401 = vmax.f32 %v2337, 0.0
    %v2402 = vmax.f32 %v2338, 0.0
    %v2403 = vmax.f32 %v2339, 0.0
    %v2404 = vmax.f32 %v2340, 0.0
    %v2405 = vmax.f32 %v2341, 0.0
    %v2406 = vmax.f32 %v2342, 0.0
    %v2407 = vmax.f32 %v2343, 0.0
    %v2408 = vmax.f32 %v2344, 0.0
    %v2409 = vmax.f32 %v2345, 0.0
    %v2410 = vmax.f32 %v2346, 0.0
    %v2411 = vmax.f32 %v2347, 0.0
    %v2412 = vmax.f32 %v2348, 0.0
    %v2413 = vmax.f32 %v2349, 0.0
    %v2414 = vmax.f32 %v2350, 0.0
    %v2415 = vmax.f32 %v2351, 0.0
    %v2416 = vmax.f32 %v2352, 0.0
    %v2417 = vmax.f32 %v2353, 0.0
    %v2418 = vmax.f32 %v2354, 0.0
    %v2419 = vmax.f32 %v2355, 0.0
    %v2420 = vmax.f32 %v2356, 0.0
    %v2421 = vmax.f32 %v2357, 0.0
    %v2422 = vmax.f32 %v2358, 0.0
    %v2423 = vmax.f32 %v2359, 0.0
    %v2424 = vpack.c.bf16 %v2362, %v2360
    %v2425 = vpack.c.bf16 %v2363, %v2361
    %v2426 = vpack.c.bf16 %v2366, %v2364
    %v2427 = vpack.c.bf16 %v2367, %v2365
    %v2428 = vpack.c.bf16 %v2370, %v2368
    %v2429 = vpack.c.bf16 %v2371, %v2369
    %v2430 = vpack.c.bf16 %v2374, %v2372
    %v2431 = vpack.c.bf16 %v2375, %v2373
    %v2432 = vpack.c.bf16 %v2378, %v2376
    %v2433 = vpack.c.bf16 %v2379, %v2377
    %v2434 = vpack.c.bf16 %v2382, %v2380
    %v2435 = vpack.c.bf16 %v2383, %v2381
    %v2436 = vpack.c.bf16 %v2386, %v2384
    %v2437 = vpack.c.bf16 %v2387, %v2385
    %v2438 = vpack.c.bf16 %v2390, %v2388
    %v2439 = vpack.c.bf16 %v2391, %v2389
    %v2440 = vpack.c.bf16 %v2394, %v2392
    %v2441 = vpack.c.bf16 %v2395, %v2393
    %v2442 = vpack.c.bf16 %v2398, %v2396
    %v2443 = vpack.c.bf16 %v2399, %v2397
    %v2444 = vpack.c.bf16 %v2402, %v2400
    %v2445 = vpack.c.bf16 %v2403, %v2401
    %v2446 = vpack.c.bf16 %v2406, %v2404
    %v2447 = vpack.c.bf16 %v2407, %v2405
    %v2448 = vpack.c.bf16 %v2410, %v2408
    %v2449 = vpack.c.bf16 %v2411, %v2409
    %v2450 = vpack.c.bf16 %v2414, %v2412
    %v2451 = vpack.c.bf16 %v2415, %v2413
    %v2452 = vpack.c.bf16 %v2418, %v2416
    %v2453 = vpack.c.bf16 %v2419, %v2417
    %v2454 = vpack.c.bf16 %v2422, %v2420
    %v2455 = vpack.c.bf16 %v2423, %v2421
    %v2456 = vld [vmem:[#allocation10] sm:$0xff]
    %v2457 = vld [vmem:[#allocation10 + $0x8] sm:$0xff]
    %v2458 = vld [vmem:[#allocation10 + $0x10] sm:$0xff]
    %v2459 = vld [vmem:[#allocation10 + $0x18] sm:$0xff]
    %v2460 = vld [vmem:[#allocation10 + $0x20] sm:$0xff]
    %v2461 = vld [vmem:[#allocation10 + $0x28] sm:$0xff]
    %v2462 = vld [vmem:[#allocation10 + $0x30] sm:$0xff]
    %v2463 = vld [vmem:[#allocation10 + $0x38] sm:$0xff]
    %v2464 = vld [vmem:[#allocation10 + $0x40] sm:$0xff]
    %v2465 = vld [vmem:[#allocation10 + $0x48] sm:$0xff]
    %v2466 = vld [vmem:[#allocation10 + $0x50] sm:$0xff]
    %v2467 = vld [vmem:[#allocation10 + $0x58] sm:$0xff]
    %v2468 = vld [vmem:[#allocation10 + $0x60] sm:$0xff]
    %v2469 = vld [vmem:[#allocation10 + $0x68] sm:$0xff]
    %v2470 = vld [vmem:[#allocation10 + $0x70] sm:$0xff]
    %v2471 = vld [vmem:[#allocation10 + $0x78] sm:$0xff]
    %v2472 = vld [vmem:[#allocation10 + $0x80] sm:$0xff]
    %v2473 = vld [vmem:[#allocation10 + $0x88] sm:$0xff]
    %v2474 = vld [vmem:[#allocation10 + $0x90] sm:$0xff]
    %v2475 = vld [vmem:[#allocation10 + $0x98] sm:$0xff]
    %v2476 = vld [vmem:[#allocation10 + $0xa0] sm:$0xff]
    %v2477 = vld [vmem:[#allocation10 + $0xa8] sm:$0xff]
    %v2478 = vld [vmem:[#allocation10 + $0xb0] sm:$0xff]
    %v2479 = vld [vmem:[#allocation10 + $0xb8] sm:$0xff]
    %v2480 = vld [vmem:[#allocation10 + $0xc0] sm:$0xff]
    %v2481 = vld [vmem:[#allocation10 + $0xc8] sm:$0xff]
    %v2482 = vld [vmem:[#allocation10 + $0xd0] sm:$0xff]
    %v2483 = vld [vmem:[#allocation10 + $0xd8] sm:$0xff]
    %v2484 = vld [vmem:[#allocation10 + $0xe0] sm:$0xff]
    %v2485 = vld [vmem:[#allocation10 + $0xe8] sm:$0xff]
    %v2486 = vld [vmem:[#allocation10 + $0xf0] sm:$0xff]
    %v2487 = vld [vmem:[#allocation10 + $0xf8] sm:$0xff]
    %v2488 = vld [vmem:[%s8] sm:$0x3]
    %v2490 = vlaneseq
    %v2491 = vshrl.u32 %v2490, 7
    %v2492 = vsub.s32 0, %v2491
    %v2493 = vrot.slane %v2488, %v2492
    %v2494 = vlaneseq
    %v2495 = vshrl.u32 %v2494, 7
    %v2496 = vsub.s32 1, %v2495
    %v2497 = vrot.slane %v2488, %v2496
    %v2532 = vunpack.c.l.b16 %v2456
    %v2533 = vunpack.c.h.b16 %v2456
    %v2534 = vunpack.c.l.b16 %v2457
    %v2535 = vunpack.c.h.b16 %v2457
    %v2536 = vunpack.c.l.b16 %v2458
    %v2537 = vunpack.c.h.b16 %v2458
    %v2538 = vunpack.c.l.b16 %v2459
    %v2539 = vunpack.c.h.b16 %v2459
    %v2540 = vunpack.c.l.b16 %v2460
    %v2541 = vunpack.c.h.b16 %v2460
    %v2542 = vunpack.c.l.b16 %v2461
    %v2543 = vunpack.c.h.b16 %v2461
    %v2544 = vunpack.c.l.b16 %v2462
    %v2545 = vunpack.c.h.b16 %v2462
    %v2546 = vunpack.c.l.b16 %v2463
    %v2547 = vunpack.c.h.b16 %v2463
    %v2548 = vunpack.c.l.b16 %v2464
    %v2549 = vunpack.c.h.b16 %v2464
    %v2550 = vunpack.c.l.b16 %v2465
    %v2551 = vunpack.c.h.b16 %v2465
    %v2552 = vunpack.c.l.b16 %v2466
    %v2553 = vunpack.c.h.b16 %v2466
    %v2554 = vunpack.c.l.b16 %v2467
    %v2555 = vunpack.c.h.b16 %v2467
    %v2556 = vunpack.c.l.b16 %v2468
    %v2557 = vunpack.c.h.b16 %v2468
    %v2558 = vunpack.c.l.b16 %v2469
    %v2559 = vunpack.c.h.b16 %v2469
    %v2560 = vunpack.c.l.b16 %v2470
    %v2561 = vunpack.c.h.b16 %v2470
    %v2562 = vunpack.c.l.b16 %v2471
    %v2563 = vunpack.c.h.b16 %v2471
    %v2564 = vunpack.c.l.b16 %v2472
    %v2565 = vunpack.c.h.b16 %v2472
    %v2566 = vunpack.c.l.b16 %v2473
    %v2567 = vunpack.c.h.b16 %v2473
    %v2568 = vunpack.c.l.b16 %v2474
    %v2569 = vunpack.c.h.b16 %v2474
    %v2570 = vunpack.c.l.b16 %v2475
    %v2571 = vunpack.c.h.b16 %v2475
    %v2572 = vunpack.c.l.b16 %v2476
    %v2573 = vunpack.c.h.b16 %v2476
    %v2574 = vunpack.c.l.b16 %v2477
    %v2575 = vunpack.c.h.b16 %v2477
    %v2576 = vunpack.c.l.b16 %v2478
    %v2577 = vunpack.c.h.b16 %v2478
    %v2578 = vunpack.c.l.b16 %v2479
    %v2579 = vunpack.c.h.b16 %v2479
    %v2580 = vunpack.c.l.b16 %v2480
    %v2581 = vunpack.c.h.b16 %v2480
    %v2582 = vunpack.c.l.b16 %v2481
    %v2583 = vunpack.c.h.b16 %v2481
    %v2584 = vunpack.c.l.b16 %v2482
    %v2585 = vunpack.c.h.b16 %v2482
    %v2586 = vunpack.c.l.b16 %v2483
    %v2587 = vunpack.c.h.b16 %v2483
    %v2588 = vunpack.c.l.b16 %v2484
    %v2589 = vunpack.c.h.b16 %v2484
    %v2590 = vunpack.c.l.b16 %v2485
    %v2591 = vunpack.c.h.b16 %v2485
    %v2592 = vunpack.c.l.b16 %v2486
    %v2593 = vunpack.c.h.b16 %v2486
    %v2594 = vunpack.c.l.b16 %v2487
    %v2595 = vunpack.c.h.b16 %v2487
    %v2596 = vpack.c.b16 %v2534, %v2532
    %v2597 = vpack.c.b16 %v2535, %v2533
    %v2598 = vpack.c.b16 %v2538, %v2536
    %v2599 = vpack.c.b16 %v2539, %v2537
    %v2600 = vpack.c.b16 %v2542, %v2540
    %v2601 = vpack.c.b16 %v2543, %v2541
    %v2602 = vpack.c.b16 %v2546, %v2544
    %v2603 = vpack.c.b16 %v2547, %v2545
    %v2604 = vpack.c.b16 %v2550, %v2548
    %v2605 = vpack.c.b16 %v2551, %v2549
    %v2606 = vpack.c.b16 %v2554, %v2552
    %v2607 = vpack.c.b16 %v2555, %v2553
    %v2608 = vpack.c.b16 %v2558, %v2556
    %v2609 = vpack.c.b16 %v2559, %v2557
    %v2610 = vpack.c.b16 %v2562, %v2560
    %v2611 = vpack.c.b16 %v2563, %v2561
    %v2612 = vpack.c.b16 %v2566, %v2564
    %v2613 = vpack.c.b16 %v2567, %v2565
    %v2614 = vpack.c.b16 %v2570, %v2568
    %v2615 = vpack.c.b16 %v2571, %v2569
    %v2616 = vpack.c.b16 %v2574, %v2572
    %v2617 = vpack.c.b16 %v2575, %v2573
    %v2618 = vpack.c.b16 %v2578, %v2576
    %v2619 = vpack.c.b16 %v2579, %v2577
    %v2620 = vpack.c.b16 %v2582, %v2580
    %v2621 = vpack.c.b16 %v2583, %v2581
    %v2622 = vpack.c.b16 %v2586, %v2584
    %v2623 = vpack.c.b16 %v2587, %v2585
    %v2624 = vpack.c.b16 %v2590, %v2588
    %v2625 = vpack.c.b16 %v2591, %v2589
    %v2626 = vpack.c.b16 %v2594, %v2592
    %v2627 = vpack.c.b16 %v2595, %v2593
    %2660 = vmatprep.subr.bf16.mxu0 %v2611
    %2661 = vmatpush1.bf16.msra.mxu0 %v2610
    %2662 = vmatprep.subr.bf16.mxu0 %v2609
    %2663 = vmatpush1.bf16.msra.mxu0 %v2608
    %2664 = vmatprep.subr.bf16.mxu0 %v2607
    %2665 = vmatpush1.bf16.msra.mxu0 %v2606
    %2666 = vmatprep.subr.bf16.mxu0 %v2605
    %2667 = vmatpush1.bf16.msra.mxu0 %v2604
    %2668 = vmatprep.subr.bf16.mxu0 %v2603
    %2669 = vmatpush1.bf16.msra.mxu0 %v2602
    %2670 = vmatprep.subr.bf16.mxu0 %v2601
    %2671 = vmatpush1.bf16.msra.mxu0 %v2600
    %2672 = vmatprep.subr.bf16.mxu0 %v2599
    %2673 = vmatpush1.bf16.msra.mxu0 %v2598
    %2674 = vmatprep.subr.bf16.mxu0 %v2597
    %2675 = vmatpush1.bf16.msra.mxu0 %v2596
    %2676 = vmatprep.subr.bf16.mxu0 %v2627
    %2677 = vmatpush2.bf16.msra.mxu0 %v2626
    %2678 = vmatprep.subr.bf16.mxu0 %v2625
    %2679 = vmatpush2.bf16.msra.mxu0 %v2624
    %2680 = vmatprep.subr.bf16.mxu0 %v2623
    %2681 = vmatpush2.bf16.msra.mxu0 %v2622
    %2682 = vmatprep.subr.bf16.mxu0 %v2621
    %2683 = vmatpush2.bf16.msra.mxu0 %v2620
    %2684 = vmatprep.subr.bf16.mxu0 %v2619
    %2685 = vmatpush2.bf16.msra.mxu0 %v2618
    %2686 = vmatprep.subr.bf16.mxu0 %v2617
    %2687 = vmatpush2.bf16.msra.mxu0 %v2616
    %2688 = vmatprep.subr.bf16.mxu0 %v2615
    %2689 = vmatpush2.bf16.msra.mxu0 %v2614
    %2690 = vmatprep.subr.bf16.mxu0 %v2613
    %2691 = vmatpush2.bf16.msra.mxu0 %v2612
    %2692 = vmatprep.mubr.bf16.mxu0 %v2425
    %2693 = vmatmul.mubr.bf16.gmra.mxu0 %v2424
    %v2694 = vpop.f32.mrf.mxu0
    %v2695 = vadd.f32 %v2493, %v2694
    %v2696 = vpop.f32.mrf.mxu0
    %v2697 = vadd.f32 %v2497, %v2696
    %v2698 = vpop.f32.mrf.mxu0
    %v2699 = vadd.f32 %v2493, %v2698
    %v2700 = vpop.f32.mrf.mxu0
    %v2701 = vadd.f32 %v2497, %v2700
    %2702 = vmatprep.mubr.bf16.mxu0 %v2427
    %2703 = vmatmul.mubr.bf16.gmra.mxu0 %v2426
    %v2704 = vpop.f32.mrf.mxu0
    %v2705 = vadd.f32 %v2493, %v2704
    %v2706 = vpop.f32.mrf.mxu0
    %v2707 = vadd.f32 %v2497, %v2706
    %v2708 = vpop.f32.mrf.mxu0
    %v2709 = vadd.f32 %v2493, %v2708
    %v2710 = vpop.f32.mrf.mxu0
    %v2711 = vadd.f32 %v2497, %v2710
    %2712 = vmatprep.mubr.bf16.mxu0 %v2429
    %2713 = vmatmul.mubr.bf16.gmra.mxu0 %v2428
    %v2714 = vpop.f32.mrf.mxu0
    %v2715 = vadd.f32 %v2493, %v2714
    %v2716 = vpop.f32.mrf.mxu0
    %v2717 = vadd.f32 %v2497, %v2716
    %v2718 = vpop.f32.mrf.mxu0
    %v2719 = vadd.f32 %v2493, %v2718
    %v2720 = vpop.f32.mrf.mxu0
    %v2721 = vadd.f32 %v2497, %v2720
    %2722 = vmatprep.mubr.bf16.mxu0 %v2431
    %2723 = vmatmul.mubr.bf16.gmra.mxu0 %v2430
    %v2724 = vpop.f32.mrf.mxu0
    %v2725 = vadd.f32 %v2493, %v2724
    %v2726 = vpop.f32.mrf.mxu0
    %v2727 = vadd.f32 %v2497, %v2726
    %v2728 = vpop.f32.mrf.mxu0
    %v2729 = vadd.f32 %v2493, %v2728
    %v2730 = vpop.f32.mrf.mxu0
    %v2731 = vadd.f32 %v2497, %v2730
    %2732 = vmatprep.mubr.bf16.mxu0 %v2433
    %2733 = vmatmul.mubr.bf16.gmra.mxu0 %v2432
    %v2734 = vpop.f32.mrf.mxu0
    %v2735 = vadd.f32 %v2493, %v2734
    %v2736 = vpop.f32.mrf.mxu0
    %v2737 = vadd.f32 %v2497, %v2736
    %v2738 = vpop.f32.mrf.mxu0
    %v2739 = vadd.f32 %v2493, %v2738
    %v2740 = vpop.f32.mrf.mxu0
    %v2741 = vadd.f32 %v2497, %v2740
    %2742 = vmatprep.mubr.bf16.mxu0 %v2435
    %2743 = vmatmul.mubr.bf16.gmra.mxu0 %v2434
    %v2744 = vpop.f32.mrf.mxu0
    %v2745 = vadd.f32 %v2493, %v2744
    %v2746 = vpop.f32.mrf.mxu0
    %v2747 = vadd.f32 %v2497, %v2746
    %v2748 = vpop.f32.mrf.mxu0
    %v2749 = vadd.f32 %v2493, %v2748
    %v2750 = vpop.f32.mrf.mxu0
    %v2751 = vadd.f32 %v2497, %v2750
    %2752 = vmatprep.mubr.bf16.mxu0 %v2437
    %2753 = vmatmul.mubr.bf16.gmra.mxu0 %v2436
    %v2754 = vpop.f32.mrf.mxu0
    %v2755 = vadd.f32 %v2493, %v2754
    %v2756 = vpop.f32.mrf.mxu0
    %v2757 = vadd.f32 %v2497, %v2756
    %v2758 = vpop.f32.mrf.mxu0
    %v2759 = vadd.f32 %v2493, %v2758
    %v2760 = vpop.f32.mrf.mxu0
    %v2761 = vadd.f32 %v2497, %v2760
    %2762 = vmatprep.mubr.bf16.mxu0 %v2439
    %2763 = vmatmul.mubr.bf16.gmra.mxu0 %v2438
    %v2764 = vpop.f32.mrf.mxu0
    %v2765 = vadd.f32 %v2493, %v2764
    %v2766 = vpop.f32.mrf.mxu0
    %v2767 = vadd.f32 %v2497, %v2766
    %v2768 = vpop.f32.mrf.mxu0
    %v2769 = vadd.f32 %v2493, %v2768
    %v2770 = vpop.f32.mrf.mxu0
    %v2771 = vadd.f32 %v2497, %v2770
    %2772 = vmatprep.mubr.bf16.mxu0 %v2441
    %2773 = vmatmul.mubr.bf16.gmra.mxu0 %v2440
    %v2774 = vpop.f32.mrf.mxu0
    %v2775 = vadd.f32 %v2493, %v2774
    %v2776 = vpop.f32.mrf.mxu0
    %v2777 = vadd.f32 %v2497, %v2776
    %v2778 = vpop.f32.mrf.mxu0
    %v2779 = vadd.f32 %v2493, %v2778
    %v2780 = vpop.f32.mrf.mxu0
    %v2781 = vadd.f32 %v2497, %v2780
    %2782 = vmatprep.mubr.bf16.mxu0 %v2443
    %2783 = vmatmul.mubr.bf16.gmra.mxu0 %v2442
    %v2784 = vpop.f32.mrf.mxu0
    %v2785 = vadd.f32 %v2493, %v2784
    %v2786 = vpop.f32.mrf.mxu0
    %v2787 = vadd.f32 %v2497, %v2786
    %v2788 = vpop.f32.mrf.mxu0
    %v2789 = vadd.f32 %v2493, %v2788
    %v2790 = vpop.f32.mrf.mxu0
    %v2791 = vadd.f32 %v2497, %v2790
    %2792 = vmatprep.mubr.bf16.mxu0 %v2445
    %2793 = vmatmul.mubr.bf16.gmra.mxu0 %v2444
    %v2794 = vpop.f32.mrf.mxu0
    %v2795 = vadd.f32 %v2493, %v2794
    %v2796 = vpop.f32.mrf.mxu0
    %v2797 = vadd.f32 %v2497, %v2796
    %v2798 = vpop.f32.mrf.mxu0
    %v2799 = vadd.f32 %v2493, %v2798
    %v2800 = vpop.f32.mrf.mxu0
    %v2801 = vadd.f32 %v2497, %v2800
    %2802 = vmatprep.mubr.bf16.mxu0 %v2447
    %2803 = vmatmul.mubr.bf16.gmra.mxu0 %v2446
    %v2804 = vpop.f32.mrf.mxu0
    %v2805 = vadd.f32 %v2493, %v2804
    %v2806 = vpop.f32.mrf.mxu0
    %v2807 = vadd.f32 %v2497, %v2806
    %v2808 = vpop.f32.mrf.mxu0
    %v2809 = vadd.f32 %v2493, %v2808
    %v2810 = vpop.f32.mrf.mxu0
    %v2811 = vadd.f32 %v2497, %v2810
    %2812 = vmatprep.mubr.bf16.mxu0 %v2449
    %2813 = vmatmul.mubr.bf16.gmra.mxu0 %v2448
    %v2814 = vpop.f32.mrf.mxu0
    %v2815 = vadd.f32 %v2493, %v2814
    %v2816 = vpop.f32.mrf.mxu0
    %v2817 = vadd.f32 %v2497, %v2816
    %v2818 = vpop.f32.mrf.mxu0
    %v2819 = vadd.f32 %v2493, %v2818
    %v2820 = vpop.f32.mrf.mxu0
    %v2821 = vadd.f32 %v2497, %v2820
    %2822 = vmatprep.mubr.bf16.mxu0 %v2451
    %2823 = vmatmul.mubr.bf16.gmra.mxu0 %v2450
    %v2824 = vpop.f32.mrf.mxu0
    %v2825 = vadd.f32 %v2493, %v2824
    %v2826 = vpop.f32.mrf.mxu0
    %v2827 = vadd.f32 %v2497, %v2826
    %v2828 = vpop.f32.mrf.mxu0
    %v2829 = vadd.f32 %v2493, %v2828
    %v2830 = vpop.f32.mrf.mxu0
    %v2831 = vadd.f32 %v2497, %v2830
    %2832 = vmatprep.mubr.bf16.mxu0 %v2453
    %2833 = vmatmul.mubr.bf16.gmra.mxu0 %v2452
    %v2834 = vpop.f32.mrf.mxu0
    %v2835 = vadd.f32 %v2493, %v2834
    %v2836 = vpop.f32.mrf.mxu0
    %v2837 = vadd.f32 %v2497, %v2836
    %v2838 = vpop.f32.mrf.mxu0
    %v2839 = vadd.f32 %v2493, %v2838
    %v2840 = vpop.f32.mrf.mxu0
    %v2841 = vadd.f32 %v2497, %v2840
    %2842 = vmatprep.mubr.bf16.mxu0 %v2455
    %2843 = vmatmul.mubr.bf16.gmra.mxu0 %v2454
    %v2844 = vpop.f32.mrf.mxu0
    %v2845 = vadd.f32 %v2493, %v2844
    %v2846 = vpop.f32.mrf.mxu0
    %v2847 = vadd.f32 %v2497, %v2846
    %v2848 = vpop.f32.mrf.mxu0
    %v2849 = vadd.f32 %v2493, %v2848
    %v2850 = vpop.f32.mrf.mxu0
    %v2851 = vadd.f32 %v2497, %v2850
    %2852 = vdwg.mxu0
    %v2853 = vsub.f32 0.0, %v2695
    %v2854 = vsub.f32 0.0, %v2697
    %v2855 = vsub.f32 0.0, %v2699
    %v2856 = vsub.f32 0.0, %v2701
    %v2857 = vsub.f32 0.0, %v2705
    %v2858 = vsub.f32 0.0, %v2707
    %v2859 = vsub.f32 0.0, %v2709
    %v2860 = vsub.f32 0.0, %v2711
    %v2861 = vsub.f32 0.0, %v2715
    %v2862 = vsub.f32 0.0, %v2717
    %v2863 = vsub.f32 0.0, %v2719
    %v2864 = vsub.f32 0.0, %v2721
    %v2865 = vsub.f32 0.0, %v2725
    %v2866 = vsub.f32 0.0, %v2727
    %v2867 = vsub.f32 0.0, %v2729
    %v2868 = vsub.f32 0.0, %v2731
    %v2869 = vsub.f32 0.0, %v2735
    %v2870 = vsub.f32 0.0, %v2737
    %v2871 = vsub.f32 0.0, %v2739
    %v2872 = vsub.f32 0.0, %v2741
    %v2873 = vsub.f32 0.0, %v2745
    %v2874 = vsub.f32 0.0, %v2747
    %v2875 = vsub.f32 0.0, %v2749
    %v2876 = vsub.f32 0.0, %v2751
    %v2877 = vsub.f32 0.0, %v2755
    %v2878 = vsub.f32 0.0, %v2757
    %v2879 = vsub.f32 0.0, %v2759
    %v2880 = vsub.f32 0.0, %v2761
    %v2881 = vsub.f32 0.0, %v2765
    %v2882 = vsub.f32 0.0, %v2767
    %v2883 = vsub.f32 0.0, %v2769
    %v2884 = vsub.f32 0.0, %v2771
    %v2885 = vsub.f32 0.0, %v2775
    %v2886 = vsub.f32 0.0, %v2777
    %v2887 = vsub.f32 0.0, %v2779
    %v2888 = vsub.f32 0.0, %v2781
    %v2889 = vsub.f32 0.0, %v2785
    %v2890 = vsub.f32 0.0, %v2787
    %v2891 = vsub.f32 0.0, %v2789
    %v2892 = vsub.f32 0.0, %v2791
    %v2893 = vsub.f32 0.0, %v2795
    %v2894 = vsub.f32 0.0, %v2797
    %v2895 = vsub.f32 0.0, %v2799
    %v2896 = vsub.f32 0.0, %v2801
    %v2897 = vsub.f32 0.0, %v2805
    %v2898 = vsub.f32 0.0, %v2807
    %v2899 = vsub.f32 0.0, %v2809
    %v2900 = vsub.f32 0.0, %v2811
    %v2901 = vsub.f32 0.0, %v2815
    %v2902 = vsub.f32 0.0, %v2817
    %v2903 = vsub.f32 0.0, %v2819
    %v2904 = vsub.f32 0.0, %v2821
    %v2905 = vsub.f32 0.0, %v2825
    %v2906 = vsub.f32 0.0, %v2827
    %v2907 = vsub.f32 0.0, %v2829
    %v2908 = vsub.f32 0.0, %v2831
    %v2909 = vsub.f32 0.0, %v2835
    %v2910 = vsub.f32 0.0, %v2837
    %v2911 = vsub.f32 0.0, %v2839
    %v2912 = vsub.f32 0.0, %v2841
    %v2913 = vsub.f32 0.0, %v2845
    %v2914 = vsub.f32 0.0, %v2847
    %v2915 = vsub.f32 0.0, %v2849
    %v2916 = vsub.f32 0.0, %v2851
    %v2917 = vmul.f32 %v2853, 1.442695
    %v2918 = vpow.pop %v2917
    %v2919 = vmul.f32 %v2854, 1.442695
    %v2920 = vpow.pop %v2919
    %v2921 = vmul.f32 %v2855, 1.442695
    %v2922 = vpow.pop %v2921
    %v2923 = vmul.f32 %v2856, 1.442695
    %v2924 = vpow.pop %v2923
    %v2925 = vmul.f32 %v2857, 1.442695
    %v2926 = vpow.pop %v2925
    %v2927 = vmul.f32 %v2858, 1.442695
    %v2928 = vpow.pop %v2927
    %v2929 = vmul.f32 %v2859, 1.442695
    %v2930 = vpow.pop %v2929
    %v2931 = vmul.f32 %v2860, 1.442695
    %v2932 = vpow.pop %v2931
    %v2933 = vmul.f32 %v2861, 1.442695
    %v2934 = vpow.pop %v2933
    %v2935 = vmul.f32 %v2862, 1.442695
    %v2936 = vpow.pop %v2935
    %v2937 = vmul.f32 %v2863, 1.442695
    %v2938 = vpow.pop %v2937
    %v2939 = vmul.f32 %v2864, 1.442695
    %v2940 = vpow.pop %v2939
    %v2941 = vmul.f32 %v2865, 1.442695
    %v2942 = vpow.pop %v2941
    %v2943 = vmul.f32 %v2866, 1.442695
    %v2944 = vpow.pop %v2943
    %v2945 = vmul.f32 %v2867, 1.442695
    %v2946 = vpow.pop %v2945
    %v2947 = vmul.f32 %v2868, 1.442695
    %v2948 = vpow.pop %v2947
    %v2949 = vmul.f32 %v2869, 1.442695
    %v2950 = vpow.pop %v2949
    %v2951 = vmul.f32 %v2870, 1.442695
    %v2952 = vpow.pop %v2951
    %v2953 = vmul.f32 %v2871, 1.442695
    %v2954 = vpow.pop %v2953
    %v2955 = vmul.f32 %v2872, 1.442695
    %v2956 = vpow.pop %v2955
    %v2957 = vmul.f32 %v2873, 1.442695
    %v2958 = vpow.pop %v2957
    %v2959 = vmul.f32 %v2874, 1.442695
    %v2960 = vpow.pop %v2959
    %v2961 = vmul.f32 %v2875, 1.442695
    %v2962 = vpow.pop %v2961
    %v2963 = vmul.f32 %v2876, 1.442695
    %v2964 = vpow.pop %v2963
    %v2965 = vmul.f32 %v2877, 1.442695
    %v2966 = vpow.pop %v2965
    %v2967 = vmul.f32 %v2878, 1.442695
    %v2968 = vpow.pop %v2967
    %v2969 = vmul.f32 %v2879, 1.442695
    %v2970 = vpow.pop %v2969
    %v2971 = vmul.f32 %v2880, 1.442695
    %v2972 = vpow.pop %v2971
    %v2973 = vmul.f32 %v2881, 1.442695
    %v2974 = vpow.pop %v2973
    %v2975 = vmul.f32 %v2882, 1.442695
    %v2976 = vpow.pop %v2975
    %v2977 = vmul.f32 %v2883, 1.442695
    %v2978 = vpow.pop %v2977
    %v2979 = vmul.f32 %v2884, 1.442695
    %v2980 = vpow.pop %v2979
    %v2981 = vmul.f32 %v2885, 1.442695
    %v2982 = vpow.pop %v2981
    %v2983 = vmul.f32 %v2886, 1.442695
    %v2984 = vpow.pop %v2983
    %v2985 = vmul.f32 %v2887, 1.442695
    %v2986 = vpow.pop %v2985
    %v2987 = vmul.f32 %v2888, 1.442695
    %v2988 = vpow.pop %v2987
    %v2989 = vmul.f32 %v2889, 1.442695
    %v2990 = vpow.pop %v2989
    %v2991 = vmul.f32 %v2890, 1.442695
    %v2992 = vpow.pop %v2991
    %v2993 = vmul.f32 %v2891, 1.442695
    %v2994 = vpow.pop %v2993
    %v2995 = vmul.f32 %v2892, 1.442695
    %v2996 = vpow.pop %v2995
    %v2997 = vmul.f32 %v2893, 1.442695
    %v2998 = vpow.pop %v2997
    %v2999 = vmul.f32 %v2894, 1.442695
    %v3000 = vpow.pop %v2999
    %v3001 = vmul.f32 %v2895, 1.442695
    %v3002 = vpow.pop %v3001
    %v3003 = vmul.f32 %v2896, 1.442695
    %v3004 = vpow.pop %v3003
    %v3005 = vmul.f32 %v2897, 1.442695
    %v3006 = vpow.pop %v3005
    %v3007 = vmul.f32 %v2898, 1.442695
    %v3008 = vpow.pop %v3007
    %v3009 = vmul.f32 %v2899, 1.442695
    %v3010 = vpow.pop %v3009
    %v3011 = vmul.f32 %v2900, 1.442695
    %v3012 = vpow.pop %v3011
    %v3013 = vmul.f32 %v2901, 1.442695
    %v3014 = vpow.pop %v3013
    %v3015 = vmul.f32 %v2902, 1.442695
    %v3016 = vpow.pop %v3015
    %v3017 = vmul.f32 %v2903, 1.442695
    %v3018 = vpow.pop %v3017
    %v3019 = vmul.f32 %v2904, 1.442695
    %v3020 = vpow.pop %v3019
    %v3021 = vmul.f32 %v2905, 1.442695
    %v3022 = vpow.pop %v3021
    %v3023 = vmul.f32 %v2906, 1.442695
    %v3024 = vpow.pop %v3023
    %v3025 = vmul.f32 %v2907, 1.442695
    %v3026 = vpow.pop %v3025
    %v3027 = vmul.f32 %v2908, 1.442695
    %v3028 = vpow.pop %v3027
    %v3029 = vmul.f32 %v2909, 1.442695
    %v3030 = vpow.pop %v3029
    %v3031 = vmul.f32 %v2910, 1.442695
    %v3032 = vpow.pop %v3031
    %v3033 = vmul.f32 %v2911, 1.442695
    %v3034 = vpow.pop %v3033
    %v3035 = vmul.f32 %v2912, 1.442695
    %v3036 = vpow.pop %v3035
    %v3037 = vmul.f32 %v2913, 1.442695
    %v3038 = vpow.pop %v3037
    %v3039 = vmul.f32 %v2914, 1.442695
    %v3040 = vpow.pop %v3039
    %v3041 = vmul.f32 %v2915, 1.442695
    %v3042 = vpow.pop %v3041
    %v3043 = vmul.f32 %v2916, 1.442695
    %v3044 = vpow.pop %v3043
    %v3045 = vadd.f32 %v2918, 1.0
    %v3046 = vadd.f32 %v2920, 1.0
    %v3047 = vadd.f32 %v2922, 1.0
    %v3048 = vadd.f32 %v2924, 1.0
    %v3049 = vadd.f32 %v2926, 1.0
    %v3050 = vadd.f32 %v2928, 1.0
    %v3051 = vadd.f32 %v2930, 1.0
    %v3052 = vadd.f32 %v2932, 1.0
    %v3053 = vadd.f32 %v2934, 1.0
    %v3054 = vadd.f32 %v2936, 1.0
    %v3055 = vadd.f32 %v2938, 1.0
    %v3056 = vadd.f32 %v2940, 1.0
    %v3057 = vadd.f32 %v2942, 1.0
    %v3058 = vadd.f32 %v2944, 1.0
    %v3059 = vadd.f32 %v2946, 1.0
    %v3060 = vadd.f32 %v2948, 1.0
    %v3061 = vadd.f32 %v2950, 1.0
    %v3062 = vadd.f32 %v2952, 1.0
    %v3063 = vadd.f32 %v2954, 1.0
    %v3064 = vadd.f32 %v2956, 1.0
    %v3065 = vadd.f32 %v2958, 1.0
    %v3066 = vadd.f32 %v2960, 1.0
    %v3067 = vadd.f32 %v2962, 1.0
    %v3068 = vadd.f32 %v2964, 1.0
    %v3069 = vadd.f32 %v2966, 1.0
    %v3070 = vadd.f32 %v2968, 1.0
    %v3071 = vadd.f32 %v2970, 1.0
    %v3072 = vadd.f32 %v2972, 1.0
    %v3073 = vadd.f32 %v2974, 1.0
    %v3074 = vadd.f32 %v2976, 1.0
    %v3075 = vadd.f32 %v2978, 1.0
    %v3076 = vadd.f32 %v2980, 1.0
    %v3077 = vadd.f32 %v2982, 1.0
    %v3078 = vadd.f32 %v2984, 1.0
    %v3079 = vadd.f32 %v2986, 1.0
    %v3080 = vadd.f32 %v2988, 1.0
    %v3081 = vadd.f32 %v2990, 1.0
    %v3082 = vadd.f32 %v2992, 1.0
    %v3083 = vadd.f32 %v2994, 1.0
    %v3084 = vadd.f32 %v2996, 1.0
    %v3085 = vadd.f32 %v2998, 1.0
    %v3086 = vadd.f32 %v3000, 1.0
    %v3087 = vadd.f32 %v3002, 1.0
    %v3088 = vadd.f32 %v3004, 1.0
    %v3089 = vadd.f32 %v3006, 1.0
    %v3090 = vadd.f32 %v3008, 1.0
    %v3091 = vadd.f32 %v3010, 1.0
    %v3092 = vadd.f32 %v3012, 1.0
    %v3093 = vadd.f32 %v3014, 1.0
    %v3094 = vadd.f32 %v3016, 1.0
    %v3095 = vadd.f32 %v3018, 1.0
    %v3096 = vadd.f32 %v3020, 1.0
    %v3097 = vadd.f32 %v3022, 1.0
    %v3098 = vadd.f32 %v3024, 1.0
    %v3099 = vadd.f32 %v3026, 1.0
    %v3100 = vadd.f32 %v3028, 1.0
    %v3101 = vadd.f32 %v3030, 1.0
    %v3102 = vadd.f32 %v3032, 1.0
    %v3103 = vadd.f32 %v3034, 1.0
    %v3104 = vadd.f32 %v3036, 1.0
    %v3105 = vadd.f32 %v3038, 1.0
    %v3106 = vadd.f32 %v3040, 1.0
    %v3107 = vadd.f32 %v3042, 1.0
    %v3108 = vadd.f32 %v3044, 1.0
    %v3109 = vrcp.pop %v3045
    %v3110 = vrcp.pop %v3046
    %v3111 = vrcp.pop %v3047
    %v3112 = vrcp.pop %v3048
    %v3113 = vrcp.pop %v3049
    %v3114 = vrcp.pop %v3050
    %v3115 = vrcp.pop %v3051
    %v3116 = vrcp.pop %v3052
    %v3117 = vrcp.pop %v3053
    %v3118 = vrcp.pop %v3054
    %v3119 = vrcp.pop %v3055
    %v3120 = vrcp.pop %v3056
    %v3121 = vrcp.pop %v3057
    %v3122 = vrcp.pop %v3058
    %v3123 = vrcp.pop %v3059
    %v3124 = vrcp.pop %v3060
    %v3125 = vrcp.pop %v3061
    %v3126 = vrcp.pop %v3062
    %v3127 = vrcp.pop %v3063
    %v3128 = vrcp.pop %v3064
    %v3129 = vrcp.pop %v3065
    %v3130 = vrcp.pop %v3066
    %v3131 = vrcp.pop %v3067
    %v3132 = vrcp.pop %v3068
    %v3133 = vrcp.pop %v3069
    %v3134 = vrcp.pop %v3070
    %v3135 = vrcp.pop %v3071
    %v3136 = vrcp.pop %v3072
    %v3137 = vrcp.pop %v3073
    %v3138 = vrcp.pop %v3074
    %v3139 = vrcp.pop %v3075
    %v3140 = vrcp.pop %v3076
    %v3141 = vrcp.pop %v3077
    %v3142 = vrcp.pop %v3078
    %v3143 = vrcp.pop %v3079
    %v3144 = vrcp.pop %v3080
    %v3145 = vrcp.pop %v3081
    %v3146 = vrcp.pop %v3082
    %v3147 = vrcp.pop %v3083
    %v3148 = vrcp.pop %v3084
    %v3149 = vrcp.pop %v3085
    %v3150 = vrcp.pop %v3086
    %v3151 = vrcp.pop %v3087
    %v3152 = vrcp.pop %v3088
    %v3153 = vrcp.pop %v3089
    %v3154 = vrcp.pop %v3090
    %v3155 = vrcp.pop %v3091
    %v3156 = vrcp.pop %v3092
    %v3157 = vrcp.pop %v3093
    %v3158 = vrcp.pop %v3094
    %v3159 = vrcp.pop %v3095
    %v3160 = vrcp.pop %v3096
    %v3161 = vrcp.pop %v3097
    %v3162 = vrcp.pop %v3098
    %v3163 = vrcp.pop %v3099
    %v3164 = vrcp.pop %v3100
    %v3165 = vrcp.pop %v3101
    %v3166 = vrcp.pop %v3102
    %v3167 = vrcp.pop %v3103
    %v3168 = vrcp.pop %v3104
    %v3169 = vrcp.pop %v3105
    %v3170 = vrcp.pop %v3106
    %v3171 = vrcp.pop %v3107
    %v3172 = vrcp.pop %v3108
    %v3173 = vld [vmem:[#allocation11] sm:$0xff]
    %v3174 = vld [vmem:[#allocation11 + $0x8] sm:$0xff]
    %v3175 = vld [vmem:[#allocation11 + $0x10] sm:$0xff]
    %v3176 = vld [vmem:[#allocation11 + $0x18] sm:$0xff]
    %v3177 = vld [vmem:[#allocation11 + $0x20] sm:$0xff]
    %v3178 = vld [vmem:[#allocation11 + $0x28] sm:$0xff]
    %v3179 = vld [vmem:[#allocation11 + $0x30] sm:$0xff]
    %v3180 = vld [vmem:[#allocation11 + $0x38] sm:$0xff]
    %v3181 = vld [vmem:[#allocation11 + $0x40] sm:$0xff]
    %v3182 = vld [vmem:[#allocation11 + $0x48] sm:$0xff]
    %v3183 = vld [vmem:[#allocation11 + $0x50] sm:$0xff]
    %v3184 = vld [vmem:[#allocation11 + $0x58] sm:$0xff]
    %v3185 = vld [vmem:[#allocation11 + $0x60] sm:$0xff]
    %v3186 = vld [vmem:[#allocation11 + $0x68] sm:$0xff]
    %v3187 = vld [vmem:[#allocation11 + $0x70] sm:$0xff]
    %v3188 = vld [vmem:[#allocation11 + $0x78] sm:$0xff]
    %v3189 = vld [vmem:[#allocation11 + $0x80] sm:$0xff]
    %v3190 = vld [vmem:[#allocation11 + $0x88] sm:$0xff]
    %v3191 = vld [vmem:[#allocation11 + $0x90] sm:$0xff]
    %v3192 = vld [vmem:[#allocation11 + $0x98] sm:$0xff]
    %v3193 = vld [vmem:[#allocation11 + $0xa0] sm:$0xff]
    %v3194 = vld [vmem:[#allocation11 + $0xa8] sm:$0xff]
    %v3195 = vld [vmem:[#allocation11 + $0xb0] sm:$0xff]
    %v3196 = vld [vmem:[#allocation11 + $0xb8] sm:$0xff]
    %v3197 = vld [vmem:[#allocation11 + $0xc0] sm:$0xff]
    %v3198 = vld [vmem:[#allocation11 + $0xc8] sm:$0xff]
    %v3199 = vld [vmem:[#allocation11 + $0xd0] sm:$0xff]
    %v3200 = vld [vmem:[#allocation11 + $0xd8] sm:$0xff]
    %v3201 = vld [vmem:[#allocation11 + $0xe0] sm:$0xff]
    %v3202 = vld [vmem:[#allocation11 + $0xe8] sm:$0xff]
    %v3203 = vld [vmem:[#allocation11 + $0xf0] sm:$0xff]
    %v3204 = vld [vmem:[#allocation11 + $0xf8] sm:$0xff]
    %v3237 = vunpack.c.l.b16 %v3173
    %v3238 = vunpack.c.h.b16 %v3173
    %v3239 = vunpack.c.l.b16 %v3174
    %v3240 = vunpack.c.h.b16 %v3174
    %v3241 = vunpack.c.l.b16 %v3175
    %v3242 = vunpack.c.h.b16 %v3175
    %v3243 = vunpack.c.l.b16 %v3176
    %v3244 = vunpack.c.h.b16 %v3176
    %v3245 = vunpack.c.l.b16 %v3177
    %v3246 = vunpack.c.h.b16 %v3177
    %v3247 = vunpack.c.l.b16 %v3178
    %v3248 = vunpack.c.h.b16 %v3178
    %v3249 = vunpack.c.l.b16 %v3179
    %v3250 = vunpack.c.h.b16 %v3179
    %v3251 = vunpack.c.l.b16 %v3180
    %v3252 = vunpack.c.h.b16 %v3180
    %v3253 = vunpack.c.l.b16 %v3181
    %v3254 = vunpack.c.h.b16 %v3181
    %v3255 = vunpack.c.l.b16 %v3182
    %v3256 = vunpack.c.h.b16 %v3182
    %v3257 = vunpack.c.l.b16 %v3183
    %v3258 = vunpack.c.h.b16 %v3183
    %v3259 = vunpack.c.l.b16 %v3184
    %v3260 = vunpack.c.h.b16 %v3184
    %v3261 = vunpack.c.l.b16 %v3185
    %v3262 = vunpack.c.h.b16 %v3185
    %v3263 = vunpack.c.l.b16 %v3186
    %v3264 = vunpack.c.h.b16 %v3186
    %v3265 = vunpack.c.l.b16 %v3187
    %v3266 = vunpack.c.h.b16 %v3187
    %v3267 = vunpack.c.l.b16 %v3188
    %v3268 = vunpack.c.h.b16 %v3188
    %v3269 = vunpack.c.l.b16 %v3189
    %v3270 = vunpack.c.h.b16 %v3189
    %v3271 = vunpack.c.l.b16 %v3190
    %v3272 = vunpack.c.h.b16 %v3190
    %v3273 = vunpack.c.l.b16 %v3191
    %v3274 = vunpack.c.h.b16 %v3191
    %v3275 = vunpack.c.l.b16 %v3192
    %v3276 = vunpack.c.h.b16 %v3192
    %v3277 = vunpack.c.l.b16 %v3193
    %v3278 = vunpack.c.h.b16 %v3193
    %v3279 = vunpack.c.l.b16 %v3194
    %v3280 = vunpack.c.h.b16 %v3194
    %v3281 = vunpack.c.l.b16 %v3195
    %v3282 = vunpack.c.h.b16 %v3195
    %v3283 = vunpack.c.l.b16 %v3196
    %v3284 = vunpack.c.h.b16 %v3196
    %v3285 = vunpack.c.l.b16 %v3197
    %v3286 = vunpack.c.h.b16 %v3197
    %v3287 = vunpack.c.l.b16 %v3198
    %v3288 = vunpack.c.h.b16 %v3198
    %v3289 = vunpack.c.l.b16 %v3199
    %v3290 = vunpack.c.h.b16 %v3199
    %v3291 = vunpack.c.l.b16 %v3200
    %v3292 = vunpack.c.h.b16 %v3200
    %v3293 = vunpack.c.l.b16 %v3201
    %v3294 = vunpack.c.h.b16 %v3201
    %v3295 = vunpack.c.l.b16 %v3202
    %v3296 = vunpack.c.h.b16 %v3202
    %v3297 = vunpack.c.l.b16 %v3203
    %v3298 = vunpack.c.h.b16 %v3203
    %v3299 = vunpack.c.l.b16 %v3204
    %v3300 = vunpack.c.h.b16 %v3204
    %v3301 = vpack.c.b16 %v3239, %v3237
    %v3302 = vpack.c.b16 %v3240, %v3238
    %v3303 = vpack.c.b16 %v3243, %v3241
    %v3304 = vpack.c.b16 %v3244, %v3242
    %v3305 = vpack.c.b16 %v3247, %v3245
    %v3306 = vpack.c.b16 %v3248, %v3246
    %v3307 = vpack.c.b16 %v3251, %v3249
    %v3308 = vpack.c.b16 %v3252, %v3250
    %v3309 = vpack.c.b16 %v3255, %v3253
    %v3310 = vpack.c.b16 %v3256, %v3254
    %v3311 = vpack.c.b16 %v3259, %v3257
    %v3312 = vpack.c.b16 %v3260, %v3258
    %v3313 = vpack.c.b16 %v3263, %v3261
    %v3314 = vpack.c.b16 %v3264, %v3262
    %v3315 = vpack.c.b16 %v3267, %v3265
    %v3316 = vpack.c.b16 %v3268, %v3266
    %v3317 = vpack.c.b16 %v3271, %v3269
    %v3318 = vpack.c.b16 %v3272, %v3270
    %v3319 = vpack.c.b16 %v3275, %v3273
    %v3320 = vpack.c.b16 %v3276, %v3274
    %v3321 = vpack.c.b16 %v3279, %v3277
    %v3322 = vpack.c.b16 %v3280, %v3278
    %v3323 = vpack.c.b16 %v3283, %v3281
    %v3324 = vpack.c.b16 %v3284, %v3282
    %v3325 = vpack.c.b16 %v3287, %v3285
    %v3326 = vpack.c.b16 %v3288, %v3286
    %v3327 = vpack.c.b16 %v3291, %v3289
    %v3328 = vpack.c.b16 %v3292, %v3290
    %v3329 = vpack.c.b16 %v3295, %v3293
    %v3330 = vpack.c.b16 %v3296, %v3294
    %v3331 = vpack.c.b16 %v3299, %v3297
    %v3332 = vpack.c.b16 %v3300, %v3298
    %3365 = vmatprep.subr.bf16.mxu0 %v3316
    %3366 = vmatpush1.bf16.msra.mxu0 %v3315
    %3367 = vmatprep.subr.bf16.mxu0 %v3314
    %3368 = vmatpush1.bf16.msra.mxu0 %v3313
    %3369 = vmatprep.subr.bf16.mxu0 %v3312
    %3370 = vmatpush1.bf16.msra.mxu0 %v3311
    %3371 = vmatprep.subr.bf16.mxu0 %v3310
    %3372 = vmatpush1.bf16.msra.mxu0 %v3309
    %3373 = vmatprep.subr.bf16.mxu0 %v3308
    %3374 = vmatpush1.bf16.msra.mxu0 %v3307
    %3375 = vmatprep.subr.bf16.mxu0 %v3306
    %3376 = vmatpush1.bf16.msra.mxu0 %v3305
    %3377 = vmatprep.subr.bf16.mxu0 %v3304
    %3378 = vmatpush1.bf16.msra.mxu0 %v3303
    %3379 = vmatprep.subr.bf16.mxu0 %v3302
    %3380 = vmatpush1.bf16.msra.mxu0 %v3301
    %3381 = vmatprep.subr.bf16.mxu0 %v3332
    %3382 = vmatpush2.bf16.msra.mxu0 %v3331
    %3383 = vmatprep.subr.bf16.mxu0 %v3330
    %3384 = vmatpush2.bf16.msra.mxu0 %v3329
    %3385 = vmatprep.subr.bf16.mxu0 %v3328
    %3386 = vmatpush2.bf16.msra.mxu0 %v3327
    %3387 = vmatprep.subr.bf16.mxu0 %v3326
    %3388 = vmatpush2.bf16.msra.mxu0 %v3325
    %3389 = vmatprep.subr.bf16.mxu0 %v3324
    %3390 = vmatpush2.bf16.msra.mxu0 %v3323
    %3391 = vmatprep.subr.bf16.mxu0 %v3322
    %3392 = vmatpush2.bf16.msra.mxu0 %v3321
    %3393 = vmatprep.subr.bf16.mxu0 %v3320
    %3394 = vmatpush2.bf16.msra.mxu0 %v3319
    %3395 = vmatprep.subr.bf16.mxu0 %v3318
    %3396 = vmatpush2.bf16.msra.mxu0 %v3317
    %3397 = vmatprep.mubr.bf16.mxu0 %v1526
    %3398 = vmatmul.mubr.bf16.gmra.mxu0 %v1525
    %v3399 = vpop.f32.mrf.mxu0
    %v3400 = vadd.f32 0.0, %v3399
    %v3401 = vpop.f32.mrf.mxu0
    %v3402 = vadd.f32 0.0, %v3401
    %v3403 = vpop.f32.mrf.mxu0
    %v3404 = vadd.f32 0.0, %v3403
    %v3405 = vpop.f32.mrf.mxu0
    %v3406 = vadd.f32 0.0, %v3405
    %3407 = vmatprep.mubr.bf16.mxu0 %v1528
    %3408 = vmatmul.mubr.bf16.gmra.mxu0 %v1527
    %v3409 = vpop.f32.mrf.mxu0
    %v3410 = vadd.f32 0.0, %v3409
    %v3411 = vpop.f32.mrf.mxu0
    %v3412 = vadd.f32 0.0, %v3411
    %v3413 = vpop.f32.mrf.mxu0
    %v3414 = vadd.f32 0.0, %v3413
    %v3415 = vpop.f32.mrf.mxu0
    %v3416 = vadd.f32 0.0, %v3415
    %3417 = vmatprep.mubr.bf16.mxu0 %v1530
    %3418 = vmatmul.mubr.bf16.gmra.mxu0 %v1529
    %v3419 = vpop.f32.mrf.mxu0
    %v3420 = vadd.f32 0.0, %v3419
    %v3421 = vpop.f32.mrf.mxu0
    %v3422 = vadd.f32 0.0, %v3421
    %v3423 = vpop.f32.mrf.mxu0
    %v3424 = vadd.f32 0.0, %v3423
    %v3425 = vpop.f32.mrf.mxu0
    %v3426 = vadd.f32 0.0, %v3425
    %3427 = vmatprep.mubr.bf16.mxu0 %v1532
    %3428 = vmatmul.mubr.bf16.gmra.mxu0 %v1531
    %v3429 = vpop.f32.mrf.mxu0
    %v3430 = vadd.f32 0.0, %v3429
    %v3431 = vpop.f32.mrf.mxu0
    %v3432 = vadd.f32 0.0, %v3431
    %v3433 = vpop.f32.mrf.mxu0
    %v3434 = vadd.f32 0.0, %v3433
    %v3435 = vpop.f32.mrf.mxu0
    %v3436 = vadd.f32 0.0, %v3435
    %3437 = vmatprep.mubr.bf16.mxu0 %v1534
    %3438 = vmatmul.mubr.bf16.gmra.mxu0 %v1533
    %v3439 = vpop.f32.mrf.mxu0
    %v3440 = vadd.f32 0.0, %v3439
    %v3441 = vpop.f32.mrf.mxu0
    %v3442 = vadd.f32 0.0, %v3441
    %v3443 = vpop.f32.mrf.mxu0
    %v3444 = vadd.f32 0.0, %v3443
    %v3445 = vpop.f32.mrf.mxu0
    %v3446 = vadd.f32 0.0, %v3445
    %3447 = vmatprep.mubr.bf16.mxu0 %v1536
    %3448 = vmatmul.mubr.bf16.gmra.mxu0 %v1535
    %v3449 = vpop.f32.mrf.mxu0
    %v3450 = vadd.f32 0.0, %v3449
    %v3451 = vpop.f32.mrf.mxu0
    %v3452 = vadd.f32 0.0, %v3451
    %v3453 = vpop.f32.mrf.mxu0
    %v3454 = vadd.f32 0.0, %v3453
    %v3455 = vpop.f32.mrf.mxu0
    %v3456 = vadd.f32 0.0, %v3455
    %3457 = vmatprep.mubr.bf16.mxu0 %v1538
    %3458 = vmatmul.mubr.bf16.gmra.mxu0 %v1537
    %v3459 = vpop.f32.mrf.mxu0
    %v3460 = vadd.f32 0.0, %v3459
    %v3461 = vpop.f32.mrf.mxu0
    %v3462 = vadd.f32 0.0, %v3461
    %v3463 = vpop.f32.mrf.mxu0
    %v3464 = vadd.f32 0.0, %v3463
    %v3465 = vpop.f32.mrf.mxu0
    %v3466 = vadd.f32 0.0, %v3465
    %3467 = vmatprep.mubr.bf16.mxu0 %v1540
    %3468 = vmatmul.mubr.bf16.gmra.mxu0 %v1539
    %v3469 = vpop.f32.mrf.mxu0
    %v3470 = vadd.f32 0.0, %v3469
    %v3471 = vpop.f32.mrf.mxu0
    %v3472 = vadd.f32 0.0, %v3471
    %v3473 = vpop.f32.mrf.mxu0
    %v3474 = vadd.f32 0.0, %v3473
    %v3475 = vpop.f32.mrf.mxu0
    %v3476 = vadd.f32 0.0, %v3475
    %3477 = vmatprep.mubr.bf16.mxu0 %v1542
    %3478 = vmatmul.mubr.bf16.gmra.mxu0 %v1541
    %v3479 = vpop.f32.mrf.mxu0
    %v3480 = vadd.f32 0.0, %v3479
    %v3481 = vpop.f32.mrf.mxu0
    %v3482 = vadd.f32 0.0, %v3481
    %v3483 = vpop.f32.mrf.mxu0
    %v3484 = vadd.f32 0.0, %v3483
    %v3485 = vpop.f32.mrf.mxu0
    %v3486 = vadd.f32 0.0, %v3485
    %3487 = vmatprep.mubr.bf16.mxu0 %v1544
    %3488 = vmatmul.mubr.bf16.gmra.mxu0 %v1543
    %v3489 = vpop.f32.mrf.mxu0
    %v3490 = vadd.f32 0.0, %v3489
    %v3491 = vpop.f32.mrf.mxu0
    %v3492 = vadd.f32 0.0, %v3491
    %v3493 = vpop.f32.mrf.mxu0
    %v3494 = vadd.f32 0.0, %v3493
    %v3495 = vpop.f32.mrf.mxu0
    %v3496 = vadd.f32 0.0, %v3495
    %3497 = vmatprep.mubr.bf16.mxu0 %v1546
    %3498 = vmatmul.mubr.bf16.gmra.mxu0 %v1545
    %v3499 = vpop.f32.mrf.mxu0
    %v3500 = vadd.f32 0.0, %v3499
    %v3501 = vpop.f32.mrf.mxu0
    %v3502 = vadd.f32 0.0, %v3501
    %v3503 = vpop.f32.mrf.mxu0
    %v3504 = vadd.f32 0.0, %v3503
    %v3505 = vpop.f32.mrf.mxu0
    %v3506 = vadd.f32 0.0, %v3505
    %3507 = vmatprep.mubr.bf16.mxu0 %v1548
    %3508 = vmatmul.mubr.bf16.gmra.mxu0 %v1547
    %v3509 = vpop.f32.mrf.mxu0
    %v3510 = vadd.f32 0.0, %v3509
    %v3511 = vpop.f32.mrf.mxu0
    %v3512 = vadd.f32 0.0, %v3511
    %v3513 = vpop.f32.mrf.mxu0
    %v3514 = vadd.f32 0.0, %v3513
    %v3515 = vpop.f32.mrf.mxu0
    %v3516 = vadd.f32 0.0, %v3515
    %3517 = vmatprep.mubr.bf16.mxu0 %v1550
    %3518 = vmatmul.mubr.bf16.gmra.mxu0 %v1549
    %v3519 = vpop.f32.mrf.mxu0
    %v3520 = vadd.f32 0.0, %v3519
    %v3521 = vpop.f32.mrf.mxu0
    %v3522 = vadd.f32 0.0, %v3521
    %v3523 = vpop.f32.mrf.mxu0
    %v3524 = vadd.f32 0.0, %v3523
    %v3525 = vpop.f32.mrf.mxu0
    %v3526 = vadd.f32 0.0, %v3525
    %3527 = vmatprep.mubr.bf16.mxu0 %v1552
    %3528 = vmatmul.mubr.bf16.gmra.mxu0 %v1551
    %v3529 = vpop.f32.mrf.mxu0
    %v3530 = vadd.f32 0.0, %v3529
    %v3531 = vpop.f32.mrf.mxu0
    %v3532 = vadd.f32 0.0, %v3531
    %v3533 = vpop.f32.mrf.mxu0
    %v3534 = vadd.f32 0.0, %v3533
    %v3535 = vpop.f32.mrf.mxu0
    %v3536 = vadd.f32 0.0, %v3535
    %3537 = vmatprep.mubr.bf16.mxu0 %v1554
    %3538 = vmatmul.mubr.bf16.gmra.mxu0 %v1553
    %v3539 = vpop.f32.mrf.mxu0
    %v3540 = vadd.f32 0.0, %v3539
    %v3541 = vpop.f32.mrf.mxu0
    %v3542 = vadd.f32 0.0, %v3541
    %v3543 = vpop.f32.mrf.mxu0
    %v3544 = vadd.f32 0.0, %v3543
    %v3545 = vpop.f32.mrf.mxu0
    %v3546 = vadd.f32 0.0, %v3545
    %3547 = vmatprep.mubr.bf16.mxu0 %v1556
    %3548 = vmatmul.mubr.bf16.gmra.mxu0 %v1555
    %v3549 = vpop.f32.mrf.mxu0
    %v3550 = vadd.f32 0.0, %v3549
    %v3551 = vpop.f32.mrf.mxu0
    %v3552 = vadd.f32 0.0, %v3551
    %v3553 = vpop.f32.mrf.mxu0
    %v3554 = vadd.f32 0.0, %v3553
    %v3555 = vpop.f32.mrf.mxu0
    %v3556 = vadd.f32 0.0, %v3555
    %3557 = vdwg.mxu0
    %v3558 = vld [vmem:[%s10] sm:$0xf]
    %v3559 = vadd.f32 %v3400, %v3404
    %v3560 = vadd.f32 %v3559, %v3410
    %v3561 = vadd.f32 %v3560, %v3414
    %v3562 = vadd.f32 %v3561, %v3420
    %v3563 = vadd.f32 %v3562, %v3424
    %v3564 = vadd.f32 %v3563, %v3430
    %v3565 = vadd.f32 %v3564, %v3434
    %v3566 = vadd.f32 %v3565, %v3440
    %v3567 = vadd.f32 %v3566, %v3444
    %v3568 = vadd.f32 %v3567, %v3450
    %v3569 = vadd.f32 %v3568, %v3454
    %v3570 = vadd.f32 %v3569, %v3460
    %v3571 = vadd.f32 %v3570, %v3464
    %v3572 = vadd.f32 %v3571, %v3470
    %v3573 = vadd.f32 %v3572, %v3474
    %v3574 = vadd.f32 %v3573, %v3480
    %v3575 = vadd.f32 %v3574, %v3484
    %v3576 = vadd.f32 %v3575, %v3490
    %v3577 = vadd.f32 %v3576, %v3494
    %v3578 = vadd.f32 %v3577, %v3500
    %v3579 = vadd.f32 %v3578, %v3504
    %v3580 = vadd.f32 %v3579, %v3510
    %v3581 = vadd.f32 %v3580, %v3514
    %v3582 = vadd.f32 %v3581, %v3520
    %v3583 = vadd.f32 %v3582, %v3524
    %v3584 = vadd.f32 %v3583, %v3530
    %v3585 = vadd.f32 %v3584, %v3534
    %v3586 = vadd.f32 %v3585, %v3540
    %v3587 = vadd.f32 %v3586, %v3544
    %v3588 = vadd.f32 %v3587, %v3550
    %v3589 = vadd.f32 %v3588, %v3554
    %v3590 = vrot.slane %v3589, 4
    %v3591 = vadd.f32 %v3589, %v3590
    %v3592 = vrot.slane %v3591, 2
    %v3593 = vadd.f32 %v3591, %v3592
    %v3594 = vrot.slane %v3593, 1
    %v3595 = vadd.f32 %v3593, %v3594
    %v3596 = vadd.f32 %v3402, %v3406
    %v3597 = vadd.f32 %v3596, %v3412
    %v3598 = vadd.f32 %v3597, %v3416
    %v3599 = vadd.f32 %v3598, %v3422
    %v3600 = vadd.f32 %v3599, %v3426
    %v3601 = vadd.f32 %v3600, %v3432
    %v3602 = vadd.f32 %v3601, %v3436
    %v3603 = vadd.f32 %v3602, %v3442
    %v3604 = vadd.f32 %v3603, %v3446
    %v3605 = vadd.f32 %v3604, %v3452
    %v3606 = vadd.f32 %v3605, %v3456
    %v3607 = vadd.f32 %v3606, %v3462
    %v3608 = vadd.f32 %v3607, %v3466
    %v3609 = vadd.f32 %v3608, %v3472
    %v3610 = vadd.f32 %v3609, %v3476
    %v3611 = vadd.f32 %v3610, %v3482
    %v3612 = vadd.f32 %v3611, %v3486
    %v3613 = vadd.f32 %v3612, %v3492
    %v3614 = vadd.f32 %v3613, %v3496
    %v3615 = vadd.f32 %v3614, %v3502
    %v3616 = vadd.f32 %v3615, %v3506
    %v3617 = vadd.f32 %v3616, %v3512
    %v3618 = vadd.f32 %v3617, %v3516
    %v3619 = vadd.f32 %v3618, %v3522
    %v3620 = vadd.f32 %v3619, %v3526
    %v3621 = vadd.f32 %v3620, %v3532
    %v3622 = vadd.f32 %v3621, %v3536
    %v3623 = vadd.f32 %v3622, %v3542
    %v3624 = vadd.f32 %v3623, %v3546
    %v3625 = vadd.f32 %v3624, %v3552
    %v3626 = vadd.f32 %v3625, %v3556
    %v3627 = vrot.slane %v3626, 4
    %v3628 = vadd.f32 %v3626, %v3627
    %v3629 = vrot.slane %v3628, 2
    %v3630 = vadd.f32 %v3628, %v3629
    %v3631 = vrot.slane %v3630, 1
    %v3632 = vadd.f32 %v3630, %v3631
    %v3633 = vmul.f32 %v3595, 0.00390625
    %v3634 = vmul.f32 %v3632, 0.00390625
    %v3635 = vmul.f32 %v3400, %v3400
    %v3636 = vmul.f32 %v3402, %v3402
    %v3637 = vmul.f32 %v3404, %v3404
    %v3638 = vmul.f32 %v3406, %v3406
    %v3639 = vmul.f32 %v3410, %v3410
    %v3640 = vmul.f32 %v3412, %v3412
    %v3641 = vmul.f32 %v3414, %v3414
    %v3642 = vmul.f32 %v3416, %v3416
    %v3643 = vmul.f32 %v3420, %v3420
    %v3644 = vmul.f32 %v3422, %v3422
    %v3645 = vmul.f32 %v3424, %v3424
    %v3646 = vmul.f32 %v3426, %v3426
    %v3647 = vmul.f32 %v3430, %v3430
    %v3648 = vmul.f32 %v3432, %v3432
    %v3649 = vmul.f32 %v3434, %v3434
    %v3650 = vmul.f32 %v3436, %v3436
    %v3651 = vmul.f32 %v3440, %v3440
    %v3652 = vmul.f32 %v3442, %v3442
    %v3653 = vmul.f32 %v3444, %v3444
    %v3654 = vmul.f32 %v3446, %v3446
    %v3655 = vmul.f32 %v3450, %v3450
    %v3656 = vmul.f32 %v3452, %v3452
    %v3657 = vmul.f32 %v3454, %v3454
    %v3658 = vmul.f32 %v3456, %v3456
    %v3659 = vmul.f32 %v3460, %v3460
    %v3660 = vmul.f32 %v3462, %v3462
    %v3661 = vmul.f32 %v3464, %v3464
    %v3662 = vmul.f32 %v3466, %v3466
    %v3663 = vmul.f32 %v3470, %v3470
    %v3664 = vmul.f32 %v3472, %v3472
    %v3665 = vmul.f32 %v3474, %v3474
    %v3666 = vmul.f32 %v3476, %v3476
    %v3667 = vmul.f32 %v3480, %v3480
    %v3668 = vmul.f32 %v3482, %v3482
    %v3669 = vmul.f32 %v3484, %v3484
    %v3670 = vmul.f32 %v3486, %v3486
    %v3671 = vmul.f32 %v3490, %v3490
    %v3672 = vmul.f32 %v3492, %v3492
    %v3673 = vmul.f32 %v3494, %v3494
    %v3674 = vmul.f32 %v3496, %v3496
    %v3675 = vmul.f32 %v3500, %v3500
    %v3676 = vmul.f32 %v3502, %v3502
    %v3677 = vmul.f32 %v3504, %v3504
    %v3678 = vmul.f32 %v3506, %v3506
    %v3679 = vmul.f32 %v3510, %v3510
    %v3680 = vmul.f32 %v3512, %v3512
    %v3681 = vmul.f32 %v3514, %v3514
    %v3682 = vmul.f32 %v3516, %v3516
    %v3683 = vmul.f32 %v3520, %v3520
    %v3684 = vmul.f32 %v3522, %v3522
    %v3685 = vmul.f32 %v3524, %v3524
    %v3686 = vmul.f32 %v3526, %v3526
    %v3687 = vmul.f32 %v3530, %v3530
    %v3688 = vmul.f32 %v3532, %v3532
    %v3689 = vmul.f32 %v3534, %v3534
    %v3690 = vmul.f32 %v3536, %v3536
    %v3691 = vmul.f32 %v3540, %v3540
    %v3692 = vmul.f32 %v3542, %v3542
    %v3693 = vmul.f32 %v3544, %v3544
    %v3694 = vmul.f32 %v3546, %v3546
    %v3695 = vmul.f32 %v3550, %v3550
    %v3696 = vmul.f32 %v3552, %v3552
    %v3697 = vmul.f32 %v3554, %v3554
    %v3698 = vmul.f32 %v3556, %v3556
    %v3699 = vadd.f32 %v3635, %v3637
    %v3700 = vadd.f32 %v3699, %v3639
    %v3701 = vadd.f32 %v3700, %v3641
    %v3702 = vadd.f32 %v3701, %v3643
    %v3703 = vadd.f32 %v3702, %v3645
    %v3704 = vadd.f32 %v3703, %v3647
    %v3705 = vadd.f32 %v3704, %v3649
    %v3706 = vadd.f32 %v3705, %v3651
    %v3707 = vadd.f32 %v3706, %v3653
    %v3708 = vadd.f32 %v3707, %v3655
    %v3709 = vadd.f32 %v3708, %v3657
    %v3710 = vadd.f32 %v3709, %v3659
    %v3711 = vadd.f32 %v3710, %v3661
    %v3712 = vadd.f32 %v3711, %v3663
    %v3713 = vadd.f32 %v3712, %v3665
    %v3714 = vadd.f32 %v3713, %v3667
    %v3715 = vadd.f32 %v3714, %v3669
    %v3716 = vadd.f32 %v3715, %v3671
    %v3717 = vadd.f32 %v3716, %v3673
    %v3718 = vadd.f32 %v3717, %v3675
    %v3719 = vadd.f32 %v3718, %v3677
    %v3720 = vadd.f32 %v3719, %v3679
    %v3721 = vadd.f32 %v3720, %v3681
    %v3722 = vadd.f32 %v3721, %v3683
    %v3723 = vadd.f32 %v3722, %v3685
    %v3724 = vadd.f32 %v3723, %v3687
    %v3725 = vadd.f32 %v3724, %v3689
    %v3726 = vadd.f32 %v3725, %v3691
    %v3727 = vadd.f32 %v3726, %v3693
    %v3728 = vadd.f32 %v3727, %v3695
    %v3729 = vadd.f32 %v3728, %v3697
    %v3730 = vrot.slane %v3729, 4
    %v3731 = vadd.f32 %v3729, %v3730
    %v3732 = vrot.slane %v3731, 2
    %v3733 = vadd.f32 %v3731, %v3732
    %v3734 = vrot.slane %v3733, 1
    %v3735 = vadd.f32 %v3733, %v3734
    %v3736 = vadd.f32 %v3636, %v3638
    %v3737 = vadd.f32 %v3736, %v3640
    %v3738 = vadd.f32 %v3737, %v3642
    %v3739 = vadd.f32 %v3738, %v3644
    %v3740 = vadd.f32 %v3739, %v3646
    %v3741 = vadd.f32 %v3740, %v3648
    %v3742 = vadd.f32 %v3741, %v3650
    %v3743 = vadd.f32 %v3742, %v3652
    %v3744 = vadd.f32 %v3743, %v3654
    %v3745 = vadd.f32 %v3744, %v3656
    %v3746 = vadd.f32 %v3745, %v3658
    %v3747 = vadd.f32 %v3746, %v3660
    %v3748 = vadd.f32 %v3747, %v3662
    %v3749 = vadd.f32 %v3748, %v3664
    %v3750 = vadd.f32 %v3749, %v3666
    %v3751 = vadd.f32 %v3750, %v3668
    %v3752 = vadd.f32 %v3751, %v3670
    %v3753 = vadd.f32 %v3752, %v3672
    %v3754 = vadd.f32 %v3753, %v3674
    %v3755 = vadd.f32 %v3754, %v3676
    %v3756 = vadd.f32 %v3755, %v3678
    %v3757 = vadd.f32 %v3756, %v3680
    %v3758 = vadd.f32 %v3757, %v3682
    %v3759 = vadd.f32 %v3758, %v3684
    %v3760 = vadd.f32 %v3759, %v3686
    %v3761 = vadd.f32 %v3760, %v3688
    %v3762 = vadd.f32 %v3761, %v3690
    %v3763 = vadd.f32 %v3762, %v3692
    %v3764 = vadd.f32 %v3763, %v3694
    %v3765 = vadd.f32 %v3764, %v3696
    %v3766 = vadd.f32 %v3765, %v3698
    %v3767 = vrot.slane %v3766, 4
    %v3768 = vadd.f32 %v3766, %v3767
    %v3769 = vrot.slane %v3768, 2
    %v3770 = vadd.f32 %v3768, %v3769
    %v3771 = vrot.slane %v3770, 1
    %v3772 = vadd.f32 %v3770, %v3771
    %v3773 = vmul.f32 %v3735, 0.00390625
    %v3774 = vmul.f32 %v3772, 0.00390625
    %v3775 = vmul.f32 %v3633, %v3633
    %v3776 = vmul.f32 %v3634, %v3634
    %v3777 = vsub.f32 %v3773, %v3775
    %v3778 = vsub.f32 %v3774, %v3776
    %v3779 = vadd.f32 %v3777, 1e-05
    %v3780 = vadd.f32 %v3778, 1e-05
    %v3781 = vrsqrt.pop %v3779
    %v3782 = vrsqrt.pop %v3780
    %v3785 = vcombine.low %v3781, %v3782
    %v3787 = vunpack.c.l.s4 1983009808
    %v3788 = vunpack.c.0.s8 %v3787
    %v3789 = vlaneseq
    %v3790 = vshrl.u32 %v3789, 7
    %v3791 = vsub.s32 %v3788, %v3790
    %v3792 = vrot.slane %v3785, %v3791
    %v3794 = vmul.f32 %v3558, %v3792
    %v3796 = vlaneseq
    %v3797 = vshrl.u32 %v3796, 7
    %v3798 = vsub.s32 0, %v3797
    %v3799 = vrot.slane %v3794, %v3798
    %v3800 = vlaneseq
    %v3801 = vshrl.u32 %v3800, 7
    %v3802 = vsub.s32 2, %v3801
    %v3803 = vrot.slane %v3794, %v3802
    %v3806 = vmul.f32 %v3633, %v3799
    %v3807 = vmul.f32 %v3634, %v3803
    %v3810 = vcombine.low %v3806, %v3807
    %v3812 = vunpack.c.l.s4 1983009808
    %v3813 = vunpack.c.0.s8 %v3812
    %v3814 = vlaneseq
    %v3815 = vshrl.u32 %v3814, 7
    %v3816 = vsub.s32 %v3813, %v3815
    %v3817 = vrot.slane %v3810, %v3816
    %v3818 = vrot.slane %v3817, 7
    %v3820 = vsub.f32 %v3558, %v3818
    %v3821 = vlaneseq
    %v3822 = vshrl.u32 %v3821, 7
    %v3823 = vsub.s32 0, %v3822
    %v3824 = vrot.slane %v3799, %v3823
    %v3825 = vlaneseq
    %v3826 = vshrl.u32 %v3825, 7
    %v3827 = vsub.s32 0, %v3826
    %v3828 = vrot.slane %v3803, %v3827
    %v3829 = vmul.f32 %v3400, %v3824
    %v3830 = vmul.f32 %v3402, %v3828
    %v3831 = vmul.f32 %v3404, %v3824
    %v3832 = vmul.f32 %v3406, %v3828
    %v3833 = vmul.f32 %v3410, %v3824
    %v3834 = vmul.f32 %v3412, %v3828
    %v3835 = vmul.f32 %v3414, %v3824
    %v3836 = vmul.f32 %v3416, %v3828
    %v3837 = vmul.f32 %v3420, %v3824
    %v3838 = vmul.f32 %v3422, %v3828
    %v3839 = vmul.f32 %v3424, %v3824
    %v3840 = vmul.f32 %v3426, %v3828
    %v3841 = vmul.f32 %v3430, %v3824
    %v3842 = vmul.f32 %v3432, %v3828
    %v3843 = vmul.f32 %v3434, %v3824
    %v3844 = vmul.f32 %v3436, %v3828
    %v3845 = vmul.f32 %v3440, %v3824
    %v3846 = vmul.f32 %v3442, %v3828
    %v3847 = vmul.f32 %v3444, %v3824
    %v3848 = vmul.f32 %v3446, %v3828
    %v3849 = vmul.f32 %v3450, %v3824
    %v3850 = vmul.f32 %v3452, %v3828
    %v3851 = vmul.f32 %v3454, %v3824
    %v3852 = vmul.f32 %v3456, %v3828
    %v3853 = vmul.f32 %v3460, %v3824
    %v3854 = vmul.f32 %v3462, %v3828
    %v3855 = vmul.f32 %v3464, %v3824
    %v3856 = vmul.f32 %v3466, %v3828
    %v3857 = vmul.f32 %v3470, %v3824
    %v3858 = vmul.f32 %v3472, %v3828
    %v3859 = vmul.f32 %v3474, %v3824
    %v3860 = vmul.f32 %v3476, %v3828
    %v3861 = vmul.f32 %v3480, %v3824
    %v3862 = vmul.f32 %v3482, %v3828
    %v3863 = vmul.f32 %v3484, %v3824
    %v3864 = vmul.f32 %v3486, %v3828
    %v3865 = vmul.f32 %v3490, %v3824
    %v3866 = vmul.f32 %v3492, %v3828
    %v3867 = vmul.f32 %v3494, %v3824
    %v3868 = vmul.f32 %v3496, %v3828
    %v3869 = vmul.f32 %v3500, %v3824
    %v3870 = vmul.f32 %v3502, %v3828
    %v3871 = vmul.f32 %v3504, %v3824
    %v3872 = vmul.f32 %v3506, %v3828
    %v3873 = vmul.f32 %v3510, %v3824
    %v3874 = vmul.f32 %v3512, %v3828
    %v3875 = vmul.f32 %v3514, %v3824
    %v3876 = vmul.f32 %v3516, %v3828
    %v3877 = vmul.f32 %v3520, %v3824
    %v3878 = vmul.f32 %v3522, %v3828
    %v3879 = vmul.f32 %v3524, %v3824
    %v3880 = vmul.f32 %v3526, %v3828
    %v3881 = vmul.f32 %v3530, %v3824
    %v3882 = vmul.f32 %v3532, %v3828
    %v3883 = vmul.f32 %v3534, %v3824
    %v3884 = vmul.f32 %v3536, %v3828
    %v3885 = vmul.f32 %v3540, %v3824
    %v3886 = vmul.f32 %v3542, %v3828
    %v3887 = vmul.f32 %v3544, %v3824
    %v3888 = vmul.f32 %v3546, %v3828
    %v3889 = vmul.f32 %v3550, %v3824
    %v3890 = vmul.f32 %v3552, %v3828
    %v3891 = vmul.f32 %v3554, %v3824
    %v3892 = vmul.f32 %v3556, %v3828
    %v3894 = vlaneseq
    %v3895 = vshrl.u32 %v3894, 7
    %v3896 = vsub.s32 1, %v3895
    %v3897 = vrot.slane %v3820, %v3896
    %v3898 = vlaneseq
    %v3899 = vshrl.u32 %v3898, 7
    %v3900 = vsub.s32 3, %v3899
    %v3901 = vrot.slane %v3820, %v3900
    %v3904 = vlaneseq
    %v3905 = vshrl.u32 %v3904, 7
    %v3906 = vsub.s32 1, %v3905
    %v3907 = vrot.slane %v3897, %v3906
    %v3908 = vlaneseq
    %v3909 = vshrl.u32 %v3908, 7
    %v3910 = vsub.s32 1, %v3909
    %v3911 = vrot.slane %v3901, %v3910
    %v3912 = vadd.f32 %v3829, %v3907
    %v3913 = vadd.f32 %v3830, %v3911
    %v3914 = vadd.f32 %v3831, %v3907
    %v3915 = vadd.f32 %v3832, %v3911
    %v3916 = vadd.f32 %v3833, %v3907
    %v3917 = vadd.f32 %v3834, %v3911
    %v3918 = vadd.f32 %v3835, %v3907
    %v3919 = vadd.f32 %v3836, %v3911
    %v3920 = vadd.f32 %v3837, %v3907
    %v3921 = vadd.f32 %v3838, %v3911
    %v3922 = vadd.f32 %v3839, %v3907
    %v3923 = vadd.f32 %v3840, %v3911
    %v3924 = vadd.f32 %v3841, %v3907
    %v3925 = vadd.f32 %v3842, %v3911
    %v3926 = vadd.f32 %v3843, %v3907
    %v3927 = vadd.f32 %v3844, %v3911
    %v3928 = vadd.f32 %v3845, %v3907
    %v3929 = vadd.f32 %v3846, %v3911
    %v3930 = vadd.f32 %v3847, %v3907
    %v3931 = vadd.f32 %v3848, %v3911
    %v3932 = vadd.f32 %v3849, %v3907
    %v3933 = vadd.f32 %v3850, %v3911
    %v3934 = vadd.f32 %v3851, %v3907
    %v3935 = vadd.f32 %v3852, %v3911
    %v3936 = vadd.f32 %v3853, %v3907
    %v3937 = vadd.f32 %v3854, %v3911
    %v3938 = vadd.f32 %v3855, %v3907
    %v3939 = vadd.f32 %v3856, %v3911
    %v3940 = vadd.f32 %v3857, %v3907
    %v3941 = vadd.f32 %v3858, %v3911
    %v3942 = vadd.f32 %v3859, %v3907
    %v3943 = vadd.f32 %v3860, %v3911
    %v3944 = vadd.f32 %v3861, %v3907
    %v3945 = vadd.f32 %v3862, %v3911
    %v3946 = vadd.f32 %v3863, %v3907
    %v3947 = vadd.f32 %v3864, %v3911
    %v3948 = vadd.f32 %v3865, %v3907
    %v3949 = vadd.f32 %v3866, %v3911
    %v3950 = vadd.f32 %v3867, %v3907
    %v3951 = vadd.f32 %v3868, %v3911
    %v3952 = vadd.f32 %v3869, %v3907
    %v3953 = vadd.f32 %v3870, %v3911
    %v3954 = vadd.f32 %v3871, %v3907
    %v3955 = vadd.f32 %v3872, %v3911
    %v3956 = vadd.f32 %v3873, %v3907
    %v3957 = vadd.f32 %v3874, %v3911
    %v3958 = vadd.f32 %v3875, %v3907
    %v3959 = vadd.f32 %v3876, %v3911
    %v3960 = vadd.f32 %v3877, %v3907
    %v3961 = vadd.f32 %v3878, %v3911
    %v3962 = vadd.f32 %v3879, %v3907
    %v3963 = vadd.f32 %v3880, %v3911
    %v3964 = vadd.f32 %v3881, %v3907
    %v3965 = vadd.f32 %v3882, %v3911
    %v3966 = vadd.f32 %v3883, %v3907
    %v3967 = vadd.f32 %v3884, %v3911
    %v3968 = vadd.f32 %v3885, %v3907
    %v3969 = vadd.f32 %v3886, %v3911
    %v3970 = vadd.f32 %v3887, %v3907
    %v3971 = vadd.f32 %v3888, %v3911
    %v3972 = vadd.f32 %v3889, %v3907
    %v3973 = vadd.f32 %v3890, %v3911
    %v3974 = vadd.f32 %v3891, %v3907
    %v3975 = vadd.f32 %v3892, %v3911
    %v3976 = vmax.f32 %v3912, 0.0
    %v3977 = vmax.f32 %v3913, 0.0
    %v3978 = vmax.f32 %v3914, 0.0
    %v3979 = vmax.f32 %v3915, 0.0
    %v3980 = vmax.f32 %v3916, 0.0
    %v3981 = vmax.f32 %v3917, 0.0
    %v3982 = vmax.f32 %v3918, 0.0
    %v3983 = vmax.f32 %v3919, 0.0
    %v3984 = vmax.f32 %v3920, 0.0
    %v3985 = vmax.f32 %v3921, 0.0
    %v3986 = vmax.f32 %v3922, 0.0
    %v3987 = vmax.f32 %v3923, 0.0
    %v3988 = vmax.f32 %v3924, 0.0
    %v3989 = vmax.f32 %v3925, 0.0
    %v3990 = vmax.f32 %v3926, 0.0
    %v3991 = vmax.f32 %v3927, 0.0
    %v3992 = vmax.f32 %v3928, 0.0
    %v3993 = vmax.f32 %v3929, 0.0
    %v3994 = vmax.f32 %v3930, 0.0
    %v3995 = vmax.f32 %v3931, 0.0
    %v3996 = vmax.f32 %v3932, 0.0
    %v3997 = vmax.f32 %v3933, 0.0
    %v3998 = vmax.f32 %v3934, 0.0
    %v3999 = vmax.f32 %v3935, 0.0
    %v4000 = vmax.f32 %v3936, 0.0
    %v4001 = vmax.f32 %v3937, 0.0
    %v4002 = vmax.f32 %v3938, 0.0
    %v4003 = vmax.f32 %v3939, 0.0
    %v4004 = vmax.f32 %v3940, 0.0
    %v4005 = vmax.f32 %v3941, 0.0
    %v4006 = vmax.f32 %v3942, 0.0
    %v4007 = vmax.f32 %v3943, 0.0
    %v4008 = vmax.f32 %v3944, 0.0
    %v4009 = vmax.f32 %v3945, 0.0
    %v4010 = vmax.f32 %v3946, 0.0
    %v4011 = vmax.f32 %v3947, 0.0
    %v4012 = vmax.f32 %v3948, 0.0
    %v4013 = vmax.f32 %v3949, 0.0
    %v4014 = vmax.f32 %v3950, 0.0
    %v4015 = vmax.f32 %v3951, 0.0
    %v4016 = vmax.f32 %v3952, 0.0
    %v4017 = vmax.f32 %v3953, 0.0
    %v4018 = vmax.f32 %v3954, 0.0
    %v4019 = vmax.f32 %v3955, 0.0
    %v4020 = vmax.f32 %v3956, 0.0
    %v4021 = vmax.f32 %v3957, 0.0
    %v4022 = vmax.f32 %v3958, 0.0
    %v4023 = vmax.f32 %v3959, 0.0
    %v4024 = vmax.f32 %v3960, 0.0
    %v4025 = vmax.f32 %v3961, 0.0
    %v4026 = vmax.f32 %v3962, 0.0
    %v4027 = vmax.f32 %v3963, 0.0
    %v4028 = vmax.f32 %v3964, 0.0
    %v4029 = vmax.f32 %v3965, 0.0
    %v4030 = vmax.f32 %v3966, 0.0
    %v4031 = vmax.f32 %v3967, 0.0
    %v4032 = vmax.f32 %v3968, 0.0
    %v4033 = vmax.f32 %v3969, 0.0
    %v4034 = vmax.f32 %v3970, 0.0
    %v4035 = vmax.f32 %v3971, 0.0
    %v4036 = vmax.f32 %v3972, 0.0
    %v4037 = vmax.f32 %v3973, 0.0
    %v4038 = vmax.f32 %v3974, 0.0
    %v4039 = vmax.f32 %v3975, 0.0
    %v4040 = vpack.c.bf16 %v3978, %v3976
    %v4041 = vpack.c.bf16 %v3979, %v3977
    %v4042 = vpack.c.bf16 %v3982, %v3980
    %v4043 = vpack.c.bf16 %v3983, %v3981
    %v4044 = vpack.c.bf16 %v3986, %v3984
    %v4045 = vpack.c.bf16 %v3987, %v3985
    %v4046 = vpack.c.bf16 %v3990, %v3988
    %v4047 = vpack.c.bf16 %v3991, %v3989
    %v4048 = vpack.c.bf16 %v3994, %v3992
    %v4049 = vpack.c.bf16 %v3995, %v3993
    %v4050 = vpack.c.bf16 %v3998, %v3996
    %v4051 = vpack.c.bf16 %v3999, %v3997
    %v4052 = vpack.c.bf16 %v4002, %v4000
    %v4053 = vpack.c.bf16 %v4003, %v4001
    %v4054 = vpack.c.bf16 %v4006, %v4004
    %v4055 = vpack.c.bf16 %v4007, %v4005
    %v4056 = vpack.c.bf16 %v4010, %v4008
    %v4057 = vpack.c.bf16 %v4011, %v4009
    %v4058 = vpack.c.bf16 %v4014, %v4012
    %v4059 = vpack.c.bf16 %v4015, %v4013
    %v4060 = vpack.c.bf16 %v4018, %v4016
    %v4061 = vpack.c.bf16 %v4019, %v4017
    %v4062 = vpack.c.bf16 %v4022, %v4020
    %v4063 = vpack.c.bf16 %v4023, %v4021
    %v4064 = vpack.c.bf16 %v4026, %v4024
    %v4065 = vpack.c.bf16 %v4027, %v4025
    %v4066 = vpack.c.bf16 %v4030, %v4028
    %v4067 = vpack.c.bf16 %v4031, %v4029
    %v4068 = vpack.c.bf16 %v4034, %v4032
    %v4069 = vpack.c.bf16 %v4035, %v4033
    %v4070 = vpack.c.bf16 %v4038, %v4036
    %v4071 = vpack.c.bf16 %v4039, %v4037
    %v4072 = vld [vmem:[%s11] sm:$0xf]
    %v4073 = vld [vmem:[%s11 + $0x4] sm:$0xf]
    %v4074 = vld [vmem:[%s11 + $0x8] sm:$0xf]
    %v4075 = vld [vmem:[%s11 + $0xc] sm:$0xf]
    %v4076 = vld [vmem:[%s11 + $0x10] sm:$0xf]
    %v4077 = vld [vmem:[%s11 + $0x14] sm:$0xf]
    %v4078 = vld [vmem:[%s11 + $0x18] sm:$0xf]
    %v4079 = vld [vmem:[%s11 + $0x1c] sm:$0xf]
    %v4080 = vld [vmem:[%s11 + $0x20] sm:$0xf]
    %v4081 = vld [vmem:[%s11 + $0x24] sm:$0xf]
    %v4082 = vld [vmem:[%s11 + $0x28] sm:$0xf]
    %v4083 = vld [vmem:[%s11 + $0x2c] sm:$0xf]
    %v4084 = vld [vmem:[%s11 + $0x30] sm:$0xf]
    %v4085 = vld [vmem:[%s11 + $0x34] sm:$0xf]
    %v4086 = vld [vmem:[%s11 + $0x38] sm:$0xf]
    %v4087 = vld [vmem:[%s11 + $0x3c] sm:$0xf]
    %v4088 = vld [vmem:[%s11 + $0x40] sm:$0xf]
    %v4089 = vld [vmem:[%s11 + $0x44] sm:$0xf]
    %v4090 = vld [vmem:[%s11 + $0x48] sm:$0xf]
    %v4091 = vld [vmem:[%s11 + $0x4c] sm:$0xf]
    %v4092 = vld [vmem:[%s11 + $0x50] sm:$0xf]
    %v4093 = vld [vmem:[%s11 + $0x54] sm:$0xf]
    %v4094 = vld [vmem:[%s11 + $0x58] sm:$0xf]
    %v4095 = vld [vmem:[%s11 + $0x5c] sm:$0xf]
    %v4096 = vld [vmem:[%s11 + $0x60] sm:$0xf]
    %v4097 = vld [vmem:[%s11 + $0x64] sm:$0xf]
    %v4098 = vld [vmem:[%s11 + $0x68] sm:$0xf]
    %v4099 = vld [vmem:[%s11 + $0x6c] sm:$0xf]
    %v4100 = vld [vmem:[%s11 + $0x70] sm:$0xf]
    %v4101 = vld [vmem:[%s11 + $0x74] sm:$0xf]
    %v4102 = vld [vmem:[%s11 + $0x78] sm:$0xf]
    %v4103 = vld [vmem:[%s11 + $0x7c] sm:$0xf]
    %v4104 = vld [vmem:[%s12] sm:$0x1]
    %v4106 = vlaneseq
    %v4107 = vshrl.u32 %v4106, 7
    %v4108 = vsub.s32 0, %v4107
    %v4109 = vrot.slane %v4104, %v4108
    %v4143 = vunpack.c.l.b16 %v4072
    %v4144 = vunpack.c.l.b16 %v4073
    %v4145 = vunpack.c.l.b16 %v4074
    %v4146 = vunpack.c.l.b16 %v4075
    %v4147 = vunpack.c.l.b16 %v4076
    %v4148 = vunpack.c.l.b16 %v4077
    %v4149 = vunpack.c.l.b16 %v4078
    %v4150 = vunpack.c.l.b16 %v4079
    %v4151 = vunpack.c.l.b16 %v4080
    %v4152 = vunpack.c.l.b16 %v4081
    %v4153 = vunpack.c.l.b16 %v4082
    %v4154 = vunpack.c.l.b16 %v4083
    %v4155 = vunpack.c.l.b16 %v4084
    %v4156 = vunpack.c.l.b16 %v4085
    %v4157 = vunpack.c.l.b16 %v4086
    %v4158 = vunpack.c.l.b16 %v4087
    %v4159 = vunpack.c.l.b16 %v4088
    %v4160 = vunpack.c.l.b16 %v4089
    %v4161 = vunpack.c.l.b16 %v4090
    %v4162 = vunpack.c.l.b16 %v4091
    %v4163 = vunpack.c.l.b16 %v4092
    %v4164 = vunpack.c.l.b16 %v4093
    %v4165 = vunpack.c.l.b16 %v4094
    %v4166 = vunpack.c.l.b16 %v4095
    %v4167 = vunpack.c.l.b16 %v4096
    %v4168 = vunpack.c.l.b16 %v4097
    %v4169 = vunpack.c.l.b16 %v4098
    %v4170 = vunpack.c.l.b16 %v4099
    %v4171 = vunpack.c.l.b16 %v4100
    %v4172 = vunpack.c.l.b16 %v4101
    %v4173 = vunpack.c.l.b16 %v4102
    %v4174 = vunpack.c.l.b16 %v4103
    %v4175 = vpack.c.b16 %v4144, %v4143
    %v4176 = vpack.c.b16 %v4146, %v4145
    %v4177 = vpack.c.b16 %v4148, %v4147
    %v4178 = vpack.c.b16 %v4150, %v4149
    %v4179 = vpack.c.b16 %v4152, %v4151
    %v4180 = vpack.c.b16 %v4154, %v4153
    %v4181 = vpack.c.b16 %v4156, %v4155
    %v4182 = vpack.c.b16 %v4158, %v4157
    %v4183 = vpack.c.b16 %v4160, %v4159
    %v4184 = vpack.c.b16 %v4162, %v4161
    %v4185 = vpack.c.b16 %v4164, %v4163
    %v4186 = vpack.c.b16 %v4166, %v4165
    %v4187 = vpack.c.b16 %v4168, %v4167
    %v4188 = vpack.c.b16 %v4170, %v4169
    %v4189 = vpack.c.b16 %v4172, %v4171
    %v4190 = vpack.c.b16 %v4174, %v4173
    %4207 = vmatprep.subr.bf16.mxu0 0
    %4208 = vmatpush1.bf16.msra.mxu0 %v4182
    %4209 = vmatprep.subr.bf16.mxu0 0
    %4210 = vmatpush1.bf16.msra.mxu0 %v4181
    %4211 = vmatprep.subr.bf16.mxu0 0
    %4212 = vmatpush1.bf16.msra.mxu0 %v4180
    %4213 = vmatprep.subr.bf16.mxu0 0
    %4214 = vmatpush1.bf16.msra.mxu0 %v4179
    %4215 = vmatprep.subr.bf16.mxu0 0
    %4216 = vmatpush1.bf16.msra.mxu0 %v4178
    %4217 = vmatprep.subr.bf16.mxu0 0
    %4218 = vmatpush1.bf16.msra.mxu0 %v4177
    %4219 = vmatprep.subr.bf16.mxu0 0
    %4220 = vmatpush1.bf16.msra.mxu0 %v4176
    %4221 = vmatprep.subr.bf16.mxu0 0
    %4222 = vmatpush1.bf16.msra.mxu0 %v4175
    %4223 = vmatprep.subr.bf16.mxu0 0
    %4224 = vmatpush2.bf16.msra.mxu0 %v4190
    %4225 = vmatprep.subr.bf16.mxu0 0
    %4226 = vmatpush2.bf16.msra.mxu0 %v4189
    %4227 = vmatprep.subr.bf16.mxu0 0
    %4228 = vmatpush2.bf16.msra.mxu0 %v4188
    %4229 = vmatprep.subr.bf16.mxu0 0
    %4230 = vmatpush2.bf16.msra.mxu0 %v4187
    %4231 = vmatprep.subr.bf16.mxu0 0
    %4232 = vmatpush2.bf16.msra.mxu0 %v4186
    %4233 = vmatprep.subr.bf16.mxu0 0
    %4234 = vmatpush2.bf16.msra.mxu0 %v4185
    %4235 = vmatprep.subr.bf16.mxu0 0
    %4236 = vmatpush2.bf16.msra.mxu0 %v4184
    %4237 = vmatprep.subr.bf16.mxu0 0
    %4238 = vmatpush2.bf16.msra.mxu0 %v4183
    %4239 = vmatprep.mubr.bf16.mxu0 %v4041
    %4240 = vmatmul.mubr.bf16.gmra.mxu0 %v4040
    %v4241 = vpop.f32.mrf.mxu0
    %v4242 = vadd.f32 %v4109, %v4241
    %v4243 = vpop.f32.mrf.mxu0
    %v4244 = vpop.f32.mrf.mxu0
    %v4245 = vadd.f32 %v4109, %v4244
    %v4246 = vpop.f32.mrf.mxu0
    %4247 = vmatprep.mubr.bf16.mxu0 %v4043
    %4248 = vmatmul.mubr.bf16.gmra.mxu0 %v4042
    %v4249 = vpop.f32.mrf.mxu0
    %v4250 = vadd.f32 %v4109, %v4249
    %v4251 = vpop.f32.mrf.mxu0
    %v4252 = vpop.f32.mrf.mxu0
    %v4253 = vadd.f32 %v4109, %v4252
    %v4254 = vpop.f32.mrf.mxu0
    %4255 = vmatprep.mubr.bf16.mxu0 %v4045
    %4256 = vmatmul.mubr.bf16.gmra.mxu0 %v4044
    %v4257 = vpop.f32.mrf.mxu0
    %v4258 = vadd.f32 %v4109, %v4257
    %v4259 = vpop.f32.mrf.mxu0
    %v4260 = vpop.f32.mrf.mxu0
    %v4261 = vadd.f32 %v4109, %v4260
    %v4262 = vpop.f32.mrf.mxu0
    %4263 = vmatprep.mubr.bf16.mxu0 %v4047
    %4264 = vmatmul.mubr.bf16.gmra.mxu0 %v4046
    %v4265 = vpop.f32.mrf.mxu0
    %v4266 = vadd.f32 %v4109, %v4265
    %v4267 = vpop.f32.mrf.mxu0
    %v4268 = vpop.f32.mrf.mxu0
    %v4269 = vadd.f32 %v4109, %v4268
    %v4270 = vpop.f32.mrf.mxu0
    %4271 = vmatprep.mubr.bf16.mxu0 %v4049
    %4272 = vmatmul.mubr.bf16.gmra.mxu0 %v4048
    %v4273 = vpop.f32.mrf.mxu0
    %v4274 = vadd.f32 %v4109, %v4273
    %v4275 = vpop.f32.mrf.mxu0
    %v4276 = vpop.f32.mrf.mxu0
    %v4277 = vadd.f32 %v4109, %v4276
    %v4278 = vpop.f32.mrf.mxu0
    %4279 = vmatprep.mubr.bf16.mxu0 %v4051
    %4280 = vmatmul.mubr.bf16.gmra.mxu0 %v4050
    %v4281 = vpop.f32.mrf.mxu0
    %v4282 = vadd.f32 %v4109, %v4281
    %v4283 = vpop.f32.mrf.mxu0
    %v4284 = vpop.f32.mrf.mxu0
    %v4285 = vadd.f32 %v4109, %v4284
    %v4286 = vpop.f32.mrf.mxu0
    %4287 = vmatprep.mubr.bf16.mxu0 %v4053
    %4288 = vmatmul.mubr.bf16.gmra.mxu0 %v4052
    %v4289 = vpop.f32.mrf.mxu0
    %v4290 = vadd.f32 %v4109, %v4289
    %v4291 = vpop.f32.mrf.mxu0
    %v4292 = vpop.f32.mrf.mxu0
    %v4293 = vadd.f32 %v4109, %v4292
    %v4294 = vpop.f32.mrf.mxu0
    %4295 = vmatprep.mubr.bf16.mxu0 %v4055
    %4296 = vmatmul.mubr.bf16.gmra.mxu0 %v4054
    %v4297 = vpop.f32.mrf.mxu0
    %v4298 = vadd.f32 %v4109, %v4297
    %v4299 = vpop.f32.mrf.mxu0
    %v4300 = vpop.f32.mrf.mxu0
    %v4301 = vadd.f32 %v4109, %v4300
    %v4302 = vpop.f32.mrf.mxu0
    %4303 = vmatprep.mubr.bf16.mxu0 %v4057
    %4304 = vmatmul.mubr.bf16.gmra.mxu0 %v4056
    %v4305 = vpop.f32.mrf.mxu0
    %v4306 = vadd.f32 %v4109, %v4305
    %v4307 = vpop.f32.mrf.mxu0
    %v4308 = vpop.f32.mrf.mxu0
    %v4309 = vadd.f32 %v4109, %v4308
    %v4310 = vpop.f32.mrf.mxu0
    %4311 = vmatprep.mubr.bf16.mxu0 %v4059
    %4312 = vmatmul.mubr.bf16.gmra.mxu0 %v4058
    %v4313 = vpop.f32.mrf.mxu0
    %v4314 = vadd.f32 %v4109, %v4313
    %v4315 = vpop.f32.mrf.mxu0
    %v4316 = vpop.f32.mrf.mxu0
    %v4317 = vadd.f32 %v4109, %v4316
    %v4318 = vpop.f32.mrf.mxu0
    %4319 = vmatprep.mubr.bf16.mxu0 %v4061
    %4320 = vmatmul.mubr.bf16.gmra.mxu0 %v4060
    %v4321 = vpop.f32.mrf.mxu0
    %v4322 = vadd.f32 %v4109, %v4321
    %v4323 = vpop.f32.mrf.mxu0
    %v4324 = vpop.f32.mrf.mxu0
    %v4325 = vadd.f32 %v4109, %v4324
    %v4326 = vpop.f32.mrf.mxu0
    %4327 = vmatprep.mubr.bf16.mxu0 %v4063
    %4328 = vmatmul.mubr.bf16.gmra.mxu0 %v4062
    %v4329 = vpop.f32.mrf.mxu0
    %v4330 = vadd.f32 %v4109, %v4329
    %v4331 = vpop.f32.mrf.mxu0
    %v4332 = vpop.f32.mrf.mxu0
    %v4333 = vadd.f32 %v4109, %v4332
    %v4334 = vpop.f32.mrf.mxu0
    %4335 = vmatprep.mubr.bf16.mxu0 %v4065
    %4336 = vmatmul.mubr.bf16.gmra.mxu0 %v4064
    %v4337 = vpop.f32.mrf.mxu0
    %v4338 = vadd.f32 %v4109, %v4337
    %v4339 = vpop.f32.mrf.mxu0
    %v4340 = vpop.f32.mrf.mxu0
    %v4341 = vadd.f32 %v4109, %v4340
    %v4342 = vpop.f32.mrf.mxu0
    %4343 = vmatprep.mubr.bf16.mxu0 %v4067
    %4344 = vmatmul.mubr.bf16.gmra.mxu0 %v4066
    %v4345 = vpop.f32.mrf.mxu0
    %v4346 = vadd.f32 %v4109, %v4345
    %v4347 = vpop.f32.mrf.mxu0
    %v4348 = vpop.f32.mrf.mxu0
    %v4349 = vadd.f32 %v4109, %v4348
    %v4350 = vpop.f32.mrf.mxu0
    %4351 = vmatprep.mubr.bf16.mxu0 %v4069
    %4352 = vmatmul.mubr.bf16.gmra.mxu0 %v4068
    %v4353 = vpop.f32.mrf.mxu0
    %v4354 = vadd.f32 %v4109, %v4353
    %v4355 = vpop.f32.mrf.mxu0
    %v4356 = vpop.f32.mrf.mxu0
    %v4357 = vadd.f32 %v4109, %v4356
    %v4358 = vpop.f32.mrf.mxu0
    %4359 = vmatprep.mubr.bf16.mxu0 %v4071
    %4360 = vmatmul.mubr.bf16.gmra.mxu0 %v4070
    %v4361 = vpop.f32.mrf.mxu0
    %v4362 = vadd.f32 %v4109, %v4361
    %v4363 = vpop.f32.mrf.mxu0
    %v4364 = vpop.f32.mrf.mxu0
    %v4365 = vadd.f32 %v4109, %v4364
    %v4366 = vpop.f32.mrf.mxu0
    %4367 = vdwg.mxu0
    %vm4368 = vcmask 64512
    %v4369 = vsel %vm4368, %v4242, -inf
    %4370 = vmax.xlane.f32.xlu0 %v4369
    %v4371 = vpop.xlane.xlu0 %4370
    %v4372 = vsel %vm4368, %v4245, -inf
    %4373 = vmax.xlane.f32.xlu0 %v4372
    %v4374 = vpop.xlane.xlu0 %4373
    %v4375 = vsel %vm4368, %v4250, -inf
    %4376 = vmax.xlane.f32.xlu0 %v4375
    %v4377 = vpop.xlane.xlu0 %4376
    %v4378 = vsel %vm4368, %v4253, -inf
    %4379 = vmax.xlane.f32.xlu0 %v4378
    %v4380 = vpop.xlane.xlu0 %4379
    %v4381 = vsel %vm4368, %v4258, -inf
    %4382 = vmax.xlane.f32.xlu0 %v4381
    %v4383 = vpop.xlane.xlu0 %4382
    %v4384 = vsel %vm4368, %v4261, -inf
    %4385 = vmax.xlane.f32.xlu0 %v4384
    %v4386 = vpop.xlane.xlu0 %4385
    %v4387 = vsel %vm4368, %v4266, -inf
    %4388 = vmax.xlane.f32.xlu0 %v4387
    %v4389 = vpop.xlane.xlu0 %4388
    %v4390 = vsel %vm4368, %v4269, -inf
    %4391 = vmax.xlane.f32.xlu0 %v4390
    %v4392 = vpop.xlane.xlu0 %4391
    %v4393 = vsel %vm4368, %v4274, -inf
    %4394 = vmax.xlane.f32.xlu0 %v4393
    %v4395 = vpop.xlane.xlu0 %4394
    %v4396 = vsel %vm4368, %v4277, -inf
    %4397 = vmax.xlane.f32.xlu0 %v4396
    %v4398 = vpop.xlane.xlu0 %4397
    %v4399 = vsel %vm4368, %v4282, -inf
    %4400 = vmax.xlane.f32.xlu0 %v4399
    %v4401 = vpop.xlane.xlu0 %4400
    %v4402 = vsel %vm4368, %v4285, -inf
    %4403 = vmax.xlane.f32.xlu0 %v4402
    %v4404 = vpop.xlane.xlu0 %4403
    %v4405 = vsel %vm4368, %v4290, -inf
    %4406 = vmax.xlane.f32.xlu0 %v4405
    %v4407 = vpop.xlane.xlu0 %4406
    %v4408 = vsel %vm4368, %v4293, -inf
    %4409 = vmax.xlane.f32.xlu0 %v4408
    %v4410 = vpop.xlane.xlu0 %4409
    %v4411 = vsel %vm4368, %v4298, -inf
    %4412 = vmax.xlane.f32.xlu0 %v4411
    %v4413 = vpop.xlane.xlu0 %4412
    %v4414 = vsel %vm4368, %v4301, -inf
    %4415 = vmax.xlane.f32.xlu0 %v4414
    %v4416 = vpop.xlane.xlu0 %4415
    %v4417 = vsel %vm4368, %v4306, -inf
    %4418 = vmax.xlane.f32.xlu0 %v4417
    %v4419 = vpop.xlane.xlu0 %4418
    %v4420 = vsel %vm4368, %v4309, -inf
    %4421 = vmax.xlane.f32.xlu0 %v4420
    %v4422 = vpop.xlane.xlu0 %4421
    %v4423 = vsel %vm4368, %v4314, -inf
    %4424 = vmax.xlane.f32.xlu0 %v4423
    %v4425 = vpop.xlane.xlu0 %4424
    %v4426 = vsel %vm4368, %v4317, -inf
    %4427 = vmax.xlane.f32.xlu0 %v4426
    %v4428 = vpop.xlane.xlu0 %4427
    %v4429 = vsel %vm4368, %v4322, -inf
    %4430 = vmax.xlane.f32.xlu0 %v4429
    %v4431 = vpop.xlane.xlu0 %4430
    %v4432 = vsel %vm4368, %v4325, -inf
    %4433 = vmax.xlane.f32.xlu0 %v4432
    %v4434 = vpop.xlane.xlu0 %4433
    %v4435 = vsel %vm4368, %v4330, -inf
    %4436 = vmax.xlane.f32.xlu0 %v4435
    %v4437 = vpop.xlane.xlu0 %4436
    %v4438 = vsel %vm4368, %v4333, -inf
    %4439 = vmax.xlane.f32.xlu0 %v4438
    %v4440 = vpop.xlane.xlu0 %4439
    %v4441 = vsel %vm4368, %v4338, -inf
    %4442 = vmax.xlane.f32.xlu0 %v4441
    %v4443 = vpop.xlane.xlu0 %4442
    %v4444 = vsel %vm4368, %v4341, -inf
    %4445 = vmax.xlane.f32.xlu0 %v4444
    %v4446 = vpop.xlane.xlu0 %4445
    %v4447 = vsel %vm4368, %v4346, -inf
    %4448 = vmax.xlane.f32.xlu0 %v4447
    %v4449 = vpop.xlane.xlu0 %4448
    %v4450 = vsel %vm4368, %v4349, -inf
    %4451 = vmax.xlane.f32.xlu0 %v4450
    %v4452 = vpop.xlane.xlu0 %4451
    %v4453 = vsel %vm4368, %v4354, -inf
    %4454 = vmax.xlane.f32.xlu0 %v4453
    %v4455 = vpop.xlane.xlu0 %4454
    %v4456 = vsel %vm4368, %v4357, -inf
    %4457 = vmax.xlane.f32.xlu0 %v4456
    %v4458 = vpop.xlane.xlu0 %4457
    %v4459 = vsel %vm4368, %v4362, -inf
    %4460 = vmax.xlane.f32.xlu0 %v4459
    %v4461 = vpop.xlane.xlu0 %4460
    %v4462 = vsel %vm4368, %v4365, -inf
    %4463 = vmax.xlane.f32.xlu0 %v4462
    %v4464 = vpop.xlane.xlu0 %4463
    %v4465 = vsub.f32 %v4242, %v4371
    %v4466 = vsub.f32 %v4245, %v4374
    %v4467 = vsub.f32 %v4250, %v4377
    %v4468 = vsub.f32 %v4253, %v4380
    %v4469 = vsub.f32 %v4258, %v4383
    %v4470 = vsub.f32 %v4261, %v4386
    %v4471 = vsub.f32 %v4266, %v4389
    %v4472 = vsub.f32 %v4269, %v4392
    %v4473 = vsub.f32 %v4274, %v4395
    %v4474 = vsub.f32 %v4277, %v4398
    %v4475 = vsub.f32 %v4282, %v4401
    %v4476 = vsub.f32 %v4285, %v4404
    %v4477 = vsub.f32 %v4290, %v4407
    %v4478 = vsub.f32 %v4293, %v4410
    %v4479 = vsub.f32 %v4298, %v4413
    %v4480 = vsub.f32 %v4301, %v4416
    %v4481 = vsub.f32 %v4306, %v4419
    %v4482 = vsub.f32 %v4309, %v4422
    %v4483 = vsub.f32 %v4314, %v4425
    %v4484 = vsub.f32 %v4317, %v4428
    %v4485 = vsub.f32 %v4322, %v4431
    %v4486 = vsub.f32 %v4325, %v4434
    %v4487 = vsub.f32 %v4330, %v4437
    %v4488 = vsub.f32 %v4333, %v4440
    %v4489 = vsub.f32 %v4338, %v4443
    %v4490 = vsub.f32 %v4341, %v4446
    %v4491 = vsub.f32 %v4346, %v4449
    %v4492 = vsub.f32 %v4349, %v4452
    %v4493 = vsub.f32 %v4354, %v4455
    %v4494 = vsub.f32 %v4357, %v4458
    %v4495 = vsub.f32 %v4362, %v4461
    %v4496 = vsub.f32 %v4365, %v4464
    %v4497 = vmul.f32 %v4465, 1.442695
    %v4498 = vpow.pop %v4497
    %v4499 = vmul.f32 %v4466, 1.442695
    %v4500 = vpow.pop %v4499
    %v4501 = vmul.f32 %v4467, 1.442695
    %v4502 = vpow.pop %v4501
    %v4503 = vmul.f32 %v4468, 1.442695
    %v4504 = vpow.pop %v4503
    %v4505 = vmul.f32 %v4469, 1.442695
    %v4506 = vpow.pop %v4505
    %v4507 = vmul.f32 %v4470, 1.442695
    %v4508 = vpow.pop %v4507
    %v4509 = vmul.f32 %v4471, 1.442695
    %v4510 = vpow.pop %v4509
    %v4511 = vmul.f32 %v4472, 1.442695
    %v4512 = vpow.pop %v4511
    %v4513 = vmul.f32 %v4473, 1.442695
    %v4514 = vpow.pop %v4513
    %v4515 = vmul.f32 %v4474, 1.442695
    %v4516 = vpow.pop %v4515
    %v4517 = vmul.f32 %v4475, 1.442695
    %v4518 = vpow.pop %v4517
    %v4519 = vmul.f32 %v4476, 1.442695
    %v4520 = vpow.pop %v4519
    %v4521 = vmul.f32 %v4477, 1.442695
    %v4522 = vpow.pop %v4521
    %v4523 = vmul.f32 %v4478, 1.442695
    %v4524 = vpow.pop %v4523
    %v4525 = vmul.f32 %v4479, 1.442695
    %v4526 = vpow.pop %v4525
    %v4527 = vmul.f32 %v4480, 1.442695
    %v4528 = vpow.pop %v4527
    %v4529 = vmul.f32 %v4481, 1.442695
    %v4530 = vpow.pop %v4529
    %v4531 = vmul.f32 %v4482, 1.442695
    %v4532 = vpow.pop %v4531
    %v4533 = vmul.f32 %v4483, 1.442695
    %v4534 = vpow.pop %v4533
    %v4535 = vmul.f32 %v4484, 1.442695
    %v4536 = vpow.pop %v4535
    %v4537 = vmul.f32 %v4485, 1.442695
    %v4538 = vpow.pop %v4537
    %v4539 = vmul.f32 %v4486, 1.442695
    %v4540 = vpow.pop %v4539
    %v4541 = vmul.f32 %v4487, 1.442695
    %v4542 = vpow.pop %v4541
    %v4543 = vmul.f32 %v4488, 1.442695
    %v4544 = vpow.pop %v4543
    %v4545 = vmul.f32 %v4489, 1.442695
    %v4546 = vpow.pop %v4545
    %v4547 = vmul.f32 %v4490, 1.442695
    %v4548 = vpow.pop %v4547
    %v4549 = vmul.f32 %v4491, 1.442695
    %v4550 = vpow.pop %v4549
    %v4551 = vmul.f32 %v4492, 1.442695
    %v4552 = vpow.pop %v4551
    %v4553 = vmul.f32 %v4493, 1.442695
    %v4554 = vpow.pop %v4553
    %v4555 = vmul.f32 %v4494, 1.442695
    %v4556 = vpow.pop %v4555
    %v4557 = vmul.f32 %v4495, 1.442695
    %v4558 = vpow.pop %v4557
    %v4559 = vmul.f32 %v4496, 1.442695
    %v4560 = vpow.pop %v4559
    %v4561 = vsel %vm4368, %v4498, 0.0
    %4562 = vadd.xlane.f32.xlu0 %v4561
    %v4563 = vpop.xlane.xlu0 %4562
    %v4564 = vsel %vm4368, %v4500, 0.0
    %4565 = vadd.xlane.f32.xlu0 %v4564
    %v4566 = vpop.xlane.xlu0 %4565
    %v4567 = vsel %vm4368, %v4502, 0.0
    %4568 = vadd.xlane.f32.xlu0 %v4567
    %v4569 = vpop.xlane.xlu0 %4568
    %v4570 = vsel %vm4368, %v4504, 0.0
    %4571 = vadd.xlane.f32.xlu0 %v4570
    %v4572 = vpop.xlane.xlu0 %4571
    %v4573 = vsel %vm4368, %v4506, 0.0
    %4574 = vadd.xlane.f32.xlu0 %v4573
    %v4575 = vpop.xlane.xlu0 %4574
    %v4576 = vsel %vm4368, %v4508, 0.0
    %4577 = vadd.xlane.f32.xlu0 %v4576
    %v4578 = vpop.xlane.xlu0 %4577
    %v4579 = vsel %vm4368, %v4510, 0.0
    %4580 = vadd.xlane.f32.xlu0 %v4579
    %v4581 = vpop.xlane.xlu0 %4580
    %v4582 = vsel %vm4368, %v4512, 0.0
    %4583 = vadd.xlane.f32.xlu0 %v4582
    %v4584 = vpop.xlane.xlu0 %4583
    %v4585 = vsel %vm4368, %v4514, 0.0
    %4586 = vadd.xlane.f32.xlu0 %v4585
    %v4587 = vpop.xlane.xlu0 %4586
    %v4588 = vsel %vm4368, %v4516, 0.0
    %4589 = vadd.xlane.f32.xlu0 %v4588
    %v4590 = vpop.xlane.xlu0 %4589
    %v4591 = vsel %vm4368, %v4518, 0.0
    %4592 = vadd.xlane.f32.xlu0 %v4591
    %v4593 = vpop.xlane.xlu0 %4592
    %v4594 = vsel %vm4368, %v4520, 0.0
    %4595 = vadd.xlane.f32.xlu0 %v4594
    %v4596 = vpop.xlane.xlu0 %4595
    %v4597 = vsel %vm4368, %v4522, 0.0
    %4598 = vadd.xlane.f32.xlu0 %v4597
    %v4599 = vpop.xlane.xlu0 %4598
    %v4600 = vsel %vm4368, %v4524, 0.0
    %4601 = vadd.xlane.f32.xlu0 %v4600
    %v4602 = vpop.xlane.xlu0 %4601
    %v4603 = vsel %vm4368, %v4526, 0.0
    %4604 = vadd.xlane.f32.xlu0 %v4603
    %v4605 = vpop.xlane.xlu0 %4604
    %v4606 = vsel %vm4368, %v4528, 0.0
    %4607 = vadd.xlane.f32.xlu0 %v4606
    %v4608 = vpop.xlane.xlu0 %4607
    %v4609 = vsel %vm4368, %v4530, 0.0
    %4610 = vadd.xlane.f32.xlu0 %v4609
    %v4611 = vpop.xlane.xlu0 %4610
    %v4612 = vsel %vm4368, %v4532, 0.0
    %4613 = vadd.xlane.f32.xlu0 %v4612
    %v4614 = vpop.xlane.xlu0 %4613
    %v4615 = vsel %vm4368, %v4534, 0.0
    %4616 = vadd.xlane.f32.xlu0 %v4615
    %v4617 = vpop.xlane.xlu0 %4616
    %v4618 = vsel %vm4368, %v4536, 0.0
    %4619 = vadd.xlane.f32.xlu0 %v4618
    %v4620 = vpop.xlane.xlu0 %4619
    %v4621 = vsel %vm4368, %v4538, 0.0
    %4622 = vadd.xlane.f32.xlu0 %v4621
    %v4623 = vpop.xlane.xlu0 %4622
    %v4624 = vsel %vm4368, %v4540, 0.0
    %4625 = vadd.xlane.f32.xlu0 %v4624
    %v4626 = vpop.xlane.xlu0 %4625
    %v4627 = vsel %vm4368, %v4542, 0.0
    %4628 = vadd.xlane.f32.xlu0 %v4627
    %v4629 = vpop.xlane.xlu0 %4628
    %v4630 = vsel %vm4368, %v4544, 0.0
    %4631 = vadd.xlane.f32.xlu0 %v4630
    %v4632 = vpop.xlane.xlu0 %4631
    %v4633 = vsel %vm4368, %v4546, 0.0
    %4634 = vadd.xlane.f32.xlu0 %v4633
    %v4635 = vpop.xlane.xlu0 %4634
    %v4636 = vsel %vm4368, %v4548, 0.0
    %4637 = vadd.xlane.f32.xlu0 %v4636
    %v4638 = vpop.xlane.xlu0 %4637
    %v4639 = vsel %vm4368, %v4550, 0.0
    %4640 = vadd.xlane.f32.xlu0 %v4639
    %v4641 = vpop.xlane.xlu0 %4640
    %v4642 = vsel %vm4368, %v4552, 0.0
    %4643 = vadd.xlane.f32.xlu0 %v4642
    %v4644 = vpop.xlane.xlu0 %4643
    %v4645 = vsel %vm4368, %v4554, 0.0
    %4646 = vadd.xlane.f32.xlu0 %v4645
    %v4647 = vpop.xlane.xlu0 %4646
    %v4648 = vsel %vm4368, %v4556, 0.0
    %4649 = vadd.xlane.f32.xlu0 %v4648
    %v4650 = vpop.xlane.xlu0 %4649
    %v4651 = vsel %vm4368, %v4558, 0.0
    %4652 = vadd.xlane.f32.xlu0 %v4651
    %v4653 = vpop.xlane.xlu0 %4652
    %v4654 = vsel %vm4368, %v4560, 0.0
    %4655 = vadd.xlane.f32.xlu0 %v4654
    %v4656 = vpop.xlane.xlu0 %4655
    %v4657 = vrcp.pop %v4563
    %v4658 = vrcp.pop %v4566
    %v4659 = vrcp.pop %v4569
    %v4660 = vrcp.pop %v4572
    %v4661 = vrcp.pop %v4575
    %v4662 = vrcp.pop %v4578
    %v4663 = vrcp.pop %v4581
    %v4664 = vrcp.pop %v4584
    %v4665 = vrcp.pop %v4587
    %v4666 = vrcp.pop %v4590
    %v4667 = vrcp.pop %v4593
    %v4668 = vrcp.pop %v4596
    %v4669 = vrcp.pop %v4599
    %v4670 = vrcp.pop %v4602
    %v4671 = vrcp.pop %v4605
    %v4672 = vrcp.pop %v4608
    %v4673 = vrcp.pop %v4611
    %v4674 = vrcp.pop %v4614
    %v4675 = vrcp.pop %v4617
    %v4676 = vrcp.pop %v4620
    %v4677 = vrcp.pop %v4623
    %v4678 = vrcp.pop %v4626
    %v4679 = vrcp.pop %v4629
    %v4680 = vrcp.pop %v4632
    %v4681 = vrcp.pop %v4635
    %v4682 = vrcp.pop %v4638
    %v4683 = vrcp.pop %v4641
    %v4684 = vrcp.pop %v4644
    %v4685 = vrcp.pop %v4647
    %v4686 = vrcp.pop %v4650
    %v4687 = vrcp.pop %v4653
    %v4688 = vrcp.pop %v4656
    %v4689 = vmul.f32 %v4498, %v4657
    %v4690 = vmul.f32 %v4500, %v4658
    %v4691 = vmul.f32 %v4502, %v4659
    %v4692 = vmul.f32 %v4504, %v4660
    %v4693 = vmul.f32 %v4506, %v4661
    %v4694 = vmul.f32 %v4508, %v4662
    %v4695 = vmul.f32 %v4510, %v4663
    %v4696 = vmul.f32 %v4512, %v4664
    %v4697 = vmul.f32 %v4514, %v4665
    %v4698 = vmul.f32 %v4516, %v4666
    %v4699 = vmul.f32 %v4518, %v4667
    %v4700 = vmul.f32 %v4520, %v4668
    %v4701 = vmul.f32 %v4522, %v4669
    %v4702 = vmul.f32 %v4524, %v4670
    %v4703 = vmul.f32 %v4526, %v4671
    %v4704 = vmul.f32 %v4528, %v4672
    %v4705 = vmul.f32 %v4530, %v4673
    %v4706 = vmul.f32 %v4532, %v4674
    %v4707 = vmul.f32 %v4534, %v4675
    %v4708 = vmul.f32 %v4536, %v4676
    %v4709 = vmul.f32 %v4538, %v4677
    %v4710 = vmul.f32 %v4540, %v4678
    %v4711 = vmul.f32 %v4542, %v4679
    %v4712 = vmul.f32 %v4544, %v4680
    %v4713 = vmul.f32 %v4546, %v4681
    %v4714 = vmul.f32 %v4548, %v4682
    %v4715 = vmul.f32 %v4550, %v4683
    %v4716 = vmul.f32 %v4552, %v4684
    %v4717 = vmul.f32 %v4554, %v4685
    %v4718 = vmul.f32 %v4556, %v4686
    %v4719 = vmul.f32 %v4558, %v4687
    %v4720 = vmul.f32 %v4560, %v4688
    %vm4721 = vcmask 80960
    %v4722 = vsel %vm4721, %v4242, -inf
    %4723 = vmax.xlane.f32.xlu0 %v4722
    %v4724 = vpop.xlane.xlu0 %4723
    %v4725 = vsel %vm4721, %v4245, -inf
    %4726 = vmax.xlane.f32.xlu0 %v4725
    %v4727 = vpop.xlane.xlu0 %4726
    %v4728 = vsel %vm4721, %v4250, -inf
    %4729 = vmax.xlane.f32.xlu0 %v4728
    %v4730 = vpop.xlane.xlu0 %4729
    %v4731 = vsel %vm4721, %v4253, -inf
    %4732 = vmax.xlane.f32.xlu0 %v4731
    %v4733 = vpop.xlane.xlu0 %4732
    %v4734 = vsel %vm4721, %v4258, -inf
    %4735 = vmax.xlane.f32.xlu0 %v4734
    %v4736 = vpop.xlane.xlu0 %4735
    %v4737 = vsel %vm4721, %v4261, -inf
    %4738 = vmax.xlane.f32.xlu0 %v4737
    %v4739 = vpop.xlane.xlu0 %4738
    %v4740 = vsel %vm4721, %v4266, -inf
    %4741 = vmax.xlane.f32.xlu0 %v4740
    %v4742 = vpop.xlane.xlu0 %4741
    %v4743 = vsel %vm4721, %v4269, -inf
    %4744 = vmax.xlane.f32.xlu0 %v4743
    %v4745 = vpop.xlane.xlu0 %4744
    %v4746 = vsel %vm4721, %v4274, -inf
    %4747 = vmax.xlane.f32.xlu0 %v4746
    %v4748 = vpop.xlane.xlu0 %4747
    %v4749 = vsel %vm4721, %v4277, -inf
    %4750 = vmax.xlane.f32.xlu0 %v4749
    %v4751 = vpop.xlane.xlu0 %4750
    %v4752 = vsel %vm4721, %v4282, -inf
    %4753 = vmax.xlane.f32.xlu0 %v4752
    %v4754 = vpop.xlane.xlu0 %4753
    %v4755 = vsel %vm4721, %v4285, -inf
    %4756 = vmax.xlane.f32.xlu0 %v4755
    %v4757 = vpop.xlane.xlu0 %4756
    %v4758 = vsel %vm4721, %v4290, -inf
    %4759 = vmax.xlane.f32.xlu0 %v4758
    %v4760 = vpop.xlane.xlu0 %4759
    %v4761 = vsel %vm4721, %v4293, -inf
    %4762 = vmax.xlane.f32.xlu0 %v4761
    %v4763 = vpop.xlane.xlu0 %4762
    %v4764 = vsel %vm4721, %v4298, -inf
    %4765 = vmax.xlane.f32.xlu0 %v4764
    %v4766 = vpop.xlane.xlu0 %4765
    %v4767 = vsel %vm4721, %v4301, -inf
    %4768 = vmax.xlane.f32.xlu0 %v4767
    %v4769 = vpop.xlane.xlu0 %4768
    %v4770 = vsel %vm4721, %v4306, -inf
    %4771 = vmax.xlane.f32.xlu0 %v4770
    %v4772 = vpop.xlane.xlu0 %4771
    %v4773 = vsel %vm4721, %v4309, -inf
    %4774 = vmax.xlane.f32.xlu0 %v4773
    %v4775 = vpop.xlane.xlu0 %4774
    %v4776 = vsel %vm4721, %v4314, -inf
    %4777 = vmax.xlane.f32.xlu0 %v4776
    %v4778 = vpop.xlane.xlu0 %4777
    %v4779 = vsel %vm4721, %v4317, -inf
    %4780 = vmax.xlane.f32.xlu0 %v4779
    %v4781 = vpop.xlane.xlu0 %4780
    %v4782 = vsel %vm4721, %v4322, -inf
    %4783 = vmax.xlane.f32.xlu0 %v4782
    %v4784 = vpop.xlane.xlu0 %4783
    %v4785 = vsel %vm4721, %v4325, -inf
    %4786 = vmax.xlane.f32.xlu0 %v4785
    %v4787 = vpop.xlane.xlu0 %4786
    %v4788 = vsel %vm4721, %v4330, -inf
    %4789 = vmax.xlane.f32.xlu0 %v4788
    %v4790 = vpop.xlane.xlu0 %4789
    %v4791 = vsel %vm4721, %v4333, -inf
    %4792 = vmax.xlane.f32.xlu0 %v4791
    %v4793 = vpop.xlane.xlu0 %4792
    %v4794 = vsel %vm4721, %v4338, -inf
    %4795 = vmax.xlane.f32.xlu0 %v4794
    %v4796 = vpop.xlane.xlu0 %4795
    %v4797 = vsel %vm4721, %v4341, -inf
    %4798 = vmax.xlane.f32.xlu0 %v4797
    %v4799 = vpop.xlane.xlu0 %4798
    %v4800 = vsel %vm4721, %v4346, -inf
    %4801 = vmax.xlane.f32.xlu0 %v4800
    %v4802 = vpop.xlane.xlu0 %4801
    %v4803 = vsel %vm4721, %v4349, -inf
    %4804 = vmax.xlane.f32.xlu0 %v4803
    %v4805 = vpop.xlane.xlu0 %4804
    %v4806 = vsel %vm4721, %v4354, -inf
    %4807 = vmax.xlane.f32.xlu0 %v4806
    %v4808 = vpop.xlane.xlu0 %4807
    %v4809 = vsel %vm4721, %v4357, -inf
    %4810 = vmax.xlane.f32.xlu0 %v4809
    %v4811 = vpop.xlane.xlu0 %4810
    %v4812 = vsel %vm4721, %v4362, -inf
    %4813 = vmax.xlane.f32.xlu0 %v4812
    %v4814 = vpop.xlane.xlu0 %4813
    %v4815 = vsel %vm4721, %v4365, -inf
    %4816 = vmax.xlane.f32.xlu0 %v4815
    %v4817 = vpop.xlane.xlu0 %4816
    %v4818 = vsub.f32 %v4242, %v4724
    %v4819 = vsub.f32 %v4245, %v4727
    %v4820 = vsub.f32 %v4250, %v4730
    %v4821 = vsub.f32 %v4253, %v4733
    %v4822 = vsub.f32 %v4258, %v4736
    %v4823 = vsub.f32 %v4261, %v4739
    %v4824 = vsub.f32 %v4266, %v4742
    %v4825 = vsub.f32 %v4269, %v4745
    %v4826 = vsub.f32 %v4274, %v4748
    %v4827 = vsub.f32 %v4277, %v4751
    %v4828 = vsub.f32 %v4282, %v4754
    %v4829 = vsub.f32 %v4285, %v4757
    %v4830 = vsub.f32 %v4290, %v4760
    %v4831 = vsub.f32 %v4293, %v4763
    %v4832 = vsub.f32 %v4298, %v4766
    %v4833 = vsub.f32 %v4301, %v4769
    %v4834 = vsub.f32 %v4306, %v4772
    %v4835 = vsub.f32 %v4309, %v4775
    %v4836 = vsub.f32 %v4314, %v4778
    %v4837 = vsub.f32 %v4317, %v4781
    %v4838 = vsub.f32 %v4322, %v4784
    %v4839 = vsub.f32 %v4325, %v4787
    %v4840 = vsub.f32 %v4330, %v4790
    %v4841 = vsub.f32 %v4333, %v4793
    %v4842 = vsub.f32 %v4338, %v4796
    %v4843 = vsub.f32 %v4341, %v4799
    %v4844 = vsub.f32 %v4346, %v4802
    %v4845 = vsub.f32 %v4349, %v4805
    %v4846 = vsub.f32 %v4354, %v4808
    %v4847 = vsub.f32 %v4357, %v4811
    %v4848 = vsub.f32 %v4362, %v4814
    %v4849 = vsub.f32 %v4365, %v4817
    %v4850 = vmul.f32 %v4818, 1.442695
    %v4851 = vpow.pop %v4850
    %v4852 = vmul.f32 %v4819, 1.442695
    %v4853 = vpow.pop %v4852
    %v4854 = vmul.f32 %v4820, 1.442695
    %v4855 = vpow.pop %v4854
    %v4856 = vmul.f32 %v4821, 1.442695
    %v4857 = vpow.pop %v4856
    %v4858 = vmul.f32 %v4822, 1.442695
    %v4859 = vpow.pop %v4858
    %v4860 = vmul.f32 %v4823, 1.442695
    %v4861 = vpow.pop %v4860
    %v4862 = vmul.f32 %v4824, 1.442695
    %v4863 = vpow.pop %v4862
    %v4864 = vmul.f32 %v4825, 1.442695
    %v4865 = vpow.pop %v4864
    %v4866 = vmul.f32 %v4826, 1.442695
    %v4867 = vpow.pop %v4866
    %v4868 = vmul.f32 %v4827, 1.442695
    %v4869 = vpow.pop %v4868
    %v4870 = vmul.f32 %v4828, 1.442695
    %v4871 = vpow.pop %v4870
    %v4872 = vmul.f32 %v4829, 1.442695
    %v4873 = vpow.pop %v4872
    %v4874 = vmul.f32 %v4830, 1.442695
    %v4875 = vpow.pop %v4874
    %v4876 = vmul.f32 %v4831, 1.442695
    %v4877 = vpow.pop %v4876
    %v4878 = vmul.f32 %v4832, 1.442695
    %v4879 = vpow.pop %v4878
    %v4880 = vmul.f32 %v4833, 1.442695
    %v4881 = vpow.pop %v4880
    %v4882 = vmul.f32 %v4834, 1.442695
    %v4883 = vpow.pop %v4882
    %v4884 = vmul.f32 %v4835, 1.442695
    %v4885 = vpow.pop %v4884
    %v4886 = vmul.f32 %v4836, 1.442695
    %v4887 = vpow.pop %v4886
    %v4888 = vmul.f32 %v4837, 1.442695
    %v4889 = vpow.pop %v4888
    %v4890 = vmul.f32 %v4838, 1.442695
    %v4891 = vpow.pop %v4890
    %v4892 = vmul.f32 %v4839, 1.442695
    %v4893 = vpow.pop %v4892
    %v4894 = vmul.f32 %v4840, 1.442695
    %v4895 = vpow.pop %v4894
    %v4896 = vmul.f32 %v4841, 1.442695
    %v4897 = vpow.pop %v4896
    %v4898 = vmul.f32 %v4842, 1.442695
    %v4899 = vpow.pop %v4898
    %v4900 = vmul.f32 %v4843, 1.442695
    %v4901 = vpow.pop %v4900
    %v4902 = vmul.f32 %v4844, 1.442695
    %v4903 = vpow.pop %v4902
    %v4904 = vmul.f32 %v4845, 1.442695
    %v4905 = vpow.pop %v4904
    %v4906 = vmul.f32 %v4846, 1.442695
    %v4907 = vpow.pop %v4906
    %v4908 = vmul.f32 %v4847, 1.442695
    %v4909 = vpow.pop %v4908
    %v4910 = vmul.f32 %v4848, 1.442695
    %v4911 = vpow.pop %v4910
    %v4912 = vmul.f32 %v4849, 1.442695
    %v4913 = vpow.pop %v4912
    %4946 = vrot.lane.b32.xlu0 %v4851, 120
    %v4947 = vpop.permute.xlu0 %4946
    %4948 = vrot.lane.b32.xlu0 %v4853, 120
    %v4949 = vpop.permute.xlu0 %4948
    %4950 = vrot.lane.b32.xlu0 %v4855, 120
    %v4951 = vpop.permute.xlu0 %4950
    %4952 = vrot.lane.b32.xlu0 %v4857, 120
    %v4953 = vpop.permute.xlu0 %4952
    %4954 = vrot.lane.b32.xlu0 %v4859, 120
    %v4955 = vpop.permute.xlu0 %4954
    %4956 = vrot.lane.b32.xlu0 %v4861, 120
    %v4957 = vpop.permute.xlu0 %4956
    %4958 = vrot.lane.b32.xlu0 %v4863, 120
    %v4959 = vpop.permute.xlu0 %4958
    %4960 = vrot.lane.b32.xlu0 %v4865, 120
    %v4961 = vpop.permute.xlu0 %4960
    %4962 = vrot.lane.b32.xlu0 %v4867, 120
    %v4963 = vpop.permute.xlu0 %4962
    %4964 = vrot.lane.b32.xlu0 %v4869, 120
    %v4965 = vpop.permute.xlu0 %4964
    %4966 = vrot.lane.b32.xlu0 %v4871, 120
    %v4967 = vpop.permute.xlu0 %4966
    %4968 = vrot.lane.b32.xlu0 %v4873, 120
    %v4969 = vpop.permute.xlu0 %4968
    %4970 = vrot.lane.b32.xlu0 %v4875, 120
    %v4971 = vpop.permute.xlu0 %4970
    %4972 = vrot.lane.b32.xlu0 %v4877, 120
    %v4973 = vpop.permute.xlu0 %4972
    %4974 = vrot.lane.b32.xlu0 %v4879, 120
    %v4975 = vpop.permute.xlu0 %4974
    %4976 = vrot.lane.b32.xlu0 %v4881, 120
    %v4977 = vpop.permute.xlu0 %4976
    %4978 = vrot.lane.b32.xlu0 %v4883, 120
    %v4979 = vpop.permute.xlu0 %4978
    %4980 = vrot.lane.b32.xlu0 %v4885, 120
    %v4981 = vpop.permute.xlu0 %4980
    %4982 = vrot.lane.b32.xlu0 %v4887, 120
    %v4983 = vpop.permute.xlu0 %4982
    %4984 = vrot.lane.b32.xlu0 %v4889, 120
    %v4985 = vpop.permute.xlu0 %4984
    %4986 = vrot.lane.b32.xlu0 %v4891, 120
    %v4987 = vpop.permute.xlu0 %4986
    %4988 = vrot.lane.b32.xlu0 %v4893, 120
    %v4989 = vpop.permute.xlu0 %4988
    %4990 = vrot.lane.b32.xlu0 %v4895, 120
    %v4991 = vpop.permute.xlu0 %4990
    %4992 = vrot.lane.b32.xlu0 %v4897, 120
    %v4993 = vpop.permute.xlu0 %4992
    %4994 = vrot.lane.b32.xlu0 %v4899, 120
    %v4995 = vpop.permute.xlu0 %4994
    %4996 = vrot.lane.b32.xlu0 %v4901, 120
    %v4997 = vpop.permute.xlu0 %4996
    %4998 = vrot.lane.b32.xlu0 %v4903, 120
    %v4999 = vpop.permute.xlu0 %4998
    %5000 = vrot.lane.b32.xlu0 %v4905, 120
    %v5001 = vpop.permute.xlu0 %5000
    %5002 = vrot.lane.b32.xlu0 %v4907, 120
    %v5003 = vpop.permute.xlu0 %5002
    %5004 = vrot.lane.b32.xlu0 %v4909, 120
    %v5005 = vpop.permute.xlu0 %5004
    %5006 = vrot.lane.b32.xlu0 %v4911, 120
    %v5007 = vpop.permute.xlu0 %5006
    %5008 = vrot.lane.b32.xlu0 %v4913, 120
    %v5009 = vpop.permute.xlu0 %5008
    %vm5042 = vcmask 15360
    %v5043 = vsel %vm5042, %v4947, 0.0
    %5044 = vadd.xlane.f32.xlu0 %v5043
    %v5045 = vpop.xlane.xlu0 %5044
    %v5046 = vsel %vm5042, %v4949, 0.0
    %5047 = vadd.xlane.f32.xlu0 %v5046
    %v5048 = vpop.xlane.xlu0 %5047
    %v5049 = vsel %vm5042, %v4951, 0.0
    %5050 = vadd.xlane.f32.xlu0 %v5049
    %v5051 = vpop.xlane.xlu0 %5050
    %v5052 = vsel %vm5042, %v4953, 0.0
    %5053 = vadd.xlane.f32.xlu0 %v5052
    %v5054 = vpop.xlane.xlu0 %5053
    %v5055 = vsel %vm5042, %v4955, 0.0
    %5056 = vadd.xlane.f32.xlu0 %v5055
    %v5057 = vpop.xlane.xlu0 %5056
    %v5058 = vsel %vm5042, %v4957, 0.0
    %5059 = vadd.xlane.f32.xlu0 %v5058
    %v5060 = vpop.xlane.xlu0 %5059
    %v5061 = vsel %vm5042, %v4959, 0.0
    %5062 = vadd.xlane.f32.xlu0 %v5061
    %v5063 = vpop.xlane.xlu0 %5062
    %v5064 = vsel %vm5042, %v4961, 0.0
    %5065 = vadd.xlane.f32.xlu0 %v5064
    %v5066 = vpop.xlane.xlu0 %5065
    %v5067 = vsel %vm5042, %v4963, 0.0
    %5068 = vadd.xlane.f32.xlu0 %v5067
    %v5069 = vpop.xlane.xlu0 %5068
    %v5070 = vsel %vm5042, %v4965, 0.0
    %5071 = vadd.xlane.f32.xlu0 %v5070
    %v5072 = vpop.xlane.xlu0 %5071
    %v5073 = vsel %vm5042, %v4967, 0.0
    %5074 = vadd.xlane.f32.xlu0 %v5073
    %v5075 = vpop.xlane.xlu0 %5074
    %v5076 = vsel %vm5042, %v4969, 0.0
    %5077 = vadd.xlane.f32.xlu0 %v5076
    %v5078 = vpop.xlane.xlu0 %5077
    %v5079 = vsel %vm5042, %v4971, 0.0
    %5080 = vadd.xlane.f32.xlu0 %v5079
    %v5081 = vpop.xlane.xlu0 %5080
    %v5082 = vsel %vm5042, %v4973, 0.0
    %5083 = vadd.xlane.f32.xlu0 %v5082
    %v5084 = vpop.xlane.xlu0 %5083
    %v5085 = vsel %vm5042, %v4975, 0.0
    %5086 = vadd.xlane.f32.xlu0 %v5085
    %v5087 = vpop.xlane.xlu0 %5086
    %v5088 = vsel %vm5042, %v4977, 0.0
    %5089 = vadd.xlane.f32.xlu0 %v5088
    %v5090 = vpop.xlane.xlu0 %5089
    %v5091 = vsel %vm5042, %v4979, 0.0
    %5092 = vadd.xlane.f32.xlu0 %v5091
    %v5093 = vpop.xlane.xlu0 %5092
    %v5094 = vsel %vm5042, %v4981, 0.0
    %5095 = vadd.xlane.f32.xlu0 %v5094
    %v5096 = vpop.xlane.xlu0 %5095
    %v5097 = vsel %vm5042, %v4983, 0.0
    %5098 = vadd.xlane.f32.xlu0 %v5097
    %v5099 = vpop.xlane.xlu0 %5098
    %v5100 = vsel %vm5042, %v4985, 0.0
    %5101 = vadd.xlane.f32.xlu0 %v5100
    %v5102 = vpop.xlane.xlu0 %5101
    %v5103 = vsel %vm5042, %v4987, 0.0
    %5104 = vadd.xlane.f32.xlu0 %v5103
    %v5105 = vpop.xlane.xlu0 %5104
    %v5106 = vsel %vm5042, %v4989, 0.0
    %5107 = vadd.xlane.f32.xlu0 %v5106
    %v5108 = vpop.xlane.xlu0 %5107
    %v5109 = vsel %vm5042, %v4991, 0.0
    %5110 = vadd.xlane.f32.xlu0 %v5109
    %v5111 = vpop.xlane.xlu0 %5110
    %v5112 = vsel %vm5042, %v4993, 0.0
    %5113 = vadd.xlane.f32.xlu0 %v5112
    %v5114 = vpop.xlane.xlu0 %5113
    %v5115 = vsel %vm5042, %v4995, 0.0
    %5116 = vadd.xlane.f32.xlu0 %v5115
    %v5117 = vpop.xlane.xlu0 %5116
    %v5118 = vsel %vm5042, %v4997, 0.0
    %5119 = vadd.xlane.f32.xlu0 %v5118
    %v5120 = vpop.xlane.xlu0 %5119
    %v5121 = vsel %vm5042, %v4999, 0.0
    %5122 = vadd.xlane.f32.xlu0 %v5121
    %v5123 = vpop.xlane.xlu0 %5122
    %v5124 = vsel %vm5042, %v5001, 0.0
    %5125 = vadd.xlane.f32.xlu0 %v5124
    %v5126 = vpop.xlane.xlu0 %5125
    %v5127 = vsel %vm5042, %v5003, 0.0
    %5128 = vadd.xlane.f32.xlu0 %v5127
    %v5129 = vpop.xlane.xlu0 %5128
    %v5130 = vsel %vm5042, %v5005, 0.0
    %5131 = vadd.xlane.f32.xlu0 %v5130
    %v5132 = vpop.xlane.xlu0 %5131
    %v5133 = vsel %vm5042, %v5007, 0.0
    %5134 = vadd.xlane.f32.xlu0 %v5133
    %v5135 = vpop.xlane.xlu0 %5134
    %v5136 = vsel %vm5042, %v5009, 0.0
    %5137 = vadd.xlane.f32.xlu0 %v5136
    %v5138 = vpop.xlane.xlu0 %5137
    %v5139 = vrcp.pop %v5045
    %v5140 = vrcp.pop %v5048
    %v5141 = vrcp.pop %v5051
    %v5142 = vrcp.pop %v5054
    %v5143 = vrcp.pop %v5057
    %v5144 = vrcp.pop %v5060
    %v5145 = vrcp.pop %v5063
    %v5146 = vrcp.pop %v5066
    %v5147 = vrcp.pop %v5069
    %v5148 = vrcp.pop %v5072
    %v5149 = vrcp.pop %v5075
    %v5150 = vrcp.pop %v5078
    %v5151 = vrcp.pop %v5081
    %v5152 = vrcp.pop %v5084
    %v5153 = vrcp.pop %v5087
    %v5154 = vrcp.pop %v5090
    %v5155 = vrcp.pop %v5093
    %v5156 = vrcp.pop %v5096
    %v5157 = vrcp.pop %v5099
    %v5158 = vrcp.pop %v5102
    %v5159 = vrcp.pop %v5105
    %v5160 = vrcp.pop %v5108
    %v5161 = vrcp.pop %v5111
    %v5162 = vrcp.pop %v5114
    %v5163 = vrcp.pop %v5117
    %v5164 = vrcp.pop %v5120
    %v5165 = vrcp.pop %v5123
    %v5166 = vrcp.pop %v5126
    %v5167 = vrcp.pop %v5129
    %v5168 = vrcp.pop %v5132
    %v5169 = vrcp.pop %v5135
    %v5170 = vrcp.pop %v5138
    %v5171 = vmul.f32 %v4851, %v5139
    %v5172 = vmul.f32 %v4853, %v5140
    %v5173 = vmul.f32 %v4855, %v5141
    %v5174 = vmul.f32 %v4857, %v5142
    %v5175 = vmul.f32 %v4859, %v5143
    %v5176 = vmul.f32 %v4861, %v5144
    %v5177 = vmul.f32 %v4863, %v5145
    %v5178 = vmul.f32 %v4865, %v5146
    %v5179 = vmul.f32 %v4867, %v5147
    %v5180 = vmul.f32 %v4869, %v5148
    %v5181 = vmul.f32 %v4871, %v5149
    %v5182 = vmul.f32 %v4873, %v5150
    %v5183 = vmul.f32 %v4875, %v5151
    %v5184 = vmul.f32 %v4877, %v5152
    %v5185 = vmul.f32 %v4879, %v5153
    %v5186 = vmul.f32 %v4881, %v5154
    %v5187 = vmul.f32 %v4883, %v5155
    %v5188 = vmul.f32 %v4885, %v5156
    %v5189 = vmul.f32 %v4887, %v5157
    %v5190 = vmul.f32 %v4889, %v5158
    %v5191 = vmul.f32 %v4891, %v5159
    %v5192 = vmul.f32 %v4893, %v5160
    %v5193 = vmul.f32 %v4895, %v5161
    %v5194 = vmul.f32 %v4897, %v5162
    %v5195 = vmul.f32 %v4899, %v5163
    %v5196 = vmul.f32 %v4901, %v5164
    %v5197 = vmul.f32 %v4903, %v5165
    %v5198 = vmul.f32 %v4905, %v5166
    %v5199 = vmul.f32 %v4907, %v5167
    %v5200 = vmul.f32 %v4909, %v5168
    %v5201 = vmul.f32 %v4911, %v5169
    %v5202 = vmul.f32 %v4913, %v5170
    %5203 = vst [vmem:[#allocation13] sm:$0xff] %v1367
    %5204 = vst [vmem:[#allocation13 + $0x8] sm:$0xff] %v1369
    %5205 = vst [vmem:[#allocation13 + $0x10] sm:$0xff] %v1371
    %5206 = vst [vmem:[#allocation13 + $0x18] sm:$0xff] %v1373
    %5207 = vst [vmem:[#allocation13 + $0x20] sm:$0xff] %v1377
    %5208 = vst [vmem:[#allocation13 + $0x28] sm:$0xff] %v1379
    %5209 = vst [vmem:[#allocation13 + $0x30] sm:$0xff] %v1381
    %5210 = vst [vmem:[#allocation13 + $0x38] sm:$0xff] %v1383
    %5211 = vst [vmem:[#allocation13 + $0x40] sm:$0xff] %v1387
    %5212 = vst [vmem:[#allocation13 + $0x48] sm:$0xff] %v1389
    %5213 = vst [vmem:[#allocation13 + $0x50] sm:$0xff] %v1391
    %5214 = vst [vmem:[#allocation13 + $0x58] sm:$0xff] %v1393
    %5215 = vst [vmem:[#allocation13 + $0x60] sm:$0xff] %v1397
    %5216 = vst [vmem:[#allocation13 + $0x68] sm:$0xff] %v1399
    %5217 = vst [vmem:[#allocation13 + $0x70] sm:$0xff] %v1401
    %5218 = vst [vmem:[#allocation13 + $0x78] sm:$0xff] %v1403
    %5219 = vst [vmem:[#allocation13 + $0x80] sm:$0xff] %v1407
    %5220 = vst [vmem:[#allocation13 + $0x88] sm:$0xff] %v1409
    %5221 = vst [vmem:[#allocation13 + $0x90] sm:$0xff] %v1411
    %5222 = vst [vmem:[#allocation13 + $0x98] sm:$0xff] %v1413
    %5223 = vst [vmem:[#allocation13 + $0xa0] sm:$0xff] %v1417
    %5224 = vst [vmem:[#allocation13 + $0xa8] sm:$0xff] %v1419
    %5225 = vst [vmem:[#allocation13 + $0xb0] sm:$0xff] %v1421
    %5226 = vst [vmem:[#allocation13 + $0xb8] sm:$0xff] %v1423
    %5227 = vst [vmem:[#allocation13 + $0xc0] sm:$0xff] %v1427
    %5228 = vst [vmem:[#allocation13 + $0xc8] sm:$0xff] %v1429
    %5229 = vst [vmem:[#allocation13 + $0xd0] sm:$0xff] %v1431
    %5230 = vst [vmem:[#allocation13 + $0xd8] sm:$0xff] %v1433
    %5231 = vst [vmem:[#allocation13 + $0xe0] sm:$0xff] %v1437
    %5232 = vst [vmem:[#allocation13 + $0xe8] sm:$0xff] %v1439
    %5233 = vst [vmem:[#allocation13 + $0xf0] sm:$0xff] %v1441
    %5234 = vst [vmem:[#allocation13 + $0xf8] sm:$0xff] %v1443
    %5235 = vst [vmem:[#allocation13 + $0x100] sm:$0xff] %v1447
    %5236 = vst [vmem:[#allocation13 + $0x108] sm:$0xff] %v1449
    %5237 = vst [vmem:[#allocation13 + $0x110] sm:$0xff] %v1451
    %5238 = vst [vmem:[#allocation13 + $0x118] sm:$0xff] %v1453
    %5239 = vst [vmem:[#allocation13 + $0x120] sm:$0xff] %v1457
    %5240 = vst [vmem:[#allocation13 + $0x128] sm:$0xff] %v1459
    %5241 = vst [vmem:[#allocation13 + $0x130] sm:$0xff] %v1461
    %5242 = vst [vmem:[#allocation13 + $0x138] sm:$0xff] %v1463
    %5243 = vst [vmem:[#allocation13 + $0x140] sm:$0xff] %v1467
    %5244 = vst [vmem:[#allocation13 + $0x148] sm:$0xff] %v1469
    %5245 = vst [vmem:[#allocation13 + $0x150] sm:$0xff] %v1471
    %5246 = vst [vmem:[#allocation13 + $0x158] sm:$0xff] %v1473
    %5247 = vst [vmem:[#allocation13 + $0x160] sm:$0xff] %v1477
    %5248 = vst [vmem:[#allocation13 + $0x168] sm:$0xff] %v1479
    %5249 = vst [vmem:[#allocation13 + $0x170] sm:$0xff] %v1481
    %5250 = vst [vmem:[#allocation13 + $0x178] sm:$0xff] %v1483
    %5251 = vst [vmem:[#allocation13 + $0x180] sm:$0xff] %v1487
    %5252 = vst [vmem:[#allocation13 + $0x188] sm:$0xff] %v1489
    %5253 = vst [vmem:[#allocation13 + $0x190] sm:$0xff] %v1491
    %5254 = vst [vmem:[#allocation13 + $0x198] sm:$0xff] %v1493
    %5255 = vst [vmem:[#allocation13 + $0x1a0] sm:$0xff] %v1497
    %5256 = vst [vmem:[#allocation13 + $0x1a8] sm:$0xff] %v1499
    %5257 = vst [vmem:[#allocation13 + $0x1b0] sm:$0xff] %v1501
    %5258 = vst [vmem:[#allocation13 + $0x1b8] sm:$0xff] %v1503
    %5259 = vst [vmem:[#allocation13 + $0x1c0] sm:$0xff] %v1507
    %5260 = vst [vmem:[#allocation13 + $0x1c8] sm:$0xff] %v1509
    %5261 = vst [vmem:[#allocation13 + $0x1d0] sm:$0xff] %v1511
    %5262 = vst [vmem:[#allocation13 + $0x1d8] sm:$0xff] %v1513
    %5263 = vst [vmem:[#allocation13 + $0x1e0] sm:$0xff] %v1517
    %5264 = vst [vmem:[#allocation13 + $0x1e8] sm:$0xff] %v1519
    %5265 = vst [vmem:[#allocation13 + $0x1f0] sm:$0xff] %v1521
    %5266 = vst [vmem:[#allocation13 + $0x1f8] sm:$0xff] %v1523
    %5267 = vst [vmem:[#allocation14] sm:$0xff] %v3109
    %5268 = vst [vmem:[#allocation14 + $0x8] sm:$0xff] %v3110
    %5269 = vst [vmem:[#allocation14 + $0x10] sm:$0xff] %v3111
    %5270 = vst [vmem:[#allocation14 + $0x18] sm:$0xff] %v3112
    %5271 = vst [vmem:[#allocation14 + $0x20] sm:$0xff] %v3113
    %5272 = vst [vmem:[#allocation14 + $0x28] sm:$0xff] %v3114
    %5273 = vst [vmem:[#allocation14 + $0x30] sm:$0xff] %v3115
    %5274 = vst [vmem:[#allocation14 + $0x38] sm:$0xff] %v3116
    %5275 = vst [vmem:[#allocation14 + $0x40] sm:$0xff] %v3117
    %5276 = vst [vmem:[#allocation14 + $0x48] sm:$0xff] %v3118
    %5277 = vst [vmem:[#allocation14 + $0x50] sm:$0xff] %v3119
    %5278 = vst [vmem:[#allocation14 + $0x58] sm:$0xff] %v3120
    %5279 = vst [vmem:[#allocation14 + $0x60] sm:$0xff] %v3121
    %5280 = vst [vmem:[#allocation14 + $0x68] sm:$0xff] %v3122
    %5281 = vst [vmem:[#allocation14 + $0x70] sm:$0xff] %v3123
    %5282 = vst [vmem:[#allocation14 + $0x78] sm:$0xff] %v3124
    %5283 = vst [vmem:[#allocation14 + $0x80] sm:$0xff] %v3125
    %5284 = vst [vmem:[#allocation14 + $0x88] sm:$0xff] %v3126
    %5285 = vst [vmem:[#allocation14 + $0x90] sm:$0xff] %v3127
    %5286 = vst [vmem:[#allocation14 + $0x98] sm:$0xff] %v3128
    %5287 = vst [vmem:[#allocation14 + $0xa0] sm:$0xff] %v3129
    %5288 = vst [vmem:[#allocation14 + $0xa8] sm:$0xff] %v3130
    %5289 = vst [vmem:[#allocation14 + $0xb0] sm:$0xff] %v3131
    %5290 = vst [vmem:[#allocation14 + $0xb8] sm:$0xff] %v3132
    %5291 = vst [vmem:[#allocation14 + $0xc0] sm:$0xff] %v3133
    %5292 = vst [vmem:[#allocation14 + $0xc8] sm:$0xff] %v3134
    %5293 = vst [vmem:[#allocation14 + $0xd0] sm:$0xff] %v3135
    %5294 = vst [vmem:[#allocation14 + $0xd8] sm:$0xff] %v3136
    %5295 = vst [vmem:[#allocation14 + $0xe0] sm:$0xff] %v3137
    %5296 = vst [vmem:[#allocation14 + $0xe8] sm:$0xff] %v3138
    %5297 = vst [vmem:[#allocation14 + $0xf0] sm:$0xff] %v3139
    %5298 = vst [vmem:[#allocation14 + $0xf8] sm:$0xff] %v3140
    %5299 = vst [vmem:[#allocation14 + $0x100] sm:$0xff] %v3141
    %5300 = vst [vmem:[#allocation14 + $0x108] sm:$0xff] %v3142
    %5301 = vst [vmem:[#allocation14 + $0x110] sm:$0xff] %v3143
    %5302 = vst [vmem:[#allocation14 + $0x118] sm:$0xff] %v3144
    %5303 = vst [vmem:[#allocation14 + $0x120] sm:$0xff] %v3145
    %5304 = vst [vmem:[#allocation14 + $0x128] sm:$0xff] %v3146
    %5305 = vst [vmem:[#allocation14 + $0x130] sm:$0xff] %v3147
    %5306 = vst [vmem:[#allocation14 + $0x138] sm:$0xff] %v3148
    %5307 = vst [vmem:[#allocation14 + $0x140] sm:$0xff] %v3149
    %5308 = vst [vmem:[#allocation14 + $0x148] sm:$0xff] %v3150
    %5309 = vst [vmem:[#allocation14 + $0x150] sm:$0xff] %v3151
    %5310 = vst [vmem:[#allocation14 + $0x158] sm:$0xff] %v3152
    %5311 = vst [vmem:[#allocation14 + $0x160] sm:$0xff] %v3153
    %5312 = vst [vmem:[#allocation14 + $0x168] sm:$0xff] %v3154
    %5313 = vst [vmem:[#allocation14 + $0x170] sm:$0xff] %v3155
    %5314 = vst [vmem:[#allocation14 + $0x178] sm:$0xff] %v3156
    %5315 = vst [vmem:[#allocation14 + $0x180] sm:$0xff] %v3157
    %5316 = vst [vmem:[#allocation14 + $0x188] sm:$0xff] %v3158
    %5317 = vst [vmem:[#allocation14 + $0x190] sm:$0xff] %v3159
    %5318 = vst [vmem:[#allocation14 + $0x198] sm:$0xff] %v3160
    %5319 = vst [vmem:[#allocation14 + $0x1a0] sm:$0xff] %v3161
    %5320 = vst [vmem:[#allocation14 + $0x1a8] sm:$0xff] %v3162
    %5321 = vst [vmem:[#allocation14 + $0x1b0] sm:$0xff] %v3163
    %5322 = vst [vmem:[#allocation14 + $0x1b8] sm:$0xff] %v3164
    %5323 = vst [vmem:[#allocation14 + $0x1c0] sm:$0xff] %v3165
    %5324 = vst [vmem:[#allocation14 + $0x1c8] sm:$0xff] %v3166
    %5325 = vst [vmem:[#allocation14 + $0x1d0] sm:$0xff] %v3167
    %5326 = vst [vmem:[#allocation14 + $0x1d8] sm:$0xff] %v3168
    %5327 = vst [vmem:[#allocation14 + $0x1e0] sm:$0xff] %v3169
    %5328 = vst [vmem:[#allocation14 + $0x1e8] sm:$0xff] %v3170
    %5329 = vst [vmem:[#allocation14 + $0x1f0] sm:$0xff] %v3171
    %5330 = vst [vmem:[#allocation14 + $0x1f8] sm:$0xff] %v3172
    %5331 = vst.msk [vmem:[%s15] sm:$0xff] %vm4368, %v4689
    %5332 = vst.msk [vmem:[%s15 + $0x8] sm:$0xff] %vm4368, %v4690
    %5333 = vst.msk [vmem:[%s15 + $0x10] sm:$0xff] %vm4368, %v4691
    %5334 = vst.msk [vmem:[%s15 + $0x18] sm:$0xff] %vm4368, %v4692
    %5335 = vst.msk [vmem:[%s15 + $0x20] sm:$0xff] %vm4368, %v4693
    %5336 = vst.msk [vmem:[%s15 + $0x28] sm:$0xff] %vm4368, %v4694
    %5337 = vst.msk [vmem:[%s15 + $0x30] sm:$0xff] %vm4368, %v4695
    %5338 = vst.msk [vmem:[%s15 + $0x38] sm:$0xff] %vm4368, %v4696
    %5339 = vst.msk [vmem:[%s15 + $0x40] sm:$0xff] %vm4368, %v4697
    %5340 = vst.msk [vmem:[%s15 + $0x48] sm:$0xff] %vm4368, %v4698
    %5341 = vst.msk [vmem:[%s15 + $0x50] sm:$0xff] %vm4368, %v4699
    %5342 = vst.msk [vmem:[%s15 + $0x58] sm:$0xff] %vm4368, %v4700
    %5343 = vst.msk [vmem:[%s15 + $0x60] sm:$0xff] %vm4368, %v4701
    %5344 = vst.msk [vmem:[%s15 + $0x68] sm:$0xff] %vm4368, %v4702
    %5345 = vst.msk [vmem:[%s15 + $0x70] sm:$0xff] %vm4368, %v4703
    %5346 = vst.msk [vmem:[%s15 + $0x78] sm:$0xff] %vm4368, %v4704
    %5347 = vst.msk [vmem:[%s15 + $0x80] sm:$0xff] %vm4368, %v4705
    %5348 = vst.msk [vmem:[%s15 + $0x88] sm:$0xff] %vm4368, %v4706
    %5349 = vst.msk [vmem:[%s15 + $0x90] sm:$0xff] %vm4368, %v4707
    %5350 = vst.msk [vmem:[%s15 + $0x98] sm:$0xff] %vm4368, %v4708
    %5351 = vst.msk [vmem:[%s15 + $0xa0] sm:$0xff] %vm4368, %v4709
    %5352 = vst.msk [vmem:[%s15 + $0xa8] sm:$0xff] %vm4368, %v4710
    %5353 = vst.msk [vmem:[%s15 + $0xb0] sm:$0xff] %vm4368, %v4711
    %5354 = vst.msk [vmem:[%s15 + $0xb8] sm:$0xff] %vm4368, %v4712
    %5355 = vst.msk [vmem:[%s15 + $0xc0] sm:$0xff] %vm4368, %v4713
    %5356 = vst.msk [vmem:[%s15 + $0xc8] sm:$0xff] %vm4368, %v4714
    %5357 = vst.msk [vmem:[%s15 + $0xd0] sm:$0xff] %vm4368, %v4715
    %5358 = vst.msk [vmem:[%s15 + $0xd8] sm:$0xff] %vm4368, %v4716
    %5359 = vst.msk [vmem:[%s15 + $0xe0] sm:$0xff] %vm4368, %v4717
    %5360 = vst.msk [vmem:[%s15 + $0xe8] sm:$0xff] %vm4368, %v4718
    %5361 = vst.msk [vmem:[%s15 + $0xf0] sm:$0xff] %vm4368, %v4719
    %5362 = vst.msk [vmem:[%s15 + $0xf8] sm:$0xff] %vm4368, %v4720
    %5395 = vrot.lane.b32.xlu0 %v5171, 120
    %v5396 = vpop.permute.xlu0 %5395
    %5397 = vrot.lane.b32.xlu0 %v5172, 120
    %v5398 = vpop.permute.xlu0 %5397
    %5399 = vrot.lane.b32.xlu0 %v5173, 120
    %v5400 = vpop.permute.xlu0 %5399
    %5401 = vrot.lane.b32.xlu0 %v5174, 120
    %v5402 = vpop.permute.xlu0 %5401
    %5403 = vrot.lane.b32.xlu0 %v5175, 120
    %v5404 = vpop.permute.xlu0 %5403
    %5405 = vrot.lane.b32.xlu0 %v5176, 120
    %v5406 = vpop.permute.xlu0 %5405
    %5407 = vrot.lane.b32.xlu0 %v5177, 120
    %v5408 = vpop.permute.xlu0 %5407
    %5409 = vrot.lane.b32.xlu0 %v5178, 120
    %v5410 = vpop.permute.xlu0 %5409
    %5411 = vrot.lane.b32.xlu0 %v5179, 120
    %v5412 = vpop.permute.xlu0 %5411
    %5413 = vrot.lane.b32.xlu0 %v5180, 120
    %v5414 = vpop.permute.xlu0 %5413
    %5415 = vrot.lane.b32.xlu0 %v5181, 120
    %v5416 = vpop.permute.xlu0 %5415
    %5417 = vrot.lane.b32.xlu0 %v5182, 120
    %v5418 = vpop.permute.xlu0 %5417
    %5419 = vrot.lane.b32.xlu0 %v5183, 120
    %v5420 = vpop.permute.xlu0 %5419
    %5421 = vrot.lane.b32.xlu0 %v5184, 120
    %v5422 = vpop.permute.xlu0 %5421
    %5423 = vrot.lane.b32.xlu0 %v5185, 120
    %v5424 = vpop.permute.xlu0 %5423
    %5425 = vrot.lane.b32.xlu0 %v5186, 120
    %v5426 = vpop.permute.xlu0 %5425
    %5427 = vrot.lane.b32.xlu0 %v5187, 120
    %v5428 = vpop.permute.xlu0 %5427
    %5429 = vrot.lane.b32.xlu0 %v5188, 120
    %v5430 = vpop.permute.xlu0 %5429
    %5431 = vrot.lane.b32.xlu0 %v5189, 120
    %v5432 = vpop.permute.xlu0 %5431
    %5433 = vrot.lane.b32.xlu0 %v5190, 120
    %v5434 = vpop.permute.xlu0 %5433
    %5435 = vrot.lane.b32.xlu0 %v5191, 120
    %v5436 = vpop.permute.xlu0 %5435
    %5437 = vrot.lane.b32.xlu0 %v5192, 120
    %v5438 = vpop.permute.xlu0 %5437
    %5439 = vrot.lane.b32.xlu0 %v5193, 120
    %v5440 = vpop.permute.xlu0 %5439
    %5441 = vrot.lane.b32.xlu0 %v5194, 120
    %v5442 = vpop.permute.xlu0 %5441
    %5443 = vrot.lane.b32.xlu0 %v5195, 120
    %v5444 = vpop.permute.xlu0 %5443
    %5445 = vrot.lane.b32.xlu0 %v5196, 120
    %v5446 = vpop.permute.xlu0 %5445
    %5447 = vrot.lane.b32.xlu0 %v5197, 120
    %v5448 = vpop.permute.xlu0 %5447
    %5449 = vrot.lane.b32.xlu0 %v5198, 120
    %v5450 = vpop.permute.xlu0 %5449
    %5451 = vrot.lane.b32.xlu0 %v5199, 120
    %v5452 = vpop.permute.xlu0 %5451
    %5453 = vrot.lane.b32.xlu0 %v5200, 120
    %v5454 = vpop.permute.xlu0 %5453
    %5455 = vrot.lane.b32.xlu0 %v5201, 120
    %v5456 = vpop.permute.xlu0 %5455
    %5457 = vrot.lane.b32.xlu0 %v5202, 120
    %v5458 = vpop.permute.xlu0 %5457
    %5491 = vst.msk [vmem:[%s16] sm:$0xff] %vm5042, %v5396
    %5492 = vst.msk [vmem:[%s16 + $0x8] sm:$0xff] %vm5042, %v5398
    %5493 = vst.msk [vmem:[%s16 + $0x10] sm:$0xff] %vm5042, %v5400
    %5494 = vst.msk [vmem:[%s16 + $0x18] sm:$0xff] %vm5042, %v5402
    %5495 = vst.msk [vmem:[%s16 + $0x20] sm:$0xff] %vm5042, %v5404
    %5496 = vst.msk [vmem:[%s16 + $0x28] sm:$0xff] %vm5042, %v5406
    %5497 = vst.msk [vmem:[%s16 + $0x30] sm:$0xff] %vm5042, %v5408
    %5498 = vst.msk [vmem:[%s16 + $0x38] sm:$0xff] %vm5042, %v5410
    %5499 = vst.msk [vmem:[%s16 + $0x40] sm:$0xff] %vm5042, %v5412
    %5500 = vst.msk [vmem:[%s16 + $0x48] sm:$0xff] %vm5042, %v5414
    %5501 = vst.msk [vmem:[%s16 + $0x50] sm:$0xff] %vm5042, %v5416
    %5502 = vst.msk [vmem:[%s16 + $0x58] sm:$0xff] %vm5042, %v5418
    %5503 = vst.msk [vmem:[%s16 + $0x60] sm:$0xff] %vm5042, %v5420
    %5504 = vst.msk [vmem:[%s16 + $0x68] sm:$0xff] %vm5042, %v5422
    %5505 = vst.msk [vmem:[%s16 + $0x70] sm:$0xff] %vm5042, %v5424
    %5506 = vst.msk [vmem:[%s16 + $0x78] sm:$0xff] %vm5042, %v5426
    %5507 = vst.msk [vmem:[%s16 + $0x80] sm:$0xff] %vm5042, %v5428
    %5508 = vst.msk [vmem:[%s16 + $0x88] sm:$0xff] %vm5042, %v5430
    %5509 = vst.msk [vmem:[%s16 + $0x90] sm:$0xff] %vm5042, %v5432
    %5510 = vst.msk [vmem:[%s16 + $0x98] sm:$0xff] %vm5042, %v5434
    %5511 = vst.msk [vmem:[%s16 + $0xa0] sm:$0xff] %vm5042, %v5436
    %5512 = vst.msk [vmem:[%s16 + $0xa8] sm:$0xff] %vm5042, %v5438
    %5513 = vst.msk [vmem:[%s16 + $0xb0] sm:$0xff] %vm5042, %v5440
    %5514 = vst.msk [vmem:[%s16 + $0xb8] sm:$0xff] %vm5042, %v5442
    %5515 = vst.msk [vmem:[%s16 + $0xc0] sm:$0xff] %vm5042, %v5444
    %5516 = vst.msk [vmem:[%s16 + $0xc8] sm:$0xff] %vm5042, %v5446
    %5517 = vst.msk [vmem:[%s16 + $0xd0] sm:$0xff] %vm5042, %v5448
    %5518 = vst.msk [vmem:[%s16 + $0xd8] sm:$0xff] %vm5042, %v5450
    %5519 = vst.msk [vmem:[%s16 + $0xe0] sm:$0xff] %vm5042, %v5452
    %5520 = vst.msk [vmem:[%s16 + $0xe8] sm:$0xff] %vm5042, %v5454
    %5521 = vst.msk [vmem:[%s16 + $0xf0] sm:$0xff] %vm5042, %v5456
    %5522 = vst.msk [vmem:[%s16 + $0xf8] sm:$0xff] %vm5042, %v5458
    // Predicated region
    $region78: #{tpu_custom_call.1} parent=1 // pred_check
      _
    $region79: #{tpu_custom_call.1} parent=1 // pred_check_branch
      %5524 = sbr.rel (0) target = $region81
    $region80: #{tpu_custom_call.1} parent=1 // pred_region
      %s5526 = ssub.s32 8192, 8192
      %5527 = vsyncadd [#allocation4], %s5526
      %s5528 = sshll.u32 [#allocation13], 4
      %s5529 = int_to_ptr.vmem [resolvable:$true] %s5528
      %5534 = dma.vmem_to_hbm [thread:$0]  %s5529, 8192, %s13, [#allocation4], 256, 256, 16
    $region81: #{tpu_custom_call.1} parent=1 // pred_fallthru
      _
    // Predicated region
    $region82: #{tpu_custom_call.1} parent=1 // pred_check
      _
    $region83: #{tpu_custom_call.1} parent=1 // pred_check_branch
      %5536 = sbr.rel (0) target = $region85
    $region84: #{tpu_custom_call.1} parent=1 // pred_region
      %s5538 = ssub.s32 8192, 8192
      %5539 = vsyncadd [#allocation15], %s5538
      %s5540 = sshll.u32 [#allocation14], 4
      %s5541 = int_to_ptr.vmem [resolvable:$true] %s5540
      %5546 = dma.vmem_to_hbm [thread:$0]  %s5541, 8192, %s14, [#allocation15], 256, 256, 16
    $region85: #{tpu_custom_call.1} parent=1 // pred_fallthru
      _
    // Predicated region
    $region86: #{tpu_custom_call.1} parent=1 // pred_check
      _
    $region87: #{tpu_custom_call.1} parent=1 // pred_check_branch
      %5548 = sbr.rel (0) target = $region89
    $region88: #{tpu_custom_call.1} parent=1 // pred_region
      _
    $region89: #{tpu_custom_call.1} parent=1 // pred_fallthru
      _
    // Predicated region
    $region90: #{tpu_custom_call.1} parent=1 // pred_check
      _
    $region91: #{tpu_custom_call.1} parent=1 // pred_check_branch
      %5550 = sbr.rel (0) target = $region93
    $region92: #{tpu_custom_call.1} parent=1 // pred_region
      _
    $region93: #{tpu_custom_call.1} parent=1 // pred_fallthru
      _
    // Predicated region
    $region94: #{tpu_custom_call.1} parent=1 // pred_check
      _
    $region95: #{tpu_custom_call.1} parent=1 // pred_check_branch
      %5552 = sbr.rel (0) target = $region97
    $region96: #{tpu_custom_call.1} parent=1 // pred_region
      %5553 = dma.done [#allocation4], 8192
    $region97: #{tpu_custom_call.1} parent=1 // pred_fallthru
      _
    // Predicated region
    $region98: #{tpu_custom_call.1} parent=1 // pred_check
      _
    $region99: #{tpu_custom_call.1} parent=1 // pred_check_branch
      %5555 = sbr.rel (0) target = $region101
    $region100: #{tpu_custom_call.1} parent=1 // pred_region
      %5556 = dma.done [#allocation15], 8192
    $region101: #{tpu_custom_call.1} parent=1 // pred_fallthru
      _
    // Predicated region
    $region102: #{tpu_custom_call.1} parent=1 // pred_check
      _
    $region103: #{tpu_custom_call.1} parent=1 // pred_check_branch
      %5558 = sbr.rel (0) target = $region105
    $region104: #{tpu_custom_call.1} parent=1 // pred_region
      _
    $region105: #{tpu_custom_call.1} parent=1 // pred_fallthru
      _
    // Predicated region
    $region106: #{tpu_custom_call.1} parent=1 // pred_check
      _
    $region107: #{tpu_custom_call.1} parent=1 // pred_check_branch
      %5560 = sbr.rel (0) target = $region109
    $region108: #{tpu_custom_call.1} parent=1 // pred_region
      _
    $region109: #{tpu_custom_call.1} parent=1 // pred_fallthru
      _
    %5561 = vsyncpa [#allocation3], 1
    %5562 = vsyncpa [#allocation6], 1
    %5563 = vsyncpa [#allocation9], 1
    %5564 = vsyncpa [#allocation12], 1
    %5565 = vsyncpa [#allocation4], 1
    %5566 = vsyncpa [#allocation15], 1

</llo_original>
